<compile_context>
chip_gen: v7x
topology: tpu7x:2x2x1
jax: 0.10.0
libtpu: 0.0.40
codegen_flags: <defaults>
</compile_context>

<pallas_src>
import math

import jax
import jax.numpy as jnp
from jax.experimental import pallas as pl
from jax.experimental.pallas import tpu as pltpu

MAX_LEN = 256

# Model hyper-parameters (small, consistent with the module's __init__ signature).
VOCAB_SIZE = 50
EMBED_DIM = 32
NUM_HEADS = 4
HIDDEN_DIM = 64
BATCH = 2
SEQ = 8

LN_EPS = 1e-5


def _layernorm(x, gamma, beta):
    # x: (S, E) f32; gamma/beta: (1, E) f32
    mu = jnp.mean(x, axis=-1, keepdims=True)
    var = jnp.mean((x - mu) ** 2, axis=-1, keepdims=True)
    return (x - mu) * jax.lax.rsqrt(var + LN_EPS) * gamma + beta


def encoder_classifier_kernel(
    # scalar prefetch
    tok_ref,                       # SMEM (B, S) int32
    # inputs
    emb_hbm,                       # ANY  (VOCAB, E) f32 (stays in HBM; gathered via DMA)
    pos_ref,                       # VMEM (S, E) f32
    bias_ref,                      # VMEM (1, 1, S) f32 additive key-padding bias for this sequence
    w_in_ref, b_in_ref,            # (E, 3E) bf16, (1, 3E) f32
    w_out_ref, b_out_ref,          # (E, E)  bf16, (1, E)  f32
    ln1_g_ref, ln1_b_ref,          # (1, E) f32
    w1_ref, b1_ref,                # (E, F) bf16, (1, F) f32
    w2_ref, b2_ref,                # (F, E) bf16, (1, E) f32
    ln2_g_ref, ln2_b_ref,          # (1, E) f32
    fc_w_ref, fc_b_ref,            # (1, E) f32, (1, 1) f32
    # output
    out_ref,                       # VMEM (1, 1, 1) f32
    # scratch
    emb_buf, sem,                  # VMEM (S, E) f32, DMA sem (S,)
):
    b = pl.program_id(0)
    S, E = emb_buf.shape
    H = NUM_HEADS
    Dh = E // H

    # ---- Fused embedding gather: one small DMA per token row (padding row 0 is zero) ----
    copies = []
    for s in range(S):                        # static unroll, S is small
        cp = pltpu.make_async_copy(emb_hbm.at[tok_ref[b, s]], emb_buf.at[s], sem.at[s])
        cp.start()
        copies.append(cp)
    for cp in copies:
        cp.wait()

    # x = embedding + positional encoding
    x = emb_buf[...] + pos_ref[...]           # (S, E) f32

    # ---- Multi-head self-attention (all heads batched in one einsum pair) ----
    qkv = jnp.dot(x.astype(jnp.bfloat16), w_in_ref[...],
                  preferred_element_type=jnp.float32) + b_in_ref[...]      # (S, 3E) f32
    q = qkv[:, :E].reshape(S, H, Dh)
    k = qkv[:, E:2 * E].reshape(S, H, Dh)
    v = qkv[:, 2 * E:].reshape(S, H, Dh)

    scale = 1.0 / math.sqrt(Dh)
    scores = jnp.einsum('qhd,khd->hqk',
                        q.astype(jnp.bfloat16), k.astype(jnp.bfloat16),
                        preferred_element_type=jnp.float32) * scale         # (H, S, S) f32
    scores = scores + bias_ref[...]            # additive key-padding bias, broadcast (1,1,S)

    m = jnp.max(scores, axis=-1, keepdims=True)
    p = jnp.exp(scores - m)
    denom = jnp.sum(p, axis=-1, keepdims=True)
    p = p * pl.reciprocal(denom, approx=True)  # divide -> EUP reciprocal + VPU multiply

    ctx = jnp.einsum('hqk,khd->qhd',
                     p.astype(jnp.bfloat16), v.astype(jnp.bfloat16),
                     preferred_element_type=jnp.float32).reshape(S, E)      # (S, E) f32

    attn = jnp.dot(ctx.astype(jnp.bfloat16), w_out_ref[...],
                   preferred_element_type=jnp.float32) + b_out_ref[...]

    # residual + LayerNorm 1  (dropout is identity in eval mode)
    x2 = _layernorm(x + attn, ln1_g_ref[...], ln1_b_ref[...])

    # ---- Feed-forward (ReLU) ----
    h1 = jnp.dot(x2.astype(jnp.bfloat16), w1_ref[...],
                 preferred_element_type=jnp.float32) + b1_ref[...]
    h1 = jnp.maximum(h1, 0.0)
    ff = jnp.dot(h1.astype(jnp.bfloat16), w2_ref[...],
                 preferred_element_type=jnp.float32) + b2_ref[...]

    # residual + LayerNorm 2
    x2 = _layernorm(x2 + ff, ln2_g_ref[...], ln2_b_ref[...])

    # ---- Mean pool over sequence + final classifier (VPU dot, no N=1 MXU matmul) ----
    pooled = jnp.mean(x2, axis=0, keepdims=True)                            # (1, E)
    logit = jnp.sum(pooled * fc_w_ref[...], axis=-1, keepdims=True) + fc_b_ref[...]
    out_ref[...] = logit.reshape(1, 1, 1)


def transformer_classifier_forward(tokens, params):
    """tokens: (B, S) int32. Returns logits (B, 1) float32."""
    B, S = tokens.shape
    E = params['embedding'].shape[1]

    pos = params['pos_encoder'][0, :S, :]                                    # (S, E)
    # Additive key-padding bias (tokens == 0 are padding), shaped (B, 1, S).
    pad_bias = jnp.where(tokens == 0, -1e9, 0.0).astype(jnp.float32).reshape(B, 1, S)

    vmem = pl.BlockSpec(memory_space=pltpu.MemorySpace.VMEM)
    inputs = (
        params['embedding'],                                                 # HBM table
        pos, pad_bias,
        params['w_in'], params['b_in'], params['w_out'], params['b_out'],
        params['ln1_g'], params['ln1_b'],
        params['w1'], params['b1'], params['w2'], params['b2'],
        params['ln2_g'], params['ln2_b'],
        params['fc_w'], params['fc_b'],
    )
    in_specs = [
        pl.BlockSpec(memory_space=pl.ANY),                                   # embedding table stays in HBM
        vmem,                                                                # positional encoding (whole)
        pl.BlockSpec((1, 1, S), lambda b, tok: (b, 0, 0)),                   # per-sequence padding bias
    ] + [vmem] * 14                                                          # weights / biases (whole, tiny)

    grid_spec = pltpu.PrefetchScalarGridSpec(
        num_scalar_prefetch=1,                                               # token ids -> SMEM
        grid=(B,),                                                           # one sequence per grid step
        in_specs=in_specs,
        out_specs=pl.BlockSpec((1, 1, 1), lambda b, tok: (b, 0, 0)),
        scratch_shapes=[pltpu.VMEM((S, E), jnp.float32),                     # gathered embeddings
                        pltpu.SemaphoreType.DMA((S,))],
    )
    # TODO(synk): at real sizes, fold several sequences per grid step so the matmul M
    # dimension fills the MXU (B*S >= 128/256); at B=2, S=8 this is toy-sized.
    out = pl.pallas_call(
        encoder_classifier_kernel,
        grid_spec=grid_spec,
        out_shape=jax.ShapeDtypeStruct((B, 1, 1), jnp.float32),
        compiler_params=pltpu.CompilerParams(dimension_semantics=("parallel",)),
    )(tokens, *inputs)
    return out.reshape(B, 1)


def init_params(key):
    ks = jax.random.split(key, 12)
    E, H3, F = EMBED_DIM, 3 * EMBED_DIM, HIDDEN_DIM

    emb = 0.1 * jax.random.normal(ks[0], (VOCAB_SIZE, E), jnp.float32)
    emb = emb.at[0].set(0.0)                                   # padding_idx=0

    def pre_t(w):
        # PyTorch stores (out_features, in_features); pre-transpose once to (in, out)
        # and cast to bf16 so the kernel feeds the MXU directly (f32 accumulation).
        return w.T.astype(jnp.bfloat16)

    params = dict(
        embedding=emb,
        pos_encoder=jnp.zeros((1, MAX_LEN, E), jnp.float32),   # nn.Parameter(torch.zeros(...))
        # MultiheadAttention in_proj / out_proj
        w_in=pre_t(0.1 * jax.random.normal(ks[1], (H3, E), jnp.float32)),    # (E, 3E) bf16
        b_in=0.01 * jax.random.normal(ks[2], (1, H3), jnp.float32),
        w_out=pre_t(0.1 * jax.random.normal(ks[3], (E, E), jnp.float32)),    # (E, E) bf16
        b_out=0.01 * jax.random.normal(ks[4], (1, E), jnp.float32),
        # LayerNorm 1 / 2
        ln1_g=jnp.ones((1, E), jnp.float32), ln1_b=jnp.zeros((1, E), jnp.float32),
        ln2_g=jnp.ones((1, E), jnp.float32), ln2_b=jnp.zeros((1, E), jnp.float32),
        # Feed-forward
        w1=pre_t(0.1 * jax.random.normal(ks[5], (F, E), jnp.float32)),       # (E, F) bf16
        b1=0.01 * jax.random.normal(ks[6], (1, F), jnp.float32),
        w2=pre_t(0.1 * jax.random.normal(ks[7], (E, F), jnp.float32)),       # (F, E) bf16
        b2=0.01 * jax.random.normal(ks[8], (1, E), jnp.float32),
        # Final classifier (kept f32; applied as a VPU multiply+reduce in-kernel)
        fc_w=0.1 * jax.random.normal(ks[9], (1, E), jnp.float32),
        fc_b=0.01 * jax.random.normal(ks[10], (1, 1), jnp.float32),
    )
    # TODO(synk): dropout (p=0.1) layers are identity here (eval-mode semantics).
    return params


if __name__ == "__main__":
    key = jax.random.PRNGKey(0)
    pkey, tkey = jax.random.split(key)
    params = init_params(pkey)

    # Deterministic token ids in [1, VOCAB_SIZE), with some explicit padding (0).
    tokens = jax.random.randint(tkey, (BATCH, SEQ), 1, VOCAB_SIZE, dtype=jnp.int32)
    tokens = tokens.at[0, SEQ - 2:].set(0)   # pad tail of batch 0 to exercise the mask

    logits = transformer_classifier_forward(tokens, params)
    logits = jax.block_until_ready(logits)

    assert logits.shape == (BATCH, 1) and bool(jnp.all(jnp.isfinite(logits)))
    print("KERNEL_OK")
</pallas_src>

<mosaic_0001>
module attributes {stable_mosaic.version = 11 : i64} {
  func.func @encoder_classifier_kernel(%arg0: i32, %arg1: memref<2x8xi32, #tpu.memory_space<smem>>, %arg2: memref<50x32xf32, #tpu.memory_space<any>>, %arg3: memref<8x32xf32, #tpu.memory_space<vmem>>, %arg4: memref<1x1x8xf32, #tpu.memory_space<vmem>>, %arg5: memref<32x96xbf16, #tpu.memory_space<vmem>>, %arg6: memref<1x96xf32, #tpu.memory_space<vmem>>, %arg7: memref<32x32xbf16, #tpu.memory_space<vmem>>, %arg8: memref<1x32xf32, #tpu.memory_space<vmem>>, %arg9: memref<1x32xf32, #tpu.memory_space<vmem>>, %arg10: memref<1x32xf32, #tpu.memory_space<vmem>>, %arg11: memref<32x64xbf16, #tpu.memory_space<vmem>>, %arg12: memref<1x64xf32, #tpu.memory_space<vmem>>, %arg13: memref<64x32xbf16, #tpu.memory_space<vmem>>, %arg14: memref<1x32xf32, #tpu.memory_space<vmem>>, %arg15: memref<1x32xf32, #tpu.memory_space<vmem>>, %arg16: memref<1x32xf32, #tpu.memory_space<vmem>>, %arg17: memref<1x32xf32, #tpu.memory_space<vmem>>, %arg18: memref<1x1xf32, #tpu.memory_space<vmem>>, %arg19: memref<1x1x1xf32, #tpu.memory_space<vmem>>, %arg20: memref<8x32xf32, #tpu.memory_space<vmem>>, %arg21: memref<8x!tpu.dma_semaphore, #tpu.memory_space<semaphore_mem>>) attributes {dimension_semantics = [#tpu.dimension_semantics<parallel>], iteration_bounds = array<i64: 2>, scalar_prefetch = 1 : i64, scratch_operands = 2 : i64, tpu.core_type = #tpu.core_type<tc>, window_params = [{}, {pipeline_mode = #tpu.pipeline_mode<synchronous>, transform_indices = @transform_1, window_bounds = array<i64: 8, 32>}, {transform_indices = @transform_2, window_bounds = array<i64: 1, 1, 8>}, {pipeline_mode = #tpu.pipeline_mode<synchronous>, transform_indices = @transform_3, window_bounds = array<i64: 32, 96>}, {pipeline_mode = #tpu.pipeline_mode<synchronous>, transform_indices = @transform_4, window_bounds = array<i64: 1, 96>}, {pipeline_mode = #tpu.pipeline_mode<synchronous>, transform_indices = @transform_5, window_bounds = array<i64: 32, 32>}, {pipeline_mode = #tpu.pipeline_mode<synchronous>, transform_indices = @transform_6, window_bounds = array<i64: 1, 32>}, {pipeline_mode = #tpu.pipeline_mode<synchronous>, transform_indices = @transform_7, window_bounds = array<i64: 1, 32>}, {pipeline_mode = #tpu.pipeline_mode<synchronous>, transform_indices = @transform_8, window_bounds = array<i64: 1, 32>}, {pipeline_mode = #tpu.pipeline_mode<synchronous>, transform_indices = @transform_9, window_bounds = array<i64: 32, 64>}, {pipeline_mode = #tpu.pipeline_mode<synchronous>, transform_indices = @transform_10, window_bounds = array<i64: 1, 64>}, {pipeline_mode = #tpu.pipeline_mode<synchronous>, transform_indices = @transform_11, window_bounds = array<i64: 64, 32>}, {pipeline_mode = #tpu.pipeline_mode<synchronous>, transform_indices = @transform_12, window_bounds = array<i64: 1, 32>}, {pipeline_mode = #tpu.pipeline_mode<synchronous>, transform_indices = @transform_13, window_bounds = array<i64: 1, 32>}, {pipeline_mode = #tpu.pipeline_mode<synchronous>, transform_indices = @transform_14, window_bounds = array<i64: 1, 32>}, {pipeline_mode = #tpu.pipeline_mode<synchronous>, transform_indices = @transform_15, window_bounds = array<i64: 1, 32>}, {pipeline_mode = #tpu.pipeline_mode<synchronous>, transform_indices = @transform_16, window_bounds = array<i64: 1, 1>}, {transform_indices = @transform_17, window_bounds = array<i64: 1, 1, 1>}]} {
    %0 = arith.index_cast %arg0 : i32 to index
    %c0 = arith.constant 0 : index
    %1 = memref.load %arg1[%0, %c0] : memref<2x8xi32, #tpu.memory_space<smem>>
    %c0_i32 = arith.constant 0 : i32
    %c0_i32_0 = arith.constant 0 : i32
    %c0_i32_1 = arith.constant 0 : i32
    %2 = tpu.memref_slice %arg2[%1, %c0_i32_1] : memref<50x32xf32, #tpu.memory_space<any>> -> memref<1x32xf32, #tpu.memory_space<any>>
    %3 = tpu.memref_squeeze %2 : memref<1x32xf32, #tpu.memory_space<any>> -> memref<32xf32, #tpu.memory_space<any>>
    %c0_i32_2 = arith.constant 0 : i32
    %4 = tpu.memref_slice %arg20[%c0_i32, %c0_i32_2] : memref<8x32xf32, #tpu.memory_space<vmem>> -> memref<1x32xf32, #tpu.memory_space<vmem>>
    %5 = tpu.memref_squeeze %4 : memref<1x32xf32, #tpu.memory_space<vmem>> -> memref<32xf32, #tpu.memory_space<vmem>>
    %6 = tpu.memref_slice %arg21[%c0_i32_0] : memref<8x!tpu.dma_semaphore, #tpu.memory_space<semaphore_mem>> -> memref<1x!tpu.dma_semaphore, #tpu.memory_space<semaphore_mem>>
    %7 = tpu.memref_squeeze %6 : memref<1x!tpu.dma_semaphore, #tpu.memory_space<semaphore_mem>> -> memref<!tpu.dma_semaphore, #tpu.memory_space<semaphore_mem>>
    tpu.enqueue_dma source(%3 : memref<32xf32, #tpu.memory_space<any>>) target(%5 : memref<32xf32, #tpu.memory_space<vmem>>) target_semaphore(%7 : memref<!tpu.dma_semaphore, #tpu.memory_space<semaphore_mem>>)
    %8 = arith.index_cast %arg0 : i32 to index
    %c1 = arith.constant 1 : index
    %9 = memref.load %arg1[%8, %c1] : memref<2x8xi32, #tpu.memory_space<smem>>
    %c1_i32 = arith.constant 1 : i32
    %c1_i32_3 = arith.constant 1 : i32
    %c0_i32_4 = arith.constant 0 : i32
    %10 = tpu.memref_slice %arg2[%9, %c0_i32_4] : memref<50x32xf32, #tpu.memory_space<any>> -> memref<1x32xf32, #tpu.memory_space<any>>
    %11 = tpu.memref_squeeze %10 : memref<1x32xf32, #tpu.memory_space<any>> -> memref<32xf32, #tpu.memory_space<any>>
    %c0_i32_5 = arith.constant 0 : i32
    %12 = tpu.memref_slice %arg20[%c1_i32, %c0_i32_5] : memref<8x32xf32, #tpu.memory_space<vmem>> -> memref<1x32xf32, #tpu.memory_space<vmem>>
    %13 = tpu.memref_squeeze %12 : memref<1x32xf32, #tpu.memory_space<vmem>> -> memref<32xf32, #tpu.memory_space<vmem>>
    %14 = tpu.memref_slice %arg21[%c1_i32_3] : memref<8x!tpu.dma_semaphore, #tpu.memory_space<semaphore_mem>> -> memref<1x!tpu.dma_semaphore, #tpu.memory_space<semaphore_mem>>
    %15 = tpu.memref_squeeze %14 : memref<1x!tpu.dma_semaphore, #tpu.memory_space<semaphore_mem>> -> memref<!tpu.dma_semaphore, #tpu.memory_space<semaphore_mem>>
    tpu.enqueue_dma source(%11 : memref<32xf32, #tpu.memory_space<any>>) target(%13 : memref<32xf32, #tpu.memory_space<vmem>>) target_semaphore(%15 : memref<!tpu.dma_semaphore, #tpu.memory_space<semaphore_mem>>)
    %16 = arith.index_cast %arg0 : i32 to index
    %c2 = arith.constant 2 : index
    %17 = memref.load %arg1[%16, %c2] : memref<2x8xi32, #tpu.memory_space<smem>>
    %c2_i32 = arith.constant 2 : i32
    %c2_i32_6 = arith.constant 2 : i32
    %c0_i32_7 = arith.constant 0 : i32
    %18 = tpu.memref_slice %arg2[%17, %c0_i32_7] : memref<50x32xf32, #tpu.memory_space<any>> -> memref<1x32xf32, #tpu.memory_space<any>>
    %19 = tpu.memref_squeeze %18 : memref<1x32xf32, #tpu.memory_space<any>> -> memref<32xf32, #tpu.memory_space<any>>
    %c0_i32_8 = arith.constant 0 : i32
    %20 = tpu.memref_slice %arg20[%c2_i32, %c0_i32_8] : memref<8x32xf32, #tpu.memory_space<vmem>> -> memref<1x32xf32, #tpu.memory_space<vmem>>
    %21 = tpu.memref_squeeze %20 : memref<1x32xf32, #tpu.memory_space<vmem>> -> memref<32xf32, #tpu.memory_space<vmem>>
    %22 = tpu.memref_slice %arg21[%c2_i32_6] : memref<8x!tpu.dma_semaphore, #tpu.memory_space<semaphore_mem>> -> memref<1x!tpu.dma_semaphore, #tpu.memory_space<semaphore_mem>>
    %23 = tpu.memref_squeeze %22 : memref<1x!tpu.dma_semaphore, #tpu.memory_space<semaphore_mem>> -> memref<!tpu.dma_semaphore, #tpu.memory_space<semaphore_mem>>
    tpu.enqueue_dma source(%19 : memref<32xf32, #tpu.memory_space<any>>) target(%21 : memref<32xf32, #tpu.memory_space<vmem>>) target_semaphore(%23 : memref<!tpu.dma_semaphore, #tpu.memory_space<semaphore_mem>>)
    %24 = arith.index_cast %arg0 : i32 to index
    %c3 = arith.constant 3 : index
    %25 = memref.load %arg1[%24, %c3] : memref<2x8xi32, #tpu.memory_space<smem>>
    %c3_i32 = arith.constant 3 : i32
    %c3_i32_9 = arith.constant 3 : i32
    %c0_i32_10 = arith.constant 0 : i32
    %26 = tpu.memref_slice %arg2[%25, %c0_i32_10] : memref<50x32xf32, #tpu.memory_space<any>> -> memref<1x32xf32, #tpu.memory_space<any>>
    %27 = tpu.memref_squeeze %26 : memref<1x32xf32, #tpu.memory_space<any>> -> memref<32xf32, #tpu.memory_space<any>>
    %c0_i32_11 = arith.constant 0 : i32
    %28 = tpu.memref_slice %arg20[%c3_i32, %c0_i32_11] : memref<8x32xf32, #tpu.memory_space<vmem>> -> memref<1x32xf32, #tpu.memory_space<vmem>>
    %29 = tpu.memref_squeeze %28 : memref<1x32xf32, #tpu.memory_space<vmem>> -> memref<32xf32, #tpu.memory_space<vmem>>
    %30 = tpu.memref_slice %arg21[%c3_i32_9] : memref<8x!tpu.dma_semaphore, #tpu.memory_space<semaphore_mem>> -> memref<1x!tpu.dma_semaphore, #tpu.memory_space<semaphore_mem>>
    %31 = tpu.memref_squeeze %30 : memref<1x!tpu.dma_semaphore, #tpu.memory_space<semaphore_mem>> -> memref<!tpu.dma_semaphore, #tpu.memory_space<semaphore_mem>>
    tpu.enqueue_dma source(%27 : memref<32xf32, #tpu.memory_space<any>>) target(%29 : memref<32xf32, #tpu.memory_space<vmem>>) target_semaphore(%31 : memref<!tpu.dma_semaphore, #tpu.memory_space<semaphore_mem>>)
    %32 = arith.index_cast %arg0 : i32 to index
    %c4 = arith.constant 4 : index
    %33 = memref.load %arg1[%32, %c4] : memref<2x8xi32, #tpu.memory_space<smem>>
    %c4_i32 = arith.constant 4 : i32
    %c4_i32_12 = arith.constant 4 : i32
    %c0_i32_13 = arith.constant 0 : i32
    %34 = tpu.memref_slice %arg2[%33, %c0_i32_13] : memref<50x32xf32, #tpu.memory_space<any>> -> memref<1x32xf32, #tpu.memory_space<any>>
    %35 = tpu.memref_squeeze %34 : memref<1x32xf32, #tpu.memory_space<any>> -> memref<32xf32, #tpu.memory_space<any>>
    %c0_i32_14 = arith.constant 0 : i32
    %36 = tpu.memref_slice %arg20[%c4_i32, %c0_i32_14] : memref<8x32xf32, #tpu.memory_space<vmem>> -> memref<1x32xf32, #tpu.memory_space<vmem>>
    %37 = tpu.memref_squeeze %36 : memref<1x32xf32, #tpu.memory_space<vmem>> -> memref<32xf32, #tpu.memory_space<vmem>>
    %38 = tpu.memref_slice %arg21[%c4_i32_12] : memref<8x!tpu.dma_semaphore, #tpu.memory_space<semaphore_mem>> -> memref<1x!tpu.dma_semaphore, #tpu.memory_space<semaphore_mem>>
    %39 = tpu.memref_squeeze %38 : memref<1x!tpu.dma_semaphore, #tpu.memory_space<semaphore_mem>> -> memref<!tpu.dma_semaphore, #tpu.memory_space<semaphore_mem>>
    tpu.enqueue_dma source(%35 : memref<32xf32, #tpu.memory_space<any>>) target(%37 : memref<32xf32, #tpu.memory_space<vmem>>) target_semaphore(%39 : memref<!tpu.dma_semaphore, #tpu.memory_space<semaphore_mem>>)
    %40 = arith.index_cast %arg0 : i32 to index
    %c5 = arith.constant 5 : index
    %41 = memref.load %arg1[%40, %c5] : memref<2x8xi32, #tpu.memory_space<smem>>
    %c5_i32 = arith.constant 5 : i32
    %c5_i32_15 = arith.constant 5 : i32
    %c0_i32_16 = arith.constant 0 : i32
    %42 = tpu.memref_slice %arg2[%41, %c0_i32_16] : memref<50x32xf32, #tpu.memory_space<any>> -> memref<1x32xf32, #tpu.memory_space<any>>
    %43 = tpu.memref_squeeze %42 : memref<1x32xf32, #tpu.memory_space<any>> -> memref<32xf32, #tpu.memory_space<any>>
    %c0_i32_17 = arith.constant 0 : i32
    %44 = tpu.memref_slice %arg20[%c5_i32, %c0_i32_17] : memref<8x32xf32, #tpu.memory_space<vmem>> -> memref<1x32xf32, #tpu.memory_space<vmem>>
    %45 = tpu.memref_squeeze %44 : memref<1x32xf32, #tpu.memory_space<vmem>> -> memref<32xf32, #tpu.memory_space<vmem>>
    %46 = tpu.memref_slice %arg21[%c5_i32_15] : memref<8x!tpu.dma_semaphore, #tpu.memory_space<semaphore_mem>> -> memref<1x!tpu.dma_semaphore, #tpu.memory_space<semaphore_mem>>
    %47 = tpu.memref_squeeze %46 : memref<1x!tpu.dma_semaphore, #tpu.memory_space<semaphore_mem>> -> memref<!tpu.dma_semaphore, #tpu.memory_space<semaphore_mem>>
    tpu.enqueue_dma source(%43 : memref<32xf32, #tpu.memory_space<any>>) target(%45 : memref<32xf32, #tpu.memory_space<vmem>>) target_semaphore(%47 : memref<!tpu.dma_semaphore, #tpu.memory_space<semaphore_mem>>)
    %48 = arith.index_cast %arg0 : i32 to index
    %c6 = arith.constant 6 : index
    %49 = memref.load %arg1[%48, %c6] : memref<2x8xi32, #tpu.memory_space<smem>>
    %c6_i32 = arith.constant 6 : i32
    %c6_i32_18 = arith.constant 6 : i32
    %c0_i32_19 = arith.constant 0 : i32
    %50 = tpu.memref_slice %arg2[%49, %c0_i32_19] : memref<50x32xf32, #tpu.memory_space<any>> -> memref<1x32xf32, #tpu.memory_space<any>>
    %51 = tpu.memref_squeeze %50 : memref<1x32xf32, #tpu.memory_space<any>> -> memref<32xf32, #tpu.memory_space<any>>
    %c0_i32_20 = arith.constant 0 : i32
    %52 = tpu.memref_slice %arg20[%c6_i32, %c0_i32_20] : memref<8x32xf32, #tpu.memory_space<vmem>> -> memref<1x32xf32, #tpu.memory_space<vmem>>
    %53 = tpu.memref_squeeze %52 : memref<1x32xf32, #tpu.memory_space<vmem>> -> memref<32xf32, #tpu.memory_space<vmem>>
    %54 = tpu.memref_slice %arg21[%c6_i32_18] : memref<8x!tpu.dma_semaphore, #tpu.memory_space<semaphore_mem>> -> memref<1x!tpu.dma_semaphore, #tpu.memory_space<semaphore_mem>>
    %55 = tpu.memref_squeeze %54 : memref<1x!tpu.dma_semaphore, #tpu.memory_space<semaphore_mem>> -> memref<!tpu.dma_semaphore, #tpu.memory_space<semaphore_mem>>
    tpu.enqueue_dma source(%51 : memref<32xf32, #tpu.memory_space<any>>) target(%53 : memref<32xf32, #tpu.memory_space<vmem>>) target_semaphore(%55 : memref<!tpu.dma_semaphore, #tpu.memory_space<semaphore_mem>>)
    %56 = arith.index_cast %arg0 : i32 to index
    %c7 = arith.constant 7 : index
    %57 = memref.load %arg1[%56, %c7] : memref<2x8xi32, #tpu.memory_space<smem>>
    %c7_i32 = arith.constant 7 : i32
    %c7_i32_21 = arith.constant 7 : i32
    %c0_i32_22 = arith.constant 0 : i32
    %58 = tpu.memref_slice %arg2[%57, %c0_i32_22] : memref<50x32xf32, #tpu.memory_space<any>> -> memref<1x32xf32, #tpu.memory_space<any>>
    %59 = tpu.memref_squeeze %58 : memref<1x32xf32, #tpu.memory_space<any>> -> memref<32xf32, #tpu.memory_space<any>>
    %c0_i32_23 = arith.constant 0 : i32
    %60 = tpu.memref_slice %arg20[%c7_i32, %c0_i32_23] : memref<8x32xf32, #tpu.memory_space<vmem>> -> memref<1x32xf32, #tpu.memory_space<vmem>>
    %61 = tpu.memref_squeeze %60 : memref<1x32xf32, #tpu.memory_space<vmem>> -> memref<32xf32, #tpu.memory_space<vmem>>
    %62 = tpu.memref_slice %arg21[%c7_i32_21] : memref<8x!tpu.dma_semaphore, #tpu.memory_space<semaphore_mem>> -> memref<1x!tpu.dma_semaphore, #tpu.memory_space<semaphore_mem>>
    %63 = tpu.memref_squeeze %62 : memref<1x!tpu.dma_semaphore, #tpu.memory_space<semaphore_mem>> -> memref<!tpu.dma_semaphore, #tpu.memory_space<semaphore_mem>>
    tpu.enqueue_dma source(%59 : memref<32xf32, #tpu.memory_space<any>>) target(%61 : memref<32xf32, #tpu.memory_space<vmem>>) target_semaphore(%63 : memref<!tpu.dma_semaphore, #tpu.memory_space<semaphore_mem>>)
    %c0_i32_24 = arith.constant 0 : i32
    %c0_i32_25 = arith.constant 0 : i32
    %c0_i32_26 = arith.constant 0 : i32
    %64 = tpu.memref_slice %arg2[%1, %c0_i32_26] : memref<50x32xf32, #tpu.memory_space<any>> -> memref<1x32xf32, #tpu.memory_space<any>>
    %65 = tpu.memref_squeeze %64 : memref<1x32xf32, #tpu.memory_space<any>> -> memref<32xf32, #tpu.memory_space<any>>
    %c0_i32_27 = arith.constant 0 : i32
    %66 = tpu.memref_slice %arg20[%c0_i32_24, %c0_i32_27] : memref<8x32xf32, #tpu.memory_space<vmem>> -> memref<1x32xf32, #tpu.memory_space<vmem>>
    %67 = tpu.memref_squeeze %66 : memref<1x32xf32, #tpu.memory_space<vmem>> -> memref<32xf32, #tpu.memory_space<vmem>>
    %68 = tpu.memref_slice %arg21[%c0_i32_25] : memref<8x!tpu.dma_semaphore, #tpu.memory_space<semaphore_mem>> -> memref<1x!tpu.dma_semaphore, #tpu.memory_space<semaphore_mem>>
    %69 = tpu.memref_squeeze %68 : memref<1x!tpu.dma_semaphore, #tpu.memory_space<semaphore_mem>> -> memref<!tpu.dma_semaphore, #tpu.memory_space<semaphore_mem>>
    tpu.wait_dma2 semaphore(%69 : memref<!tpu.dma_semaphore, #tpu.memory_space<semaphore_mem>>) src(%65 : memref<32xf32, #tpu.memory_space<any>>) dst(%67 : memref<32xf32, #tpu.memory_space<vmem>>)
    %c1_i32_28 = arith.constant 1 : i32
    %c1_i32_29 = arith.constant 1 : i32
    %c0_i32_30 = arith.constant 0 : i32
    %70 = tpu.memref_slice %arg2[%9, %c0_i32_30] : memref<50x32xf32, #tpu.memory_space<any>> -> memref<1x32xf32, #tpu.memory_space<any>>
    %71 = tpu.memref_squeeze %70 : memref<1x32xf32, #tpu.memory_space<any>> -> memref<32xf32, #tpu.memory_space<any>>
    %c0_i32_31 = arith.constant 0 : i32
    %72 = tpu.memref_slice %arg20[%c1_i32_28, %c0_i32_31] : memref<8x32xf32, #tpu.memory_space<vmem>> -> memref<1x32xf32, #tpu.memory_space<vmem>>
    %73 = tpu.memref_squeeze %72 : memref<1x32xf32, #tpu.memory_space<vmem>> -> memref<32xf32, #tpu.memory_space<vmem>>
    %74 = tpu.memref_slice %arg21[%c1_i32_29] : memref<8x!tpu.dma_semaphore, #tpu.memory_space<semaphore_mem>> -> memref<1x!tpu.dma_semaphore, #tpu.memory_space<semaphore_mem>>
    %75 = tpu.memref_squeeze %74 : memref<1x!tpu.dma_semaphore, #tpu.memory_space<semaphore_mem>> -> memref<!tpu.dma_semaphore, #tpu.memory_space<semaphore_mem>>
    tpu.wait_dma2 semaphore(%75 : memref<!tpu.dma_semaphore, #tpu.memory_space<semaphore_mem>>) src(%71 : memref<32xf32, #tpu.memory_space<any>>) dst(%73 : memref<32xf32, #tpu.memory_space<vmem>>)
    %c2_i32_32 = arith.constant 2 : i32
    %c2_i32_33 = arith.constant 2 : i32
    %c0_i32_34 = arith.constant 0 : i32
    %76 = tpu.memref_slice %arg2[%17, %c0_i32_34] : memref<50x32xf32, #tpu.memory_space<any>> -> memref<1x32xf32, #tpu.memory_space<any>>
    %77 = tpu.memref_squeeze %76 : memref<1x32xf32, #tpu.memory_space<any>> -> memref<32xf32, #tpu.memory_space<any>>
    %c0_i32_35 = arith.constant 0 : i32
    %78 = tpu.memref_slice %arg20[%c2_i32_32, %c0_i32_35] : memref<8x32xf32, #tpu.memory_space<vmem>> -> memref<1x32xf32, #tpu.memory_space<vmem>>
    %79 = tpu.memref_squeeze %78 : memref<1x32xf32, #tpu.memory_space<vmem>> -> memref<32xf32, #tpu.memory_space<vmem>>
    %80 = tpu.memref_slice %arg21[%c2_i32_33] : memref<8x!tpu.dma_semaphore, #tpu.memory_space<semaphore_mem>> -> memref<1x!tpu.dma_semaphore, #tpu.memory_space<semaphore_mem>>
    %81 = tpu.memref_squeeze %80 : memref<1x!tpu.dma_semaphore, #tpu.memory_space<semaphore_mem>> -> memref<!tpu.dma_semaphore, #tpu.memory_space<semaphore_mem>>
    tpu.wait_dma2 semaphore(%81 : memref<!tpu.dma_semaphore, #tpu.memory_space<semaphore_mem>>) src(%77 : memref<32xf32, #tpu.memory_space<any>>) dst(%79 : memref<32xf32, #tpu.memory_space<vmem>>)
    %c3_i32_36 = arith.constant 3 : i32
    %c3_i32_37 = arith.constant 3 : i32
    %c0_i32_38 = arith.constant 0 : i32
    %82 = tpu.memref_slice %arg2[%25, %c0_i32_38] : memref<50x32xf32, #tpu.memory_space<any>> -> memref<1x32xf32, #tpu.memory_space<any>>
    %83 = tpu.memref_squeeze %82 : memref<1x32xf32, #tpu.memory_space<any>> -> memref<32xf32, #tpu.memory_space<any>>
    %c0_i32_39 = arith.constant 0 : i32
    %84 = tpu.memref_slice %arg20[%c3_i32_36, %c0_i32_39] : memref<8x32xf32, #tpu.memory_space<vmem>> -> memref<1x32xf32, #tpu.memory_space<vmem>>
    %85 = tpu.memref_squeeze %84 : memref<1x32xf32, #tpu.memory_space<vmem>> -> memref<32xf32, #tpu.memory_space<vmem>>
    %86 = tpu.memref_slice %arg21[%c3_i32_37] : memref<8x!tpu.dma_semaphore, #tpu.memory_space<semaphore_mem>> -> memref<1x!tpu.dma_semaphore, #tpu.memory_space<semaphore_mem>>
    %87 = tpu.memref_squeeze %86 : memref<1x!tpu.dma_semaphore, #tpu.memory_space<semaphore_mem>> -> memref<!tpu.dma_semaphore, #tpu.memory_space<semaphore_mem>>
    tpu.wait_dma2 semaphore(%87 : memref<!tpu.dma_semaphore, #tpu.memory_space<semaphore_mem>>) src(%83 : memref<32xf32, #tpu.memory_space<any>>) dst(%85 : memref<32xf32, #tpu.memory_space<vmem>>)
    %c4_i32_40 = arith.constant 4 : i32
    %c4_i32_41 = arith.constant 4 : i32
    %c0_i32_42 = arith.constant 0 : i32
    %88 = tpu.memref_slice %arg2[%33, %c0_i32_42] : memref<50x32xf32, #tpu.memory_space<any>> -> memref<1x32xf32, #tpu.memory_space<any>>
    %89 = tpu.memref_squeeze %88 : memref<1x32xf32, #tpu.memory_space<any>> -> memref<32xf32, #tpu.memory_space<any>>
    %c0_i32_43 = arith.constant 0 : i32
    %90 = tpu.memref_slice %arg20[%c4_i32_40, %c0_i32_43] : memref<8x32xf32, #tpu.memory_space<vmem>> -> memref<1x32xf32, #tpu.memory_space<vmem>>
    %91 = tpu.memref_squeeze %90 : memref<1x32xf32, #tpu.memory_space<vmem>> -> memref<32xf32, #tpu.memory_space<vmem>>
    %92 = tpu.memref_slice %arg21[%c4_i32_41] : memref<8x!tpu.dma_semaphore, #tpu.memory_space<semaphore_mem>> -> memref<1x!tpu.dma_semaphore, #tpu.memory_space<semaphore_mem>>
    %93 = tpu.memref_squeeze %92 : memref<1x!tpu.dma_semaphore, #tpu.memory_space<semaphore_mem>> -> memref<!tpu.dma_semaphore, #tpu.memory_space<semaphore_mem>>
    tpu.wait_dma2 semaphore(%93 : memref<!tpu.dma_semaphore, #tpu.memory_space<semaphore_mem>>) src(%89 : memref<32xf32, #tpu.memory_space<any>>) dst(%91 : memref<32xf32, #tpu.memory_space<vmem>>)
    %c5_i32_44 = arith.constant 5 : i32
    %c5_i32_45 = arith.constant 5 : i32
    %c0_i32_46 = arith.constant 0 : i32
    %94 = tpu.memref_slice %arg2[%41, %c0_i32_46] : memref<50x32xf32, #tpu.memory_space<any>> -> memref<1x32xf32, #tpu.memory_space<any>>
    %95 = tpu.memref_squeeze %94 : memref<1x32xf32, #tpu.memory_space<any>> -> memref<32xf32, #tpu.memory_space<any>>
    %c0_i32_47 = arith.constant 0 : i32
    %96 = tpu.memref_slice %arg20[%c5_i32_44, %c0_i32_47] : memref<8x32xf32, #tpu.memory_space<vmem>> -> memref<1x32xf32, #tpu.memory_space<vmem>>
    %97 = tpu.memref_squeeze %96 : memref<1x32xf32, #tpu.memory_space<vmem>> -> memref<32xf32, #tpu.memory_space<vmem>>
    %98 = tpu.memref_slice %arg21[%c5_i32_45] : memref<8x!tpu.dma_semaphore, #tpu.memory_space<semaphore_mem>> -> memref<1x!tpu.dma_semaphore, #tpu.memory_space<semaphore_mem>>
    %99 = tpu.memref_squeeze %98 : memref<1x!tpu.dma_semaphore, #tpu.memory_space<semaphore_mem>> -> memref<!tpu.dma_semaphore, #tpu.memory_space<semaphore_mem>>
    tpu.wait_dma2 semaphore(%99 : memref<!tpu.dma_semaphore, #tpu.memory_space<semaphore_mem>>) src(%95 : memref<32xf32, #tpu.memory_space<any>>) dst(%97 : memref<32xf32, #tpu.memory_space<vmem>>)
    %c6_i32_48 = arith.constant 6 : i32
    %c6_i32_49 = arith.constant 6 : i32
    %c0_i32_50 = arith.constant 0 : i32
    %100 = tpu.memref_slice %arg2[%49, %c0_i32_50] : memref<50x32xf32, #tpu.memory_space<any>> -> memref<1x32xf32, #tpu.memory_space<any>>
    %101 = tpu.memref_squeeze %100 : memref<1x32xf32, #tpu.memory_space<any>> -> memref<32xf32, #tpu.memory_space<any>>
    %c0_i32_51 = arith.constant 0 : i32
    %102 = tpu.memref_slice %arg20[%c6_i32_48, %c0_i32_51] : memref<8x32xf32, #tpu.memory_space<vmem>> -> memref<1x32xf32, #tpu.memory_space<vmem>>
    %103 = tpu.memref_squeeze %102 : memref<1x32xf32, #tpu.memory_space<vmem>> -> memref<32xf32, #tpu.memory_space<vmem>>
    %104 = tpu.memref_slice %arg21[%c6_i32_49] : memref<8x!tpu.dma_semaphore, #tpu.memory_space<semaphore_mem>> -> memref<1x!tpu.dma_semaphore, #tpu.memory_space<semaphore_mem>>
    %105 = tpu.memref_squeeze %104 : memref<1x!tpu.dma_semaphore, #tpu.memory_space<semaphore_mem>> -> memref<!tpu.dma_semaphore, #tpu.memory_space<semaphore_mem>>
    tpu.wait_dma2 semaphore(%105 : memref<!tpu.dma_semaphore, #tpu.memory_space<semaphore_mem>>) src(%101 : memref<32xf32, #tpu.memory_space<any>>) dst(%103 : memref<32xf32, #tpu.memory_space<vmem>>)
    %c7_i32_52 = arith.constant 7 : i32
    %c7_i32_53 = arith.constant 7 : i32
    %c0_i32_54 = arith.constant 0 : i32
    %106 = tpu.memref_slice %arg2[%57, %c0_i32_54] : memref<50x32xf32, #tpu.memory_space<any>> -> memref<1x32xf32, #tpu.memory_space<any>>
    %107 = tpu.memref_squeeze %106 : memref<1x32xf32, #tpu.memory_space<any>> -> memref<32xf32, #tpu.memory_space<any>>
    %c0_i32_55 = arith.constant 0 : i32
    %108 = tpu.memref_slice %arg20[%c7_i32_52, %c0_i32_55] : memref<8x32xf32, #tpu.memory_space<vmem>> -> memref<1x32xf32, #tpu.memory_space<vmem>>
    %109 = tpu.memref_squeeze %108 : memref<1x32xf32, #tpu.memory_space<vmem>> -> memref<32xf32, #tpu.memory_space<vmem>>
    %110 = tpu.memref_slice %arg21[%c7_i32_53] : memref<8x!tpu.dma_semaphore, #tpu.memory_space<semaphore_mem>> -> memref<1x!tpu.dma_semaphore, #tpu.memory_space<semaphore_mem>>
    %111 = tpu.memref_squeeze %110 : memref<1x!tpu.dma_semaphore, #tpu.memory_space<semaphore_mem>> -> memref<!tpu.dma_semaphore, #tpu.memory_space<semaphore_mem>>
    tpu.wait_dma2 semaphore(%111 : memref<!tpu.dma_semaphore, #tpu.memory_space<semaphore_mem>>) src(%107 : memref<32xf32, #tpu.memory_space<any>>) dst(%109 : memref<32xf32, #tpu.memory_space<vmem>>)
    %c0_56 = arith.constant 0 : index
    %c0_57 = arith.constant 0 : index
    %112 = vector.load %arg20[%c0_56, %c0_57] : memref<8x32xf32, #tpu.memory_space<vmem>>, vector<8x32xf32>
    %c0_58 = arith.constant 0 : index
    %c0_59 = arith.constant 0 : index
    %113 = vector.load %arg3[%c0_58, %c0_59] : memref<8x32xf32, #tpu.memory_space<vmem>>, vector<8x32xf32>
    %114 = arith.addf %112, %113 : vector<8x32xf32>
    %115 = arith.truncf %114 : vector<8x32xf32> to vector<8x32xbf16>
    %c0_60 = arith.constant 0 : index
    %c0_61 = arith.constant 0 : index
    %116 = vector.load %arg5[%c0_60, %c0_61] : memref<32x96xbf16, #tpu.memory_space<vmem>>, vector<32x96xbf16>
    %cst = arith.constant dense<0.000000e+00> : vector<8x96xf32>
    %117 = tpu.matmul %115, %116, %cst {dimension_numbers = #tpu.dot_dimension_numbers<[1], [0], [0], [1], [0, 0, 1, 1], [], []>} : vector<8x32xbf16>, vector<32x96xbf16>, vector<8x96xf32> -> vector<8x96xf32>
    %c0_62 = arith.constant 0 : index
    %c0_63 = arith.constant 0 : index
    %118 = vector.load %arg6[%c0_62, %c0_63] : memref<1x96xf32, #tpu.memory_space<vmem>>, vector<1x96xf32>
    %119 = vector.broadcast %118 : vector<1x96xf32> to vector<8x96xf32>
    %120 = arith.addf %117, %119 : vector<8x96xf32>
    %121 = vector.extract_strided_slice %120 {offsets = [0, 0], sizes = [8, 32], strides = [1, 1]} : vector<8x96xf32> to vector<8x32xf32>
    %122 = vector.shape_cast %121 : vector<8x32xf32> to vector<8x4x8xf32>
    %123 = vector.extract_strided_slice %120 {offsets = [0, 32], sizes = [8, 32], strides = [1, 1]} : vector<8x96xf32> to vector<8x32xf32>
    %124 = vector.shape_cast %123 : vector<8x32xf32> to vector<8x4x8xf32>
    %125 = vector.extract_strided_slice %120 {offsets = [0, 64], sizes = [8, 32], strides = [1, 1]} : vector<8x96xf32> to vector<8x32xf32>
    %126 = vector.shape_cast %125 : vector<8x32xf32> to vector<8x4x8xf32>
    %127 = arith.truncf %122 : vector<8x4x8xf32> to vector<8x4x8xbf16>
    %128 = arith.truncf %124 : vector<8x4x8xf32> to vector<8x4x8xbf16>
    "tpu.trace_start"() <{level = 10 : i32, message = "qhd,khd->hqk"}> : () -> ()
    %cst_64 = arith.constant dense<0.000000e+00> : vector<4x8x8xf32>
    %129 = tpu.matmul %127, %128, %cst_64 {dimension_numbers = #tpu.dot_dimension_numbers<[2], [2], [0], [0], [0, 1, 0, 0, 1, 0], [1], [1]>} : vector<8x4x8xbf16>, vector<8x4x8xbf16>, vector<4x8x8xf32> -> vector<4x8x8xf32>
    "tpu.trace_stop"() : () -> ()
    %cst_65 = arith.constant 0.353553385 : f32
    %130 = vector.broadcast %cst_65 : f32 to vector<4x8x8xf32>
    %131 = arith.mulf %129, %130 : vector<4x8x8xf32>
    %c0_66 = arith.constant 0 : index
    %c0_67 = arith.constant 0 : index
    %c0_68 = arith.constant 0 : index
    %132 = vector.load %arg4[%c0_66, %c0_67, %c0_68] : memref<1x1x8xf32, #tpu.memory_space<vmem>>, vector<1x1x8xf32>
    %133 = vector.broadcast %132 : vector<1x1x8xf32> to vector<4x8x8xf32>
    %134 = arith.addf %131, %133 : vector<4x8x8xf32>
    %cst_69 = arith.constant dense<0xFF800000> : vector<4x8xf32>
    %135 = vector.multi_reduction <maximumf>, %134, %cst_69 [2] : vector<4x8x8xf32> to vector<4x8xf32>
    %136 = vector.shape_cast %135 : vector<4x8xf32> to vector<4x8x1xf32>
    %137 = vector.broadcast %136 : vector<4x8x1xf32> to vector<4x8x8xf32>
    %138 = arith.subf %134, %137 : vector<4x8x8xf32>
    %139 = math.exp %138 : vector<4x8x8xf32>
    %cst_70 = arith.constant dense<0.000000e+00> : vector<4x8xf32>
    %140 = vector.multi_reduction <add>, %139, %cst_70 [2] : vector<4x8x8xf32> to vector<4x8xf32>
    %141 = vector.shape_cast %140 : vector<4x8xf32> to vector<4x8x1xf32>
    %142 = tpu.reciprocal %141 {approx = true} : vector<4x8x1xf32> -> vector<4x8x1xf32>
    %143 = vector.broadcast %142 : vector<4x8x1xf32> to vector<4x8x8xf32>
    %144 = arith.mulf %139, %143 : vector<4x8x8xf32>
    %145 = arith.truncf %144 : vector<4x8x8xf32> to vector<4x8x8xbf16>
    %146 = arith.truncf %126 : vector<8x4x8xf32> to vector<8x4x8xbf16>
    "tpu.trace_start"() <{level = 10 : i32, message = "hqk,khd->qhd"}> : () -> ()
    %cst_71 = arith.constant dense<0.000000e+00> : vector<4x8x8xf32>
    %147 = tpu.matmul %146, %145, %cst_71 {dimension_numbers = #tpu.dot_dimension_numbers<[0], [2], [2], [1], [0, 1, 0, 2, 1, 1], [1], [0]>} : vector<8x4x8xbf16>, vector<4x8x8xbf16>, vector<4x8x8xf32> -> vector<4x8x8xf32>
    %148 = tpu.transpose %147, [2, 0, 1] : vector<4x8x8xf32> -> vector<8x4x8xf32>
    "tpu.trace_stop"() : () -> ()
    %149 = vector.shape_cast %148 : vector<8x4x8xf32> to vector<8x32xf32>
    %150 = arith.truncf %149 : vector<8x32xf32> to vector<8x32xbf16>
    %c0_72 = arith.constant 0 : index
    %c0_73 = arith.constant 0 : index
    %151 = vector.load %arg7[%c0_72, %c0_73] : memref<32x32xbf16, #tpu.memory_space<vmem>>, vector<32x32xbf16>
    %cst_74 = arith.constant dense<0.000000e+00> : vector<8x32xf32>
    %152 = tpu.matmul %150, %151, %cst_74 {dimension_numbers = #tpu.dot_dimension_numbers<[1], [0], [0], [1], [0, 0, 1, 1], [], []>} : vector<8x32xbf16>, vector<32x32xbf16>, vector<8x32xf32> -> vector<8x32xf32>
    %c0_75 = arith.constant 0 : index
    %c0_76 = arith.constant 0 : index
    %153 = vector.load %arg8[%c0_75, %c0_76] : memref<1x32xf32, #tpu.memory_space<vmem>>, vector<1x32xf32>
    %154 = vector.broadcast %153 : vector<1x32xf32> to vector<8x32xf32>
    %155 = arith.addf %152, %154 : vector<8x32xf32>
    %156 = arith.addf %114, %155 : vector<8x32xf32>
    %c0_77 = arith.constant 0 : index
    %c0_78 = arith.constant 0 : index
    %157 = vector.load %arg9[%c0_77, %c0_78] : memref<1x32xf32, #tpu.memory_space<vmem>>, vector<1x32xf32>
    %c0_79 = arith.constant 0 : index
    %c0_80 = arith.constant 0 : index
    %158 = vector.load %arg10[%c0_79, %c0_80] : memref<1x32xf32, #tpu.memory_space<vmem>>, vector<1x32xf32>
    %cst_81 = arith.constant dense<0.000000e+00> : vector<8xf32>
    %159 = vector.multi_reduction <add>, %156, %cst_81 [1] : vector<8x32xf32> to vector<8xf32>
    %160 = vector.shape_cast %159 : vector<8xf32> to vector<8x1xf32>
    %cst_82 = arith.constant 3.200000e+01 : f32
    %161 = vector.broadcast %cst_82 : f32 to vector<8x1xf32>
    %162 = arith.divf %160, %161 : vector<8x1xf32>
    %163 = vector.broadcast %162 : vector<8x1xf32> to vector<8x32xf32>
    %164 = arith.subf %156, %163 : vector<8x32xf32>
    %165 = arith.mulf %164, %164 : vector<8x32xf32>
    %cst_83 = arith.constant dense<0.000000e+00> : vector<8xf32>
    %166 = vector.multi_reduction <add>, %165, %cst_83 [1] : vector<8x32xf32> to vector<8xf32>
    %167 = vector.shape_cast %166 : vector<8xf32> to vector<8x1xf32>
    %cst_84 = arith.constant 3.200000e+01 : f32
    %168 = vector.broadcast %cst_84 : f32 to vector<8x1xf32>
    %169 = arith.divf %167, %168 : vector<8x1xf32>
    %170 = vector.broadcast %162 : vector<8x1xf32> to vector<8x32xf32>
    %171 = arith.subf %156, %170 : vector<8x32xf32>
    %cst_85 = arith.constant 9.99999974E-6 : f32
    %172 = vector.broadcast %cst_85 : f32 to vector<8x1xf32>
    %173 = arith.addf %169, %172 : vector<8x1xf32>
    %174 = math.rsqrt %173 : vector<8x1xf32>
    %175 = vector.broadcast %174 : vector<8x1xf32> to vector<8x32xf32>
    %176 = arith.mulf %171, %175 : vector<8x32xf32>
    %177 = vector.broadcast %157 : vector<1x32xf32> to vector<8x32xf32>
    %178 = arith.mulf %176, %177 : vector<8x32xf32>
    %179 = vector.broadcast %158 : vector<1x32xf32> to vector<8x32xf32>
    %180 = arith.addf %178, %179 : vector<8x32xf32>
    %181 = arith.truncf %180 : vector<8x32xf32> to vector<8x32xbf16>
    %c0_86 = arith.constant 0 : index
    %c0_87 = arith.constant 0 : index
    %182 = vector.load %arg11[%c0_86, %c0_87] : memref<32x64xbf16, #tpu.memory_space<vmem>>, vector<32x64xbf16>
    %cst_88 = arith.constant dense<0.000000e+00> : vector<8x64xf32>
    %183 = tpu.matmul %181, %182, %cst_88 {dimension_numbers = #tpu.dot_dimension_numbers<[1], [0], [0], [1], [0, 0, 1, 1], [], []>} : vector<8x32xbf16>, vector<32x64xbf16>, vector<8x64xf32> -> vector<8x64xf32>
    %c0_89 = arith.constant 0 : index
    %c0_90 = arith.constant 0 : index
    %184 = vector.load %arg12[%c0_89, %c0_90] : memref<1x64xf32, #tpu.memory_space<vmem>>, vector<1x64xf32>
    %185 = vector.broadcast %184 : vector<1x64xf32> to vector<8x64xf32>
    %186 = arith.addf %183, %185 : vector<8x64xf32>
    %cst_91 = arith.constant 0.000000e+00 : f32
    %187 = vector.broadcast %cst_91 : f32 to vector<8x64xf32>
    %188 = arith.maximumf %186, %187 : vector<8x64xf32>
    %189 = arith.truncf %188 : vector<8x64xf32> to vector<8x64xbf16>
    %c0_92 = arith.constant 0 : index
    %c0_93 = arith.constant 0 : index
    %190 = vector.load %arg13[%c0_92, %c0_93] : memref<64x32xbf16, #tpu.memory_space<vmem>>, vector<64x32xbf16>
    %cst_94 = arith.constant dense<0.000000e+00> : vector<8x32xf32>
    %191 = tpu.matmul %189, %190, %cst_94 {dimension_numbers = #tpu.dot_dimension_numbers<[1], [0], [0], [1], [0, 0, 1, 1], [], []>} : vector<8x64xbf16>, vector<64x32xbf16>, vector<8x32xf32> -> vector<8x32xf32>
    %c0_95 = arith.constant 0 : index
    %c0_96 = arith.constant 0 : index
    %192 = vector.load %arg14[%c0_95, %c0_96] : memref<1x32xf32, #tpu.memory_space<vmem>>, vector<1x32xf32>
    %193 = vector.broadcast %192 : vector<1x32xf32> to vector<8x32xf32>
    %194 = arith.addf %191, %193 : vector<8x32xf32>
    %195 = arith.addf %180, %194 : vector<8x32xf32>
    %c0_97 = arith.constant 0 : index
    %c0_98 = arith.constant 0 : index
    %196 = vector.load %arg15[%c0_97, %c0_98] : memref<1x32xf32, #tpu.memory_space<vmem>>, vector<1x32xf32>
    %c0_99 = arith.constant 0 : index
    %c0_100 = arith.constant 0 : index
    %197 = vector.load %arg16[%c0_99, %c0_100] : memref<1x32xf32, #tpu.memory_space<vmem>>, vector<1x32xf32>
    %cst_101 = arith.constant dense<0.000000e+00> : vector<8xf32>
    %198 = vector.multi_reduction <add>, %195, %cst_101 [1] : vector<8x32xf32> to vector<8xf32>
    %199 = vector.shape_cast %198 : vector<8xf32> to vector<8x1xf32>
    %cst_102 = arith.constant 3.200000e+01 : f32
    %200 = vector.broadcast %cst_102 : f32 to vector<8x1xf32>
    %201 = arith.divf %199, %200 : vector<8x1xf32>
    %202 = vector.broadcast %201 : vector<8x1xf32> to vector<8x32xf32>
    %203 = arith.subf %195, %202 : vector<8x32xf32>
    %204 = arith.mulf %203, %203 : vector<8x32xf32>
    %cst_103 = arith.constant dense<0.000000e+00> : vector<8xf32>
    %205 = vector.multi_reduction <add>, %204, %cst_103 [1] : vector<8x32xf32> to vector<8xf32>
    %206 = vector.shape_cast %205 : vector<8xf32> to vector<8x1xf32>
    %cst_104 = arith.constant 3.200000e+01 : f32
    %207 = vector.broadcast %cst_104 : f32 to vector<8x1xf32>
    %208 = arith.divf %206, %207 : vector<8x1xf32>
    %209 = vector.broadcast %201 : vector<8x1xf32> to vector<8x32xf32>
    %210 = arith.subf %195, %209 : vector<8x32xf32>
    %cst_105 = arith.constant 9.99999974E-6 : f32
    %211 = vector.broadcast %cst_105 : f32 to vector<8x1xf32>
    %212 = arith.addf %208, %211 : vector<8x1xf32>
    %213 = math.rsqrt %212 : vector<8x1xf32>
    %214 = vector.broadcast %213 : vector<8x1xf32> to vector<8x32xf32>
    %215 = arith.mulf %210, %214 : vector<8x32xf32>
    %216 = vector.broadcast %196 : vector<1x32xf32> to vector<8x32xf32>
    %217 = arith.mulf %215, %216 : vector<8x32xf32>
    %218 = vector.broadcast %197 : vector<1x32xf32> to vector<8x32xf32>
    %219 = arith.addf %217, %218 : vector<8x32xf32>
    %cst_106 = arith.constant dense<0.000000e+00> : vector<32xf32>
    %220 = vector.multi_reduction <add>, %219, %cst_106 [0] : vector<8x32xf32> to vector<32xf32>
    %221 = vector.shape_cast %220 : vector<32xf32> to vector<1x32xf32>
    %cst_107 = arith.constant 8.000000e+00 : f32
    %222 = vector.broadcast %cst_107 : f32 to vector<1x32xf32>
    %223 = arith.divf %221, %222 : vector<1x32xf32>
    %c0_108 = arith.constant 0 : index
    %c0_109 = arith.constant 0 : index
    %224 = vector.load %arg17[%c0_108, %c0_109] : memref<1x32xf32, #tpu.memory_space<vmem>>, vector<1x32xf32>
    %225 = arith.mulf %223, %224 : vector<1x32xf32>
    %cst_110 = arith.constant dense<0.000000e+00> : vector<1xf32>
    %226 = vector.multi_reduction <add>, %225, %cst_110 [1] : vector<1x32xf32> to vector<1xf32>
    %227 = vector.shape_cast %226 : vector<1xf32> to vector<1x1xf32>
    %c0_111 = arith.constant 0 : index
    %c0_112 = arith.constant 0 : index
    %228 = vector.load %arg18[%c0_111, %c0_112] : memref<1x1xf32, #tpu.memory_space<vmem>>, vector<1x1xf32>
    %229 = arith.addf %227, %228 : vector<1x1xf32>
    %230 = vector.shape_cast %229 : vector<1x1xf32> to vector<1x1x1xf32>
    %c0_113 = arith.constant 0 : index
    %c0_114 = arith.constant 0 : index
    %c0_115 = arith.constant 0 : index
    %231 = vector.load %arg19[%c0_113, %c0_114, %c0_115] : memref<1x1x1xf32, #tpu.memory_space<vmem>>, vector<1x1x1xf32>
    tpu.vector_store %arg19[%c0_113, %c0_114, %c0_115], %230 {strides = array<i32>} : memref<1x1x1xf32, #tpu.memory_space<vmem>>, vector<1x1x1xf32>,
    return
  }
  func.func @transform_1(%arg0: i32, %arg1: memref<2x8xi32, #tpu.memory_space<smem>>) -> (i32, i32) {
    %c0_i32 = arith.constant 0 : i32
    %c0_i32_0 = arith.constant 0 : i32
    %c0_i32_1 = arith.constant 0 : i32
    return %c0_i32, %c0_i32_0 : i32, i32
  }
  func.func @transform_2(%arg0: i32, %arg1: memref<2x8xi32, #tpu.memory_space<smem>>) -> (i32, i32, i32) {
    %c0_i32 = arith.constant 0 : i32
    %c0_i32_0 = arith.constant 0 : i32
    %c0_i32_1 = arith.constant 0 : i32
    return %arg0, %c0_i32, %c0_i32_0 : i32, i32, i32
  }
  func.func @transform_3(%arg0: i32, %arg1: memref<2x8xi32, #tpu.memory_space<smem>>) -> (i32, i32) {
    %c0_i32 = arith.constant 0 : i32
    %c0_i32_0 = arith.constant 0 : i32
    %c0_i32_1 = arith.constant 0 : i32
    return %c0_i32, %c0_i32_0 : i32, i32
  }
  func.func @transform_4(%arg0: i32, %arg1: memref<2x8xi32, #tpu.memory_space<smem>>) -> (i32, i32) {
    %c0_i32 = arith.constant 0 : i32
    %c0_i32_0 = arith.constant 0 : i32
    %c0_i32_1 = arith.constant 0 : i32
    return %c0_i32, %c0_i32_0 : i32, i32
  }
  func.func @transform_5(%arg0: i32, %arg1: memref<2x8xi32, #tpu.memory_space<smem>>) -> (i32, i32) {
    %c0_i32 = arith.constant 0 : i32
    %c0_i32_0 = arith.constant 0 : i32
    %c0_i32_1 = arith.constant 0 : i32
    return %c0_i32, %c0_i32_0 : i32, i32
  }
  func.func @transform_6(%arg0: i32, %arg1: memref<2x8xi32, #tpu.memory_space<smem>>) -> (i32, i32) {
    %c0_i32 = arith.constant 0 : i32
    %c0_i32_0 = arith.constant 0 : i32
    %c0_i32_1 = arith.constant 0 : i32
    return %c0_i32, %c0_i32_0 : i32, i32
  }
  func.func @transform_7(%arg0: i32, %arg1: memref<2x8xi32, #tpu.memory_space<smem>>) -> (i32, i32) {
    %c0_i32 = arith.constant 0 : i32
    %c0_i32_0 = arith.constant 0 : i32
    %c0_i32_1 = arith.constant 0 : i32
    return %c0_i32, %c0_i32_0 : i32, i32
  }
  func.func @transform_8(%arg0: i32, %arg1: memref<2x8xi32, #tpu.memory_space<smem>>) -> (i32, i32) {
    %c0_i32 = arith.constant 0 : i32
    %c0_i32_0 = arith.constant 0 : i32
    %c0_i32_1 = arith.constant 0 : i32
    return %c0_i32, %c0_i32_0 : i32, i32
  }
  func.func @transform_9(%arg0: i32, %arg1: memref<2x8xi32, #tpu.memory_space<smem>>) -> (i32, i32) {
    %c0_i32 = arith.constant 0 : i32
    %c0_i32_0 = arith.constant 0 : i32
    %c0_i32_1 = arith.constant 0 : i32
    return %c0_i32, %c0_i32_0 : i32, i32
  }
  func.func @transform_10(%arg0: i32, %arg1: memref<2x8xi32, #tpu.memory_space<smem>>) -> (i32, i32) {
    %c0_i32 = arith.constant 0 : i32
    %c0_i32_0 = arith.constant 0 : i32
    %c0_i32_1 = arith.constant 0 : i32
    return %c0_i32, %c0_i32_0 : i32, i32
  }
  func.func @transform_11(%arg0: i32, %arg1: memref<2x8xi32, #tpu.memory_space<smem>>) -> (i32, i32) {
    %c0_i32 = arith.constant 0 : i32
    %c0_i32_0 = arith.constant 0 : i32
    %c0_i32_1 = arith.constant 0 : i32
    return %c0_i32, %c0_i32_0 : i32, i32
  }
  func.func @transform_12(%arg0: i32, %arg1: memref<2x8xi32, #tpu.memory_space<smem>>) -> (i32, i32) {
    %c0_i32 = arith.constant 0 : i32
    %c0_i32_0 = arith.constant 0 : i32
    %c0_i32_1 = arith.constant 0 : i32
    return %c0_i32, %c0_i32_0 : i32, i32
  }
  func.func @transform_13(%arg0: i32, %arg1: memref<2x8xi32, #tpu.memory_space<smem>>) -> (i32, i32) {
    %c0_i32 = arith.constant 0 : i32
    %c0_i32_0 = arith.constant 0 : i32
    %c0_i32_1 = arith.constant 0 : i32
    return %c0_i32, %c0_i32_0 : i32, i32
  }
  func.func @transform_14(%arg0: i32, %arg1: memref<2x8xi32, #tpu.memory_space<smem>>) -> (i32, i32) {
    %c0_i32 = arith.constant 0 : i32
    %c0_i32_0 = arith.constant 0 : i32
    %c0_i32_1 = arith.constant 0 : i32
    return %c0_i32, %c0_i32_0 : i32, i32
  }
  func.func @transform_15(%arg0: i32, %arg1: memref<2x8xi32, #tpu.memory_space<smem>>) -> (i32, i32) {
    %c0_i32 = arith.constant 0 : i32
    %c0_i32_0 = arith.constant 0 : i32
    %c0_i32_1 = arith.constant 0 : i32
    return %c0_i32, %c0_i32_0 : i32, i32
  }
  func.func @transform_16(%arg0: i32, %arg1: memref<2x8xi32, #tpu.memory_space<smem>>) -> (i32, i32) {
    %c0_i32 = arith.constant 0 : i32
    %c0_i32_0 = arith.constant 0 : i32
    %c0_i32_1 = arith.constant 0 : i32
    return %c0_i32, %c0_i32_0 : i32, i32
  }
  func.func @transform_17(%arg0: i32, %arg1: memref<2x8xi32, #tpu.memory_space<smem>>) -> (i32, i32, i32) {
    %c0_i32 = arith.constant 0 : i32
    %c0_i32_0 = arith.constant 0 : i32
    %c0_i32_1 = arith.constant 0 : i32
    return %arg0, %c0_i32, %c0_i32_0 : i32, i32, i32
  }
}

</mosaic_0001>

<llo_original>
// kernel: tpu_custom_call.1
$region0: #{tpu_custom_call.1}
  #allocation0 [shape = 'u32[]', space=smem, size = 0x4, offset = 0x4, fixed_abs, tag = 'smem constant byte address 0x4 - core index']
  #allocation1 [shape = 'u32[144,128]{1,0:T(1,128)}', space=vmem, size = 0x12000, scoped, tag = 'internal scratch']
  #allocation2 [shape = 'f32[8,32]{1,0:T(8,128)}', space=vmem, size = 0x1000, scoped, tag = 'scratch operand']
  #allocation3 [shape = 's32[8]{0}', space=sflag, size = 0x20, scoped, tag = 'scratch operand']
  #allocation4 [shape = 's32[1]{0}', space=sflag, size = 0x4, scoped, tag = 'scoped memory for tpu_custom_call.1']
  #allocation5 [shape = 'u8[1024]{0}', space=smem, size = 0x400, scoped, tag = 'prefetched SMEM operand 0']
  #allocation6 [shape = 'f32[1,1]{1,0:T(1,128)S(1)}', space=vmem, size = 0x200, scoped, tag = 'scoped memory for tpu_custom_call.1']
  #allocation7 [shape = 's32[]', space=sflag, size = 0x4, offset = 0, fixed_abs, tag = 'sflag constant byte address 0x0 - dummy sync flag']
  #allocation8 [shape = 's32[]', space=sflag, size = 0x4, offset = 0, fixed_abs, tag = 'sflag constant byte address 0x0 - dummy sync flag']
  #allocation9 [shape = 's32[]', space=sflag, size = 0x4, offset = 0, fixed_abs, tag = 'sflag constant byte address 0x0 - dummy sync flag']
  #allocation10 [shape = 's32[]', space=sflag, size = 0x4, offset = 0, fixed_abs, tag = 'sflag constant byte address 0x0 - dummy sync flag']
  #allocation11 [shape = 's32[]', space=sflag, size = 0x4, offset = 0, fixed_abs, tag = 'sflag constant byte address 0x0 - dummy sync flag']
  #allocation12 [shape = 's32[]', space=sflag, size = 0x4, offset = 0, fixed_abs, tag = 'sflag constant byte address 0x0 - dummy sync flag']
  #allocation13 [shape = 's32[]', space=sflag, size = 0x4, offset = 0, fixed_abs, tag = 'sflag constant byte address 0x0 - dummy sync flag']
  #allocation14 [shape = 's32[]', space=sflag, size = 0x4, offset = 0, fixed_abs, tag = 'sflag constant byte address 0x0 - dummy sync flag']
  %s0 = inlined_call_operand.vmem [shape: s32[2,8], index: 0, kind: input, shape index: {}]
  %s1 = inlined_call_operand.vmem [shape: f32[50,32], index: 1, kind: input, shape index: {}]
  %s2 = inlined_call_operand.vmem [shape: f32[8,32], index: 2, kind: input, shape index: {}]
  %s3 = inlined_call_operand.vmem [shape: f32[2,1,8], index: 3, kind: input, shape index: {}]
  %s4 = inlined_call_operand.vmem [shape: bf16[32,96], index: 4, kind: input, shape index: {}]
  %s5 = inlined_call_operand.vmem [shape: f32[1,96], index: 5, kind: input, shape index: {}]
  %s6 = inlined_call_operand.vmem [shape: bf16[32,32], index: 6, kind: input, shape index: {}]
  %s7 = inlined_call_operand.vmem [shape: f32[1,32], index: 7, kind: input, shape index: {}]
  %s8 = inlined_call_operand.vmem [shape: f32[1,32], index: 8, kind: input, shape index: {}]
  %s9 = inlined_call_operand.vmem [shape: f32[1,32], index: 9, kind: input, shape index: {}]
  %s10 = inlined_call_operand.vmem [shape: bf16[32,64], index: 10, kind: input, shape index: {}]
  %s11 = inlined_call_operand.vmem [shape: f32[1,64], index: 11, kind: input, shape index: {}]
  %s12 = inlined_call_operand.vmem [shape: bf16[64,32], index: 12, kind: input, shape index: {}]
  %s13 = inlined_call_operand.vmem [shape: f32[1,32], index: 13, kind: input, shape index: {}]
  %s14 = inlined_call_operand.vmem [shape: f32[1,32], index: 14, kind: input, shape index: {}]
  %s15 = inlined_call_operand.vmem [shape: f32[1,32], index: 15, kind: input, shape index: {}]
  %s16 = inlined_call_operand.vmem [shape: f32[1,32], index: 16, kind: input, shape index: {}]
  %s17 = inlined_call_operand.<no memory space> [shape: f32[1,1], index: 17, kind: input, shape index: {}]
  %s18 = inlined_call_operand.vmem [shape: f32[2,1,1], index: 18, kind: output, shape index: {}]
  %s19 = sld [smem:[#allocation0]]
  $region337: #{tpu_custom_call.1} parent=0
    _
  %s21 = ssub.s32 1, %s19
  %s22 = scalar_select 0, %s21, %s19
  %s23 = sshll.u32 %s0, 4
  %s24 = int_to_ptr.vmem [resolvable:$true] %s23
  %26 = dma.vmem_to_smem %s24, 32, [#allocation5], [#allocation4]
  %v27 = vstv %s17
  %28 = vst [vmem:[#allocation6] sm:$0x1] %v27
  %29 = dma.done [#allocation4], 32
  %30 = sfence
  loop: start=0, step=1, limit=4
  $region2: #{tpu_custom_call.1} parent=0 // loop_pre_header
    _
  $region3: #{tpu_custom_call.1} parent=0 // loop_header
    %s32 = sphi 0, %s36
    %p33 = scmp.ge.s32.totalorder %s32, 4
    %s40 = sphi 0, %s40
    %s42 = sphi 0, %s40
    %s43 = sphi 0, %s42
    %s57 = sphi 0, %s43
    %s63 = sphi 0, %s65
    %s66 = sphi 0, %s63
    %s67 = sphi 0, %s66
    %s83 = sphi 0, %s67
    %s87 = sphi 0, %s87
    %s89 = sphi 0, %s87
    %s90 = sphi 0, %s89
    %s104 = sphi 0, %s90
    %s108 = sphi 0, %s108
    %s110 = sphi 0, %s108
    %s111 = sphi 0, %s110
    %s125 = sphi 0, %s111
    %s129 = sphi 0, %s129
    %s131 = sphi 0, %s129
    %s132 = sphi 0, %s131
    %s146 = sphi 0, %s132
    %s150 = sphi 0, %s150
    %s152 = sphi 0, %s150
    %s153 = sphi 0, %s152
    %s167 = sphi 0, %s153
    %s171 = sphi 0, %s171
    %s173 = sphi 0, %s171
    %s174 = sphi 0, %s173
    %s188 = sphi 0, %s174
    %s192 = sphi 0, %s192
    %s194 = sphi 0, %s192
    %s195 = sphi 0, %s194
    %s209 = sphi 0, %s195
    %s213 = sphi 0, %s213
    %s215 = sphi 0, %s213
    %s216 = sphi 0, %s215
    %s230 = sphi 0, %s216
    %s234 = sphi 0, %s234
    %s236 = sphi 0, %s234
    %s237 = sphi 0, %s236
    %s251 = sphi 0, %s237
    %s255 = sphi 0, %s255
    %s257 = sphi 0, %s255
    %s258 = sphi 0, %s257
    %s272 = sphi 0, %s258
    %s276 = sphi 0, %s276
    %s278 = sphi 0, %s276
    %s279 = sphi 0, %s278
    %s293 = sphi 0, %s279
    %s297 = sphi 0, %s297
    %s299 = sphi 0, %s297
    %s300 = sphi 0, %s299
    %s314 = sphi 0, %s300
    %s318 = sphi 0, %s318
    %s320 = sphi 0, %s318
    %s321 = sphi 0, %s320
    %s335 = sphi 0, %s321
    %s339 = sphi 0, %s339
    %s341 = sphi 0, %s339
    %s342 = sphi 0, %s341
    %s356 = sphi 0, %s342
    %s360 = sphi 0, %s360
    %s362 = sphi 0, %s360
    %s363 = sphi 0, %s362
    %s377 = sphi 0, %s363
    %s383 = sphi 0, %s385
    %s386 = sphi 0, %s383
    %s387 = sphi 0, %s386
    %s403 = sphi 0, %s387
  $region4: #{tpu_custom_call.1} parent=0 // loop_header_branch
    %35 = sbr.rel (%p33) target = $region8
  $region5: #{tpu_custom_call.1} parent=0 // loop_body
    %s37 = ssub.s32 %s32, 1
    %s38 = ssub.s32 %s32, 2
    %s39 = sadd.s32 %s32, 1
    %s41 = sadd.s32 %s40, 1
    %p44 = scmp.eq.s32.totalorder %s32, 1
    %p45 = scmp.ne.s32.totalorder %s40, %s42
    %p46 = scmp.eq.s32.totalorder %s32, 0
    %p47 = por %p45, %p46
    %p48 = scmp.ne.s32.totalorder %s40, %s42
    %p49 = scmp.eq.s32.totalorder %s37, 1
    %p50 = por %p48, %p49
    %p51 = scmp.ne.s32.totalorder %s42, %s43
    %p52 = scmp.eq.s32.totalorder %s37, 0
    %p53 = por %p51, %p52
    %p54 = scmp.ne.s32.totalorder %s42, %s43
    %p55 = scmp.eq.s32.totalorder %s38, 1
    %p56 = por %p54, %p55
    %p58 = scmp.ne.s32.totalorder %s43, %s57
    %p59 = scmp.eq.s32.totalorder %s38, 0
    %p60 = por %p58, %p59
    %s61 = ssub.s32 %s32, %s39
    %p62 = scmp.eq.s32.totalorder %s61, 0
    %s64 = sadd.s32 %s63, 1
    %s65 = scalar_select %p62, %s63, %s64
    %p68 = pneg %p62
    %p69 = scmp.eq.s32.totalorder %s32, 1
    %p70 = por %p68, %p69
    %p71 = scmp.ne.s32.totalorder %s63, %s66
    %p72 = scmp.eq.s32.totalorder %s32, 0
    %p73 = por %p71, %p72
    %p74 = scmp.ne.s32.totalorder %s63, %s66
    %p75 = scmp.eq.s32.totalorder %s37, 1
    %p76 = por %p74, %p75
    %p77 = scmp.ne.s32.totalorder %s66, %s67
    %p78 = scmp.eq.s32.totalorder %s37, 0
    %p79 = por %p77, %p78
    %p80 = scmp.ne.s32.totalorder %s66, %s67
    %p81 = scmp.eq.s32.totalorder %s38, 1
    %p82 = por %p80, %p81
    %p84 = scmp.ne.s32.totalorder %s67, %s83
    %p85 = scmp.eq.s32.totalorder %s38, 0
    %p86 = por %p84, %p85
    %s88 = sadd.s32 %s87, 1
    %p91 = scmp.eq.s32.totalorder %s32, 1
    %p92 = scmp.ne.s32.totalorder %s87, %s89
    %p93 = scmp.eq.s32.totalorder %s32, 0
    %p94 = por %p92, %p93
    %p95 = scmp.ne.s32.totalorder %s87, %s89
    %p96 = scmp.eq.s32.totalorder %s37, 1
    %p97 = por %p95, %p96
    %p98 = scmp.ne.s32.totalorder %s89, %s90
    %p99 = scmp.eq.s32.totalorder %s37, 0
    %p100 = por %p98, %p99
    %p101 = scmp.ne.s32.totalorder %s89, %s90
    %p102 = scmp.eq.s32.totalorder %s38, 1
    %p103 = por %p101, %p102
    %p105 = scmp.ne.s32.totalorder %s90, %s104
    %p106 = scmp.eq.s32.totalorder %s38, 0
    %p107 = por %p105, %p106
    %s109 = sadd.s32 %s108, 1
    %p112 = scmp.eq.s32.totalorder %s32, 1
    %p113 = scmp.ne.s32.totalorder %s108, %s110
    %p114 = scmp.eq.s32.totalorder %s32, 0
    %p115 = por %p113, %p114
    %p116 = scmp.ne.s32.totalorder %s108, %s110
    %p117 = scmp.eq.s32.totalorder %s37, 1
    %p118 = por %p116, %p117
    %p119 = scmp.ne.s32.totalorder %s110, %s111
    %p120 = scmp.eq.s32.totalorder %s37, 0
    %p121 = por %p119, %p120
    %p122 = scmp.ne.s32.totalorder %s110, %s111
    %p123 = scmp.eq.s32.totalorder %s38, 1
    %p124 = por %p122, %p123
    %p126 = scmp.ne.s32.totalorder %s111, %s125
    %p127 = scmp.eq.s32.totalorder %s38, 0
    %p128 = por %p126, %p127
    %s130 = sadd.s32 %s129, 1
    %p133 = scmp.eq.s32.totalorder %s32, 1
    %p134 = scmp.ne.s32.totalorder %s129, %s131
    %p135 = scmp.eq.s32.totalorder %s32, 0
    %p136 = por %p134, %p135
    %p137 = scmp.ne.s32.totalorder %s129, %s131
    %p138 = scmp.eq.s32.totalorder %s37, 1
    %p139 = por %p137, %p138
    %p140 = scmp.ne.s32.totalorder %s131, %s132
    %p141 = scmp.eq.s32.totalorder %s37, 0
    %p142 = por %p140, %p141
    %p143 = scmp.ne.s32.totalorder %s131, %s132
    %p144 = scmp.eq.s32.totalorder %s38, 1
    %p145 = por %p143, %p144
    %p147 = scmp.ne.s32.totalorder %s132, %s146
    %p148 = scmp.eq.s32.totalorder %s38, 0
    %p149 = por %p147, %p148
    %s151 = sadd.s32 %s150, 1
    %p154 = scmp.eq.s32.totalorder %s32, 1
    %p155 = scmp.ne.s32.totalorder %s150, %s152
    %p156 = scmp.eq.s32.totalorder %s32, 0
    %p157 = por %p155, %p156
    %p158 = scmp.ne.s32.totalorder %s150, %s152
    %p159 = scmp.eq.s32.totalorder %s37, 1
    %p160 = por %p158, %p159
    %p161 = scmp.ne.s32.totalorder %s152, %s153
    %p162 = scmp.eq.s32.totalorder %s37, 0
    %p163 = por %p161, %p162
    %p164 = scmp.ne.s32.totalorder %s152, %s153
    %p165 = scmp.eq.s32.totalorder %s38, 1
    %p166 = por %p164, %p165
    %p168 = scmp.ne.s32.totalorder %s153, %s167
    %p169 = scmp.eq.s32.totalorder %s38, 0
    %p170 = por %p168, %p169
    %s172 = sadd.s32 %s171, 1
    %p175 = scmp.eq.s32.totalorder %s32, 1
    %p176 = scmp.ne.s32.totalorder %s171, %s173
    %p177 = scmp.eq.s32.totalorder %s32, 0
    %p178 = por %p176, %p177
    %p179 = scmp.ne.s32.totalorder %s171, %s173
    %p180 = scmp.eq.s32.totalorder %s37, 1
    %p181 = por %p179, %p180
    %p182 = scmp.ne.s32.totalorder %s173, %s174
    %p183 = scmp.eq.s32.totalorder %s37, 0
    %p184 = por %p182, %p183
    %p185 = scmp.ne.s32.totalorder %s173, %s174
    %p186 = scmp.eq.s32.totalorder %s38, 1
    %p187 = por %p185, %p186
    %p189 = scmp.ne.s32.totalorder %s174, %s188
    %p190 = scmp.eq.s32.totalorder %s38, 0
    %p191 = por %p189, %p190
    %s193 = sadd.s32 %s192, 1
    %p196 = scmp.eq.s32.totalorder %s32, 1
    %p197 = scmp.ne.s32.totalorder %s192, %s194
    %p198 = scmp.eq.s32.totalorder %s32, 0
    %p199 = por %p197, %p198
    %p200 = scmp.ne.s32.totalorder %s192, %s194
    %p201 = scmp.eq.s32.totalorder %s37, 1
    %p202 = por %p200, %p201
    %p203 = scmp.ne.s32.totalorder %s194, %s195
    %p204 = scmp.eq.s32.totalorder %s37, 0
    %p205 = por %p203, %p204
    %p206 = scmp.ne.s32.totalorder %s194, %s195
    %p207 = scmp.eq.s32.totalorder %s38, 1
    %p208 = por %p206, %p207
    %p210 = scmp.ne.s32.totalorder %s195, %s209
    %p211 = scmp.eq.s32.totalorder %s38, 0
    %p212 = por %p210, %p211
    %s214 = sadd.s32 %s213, 1
    %p217 = scmp.eq.s32.totalorder %s32, 1
    %p218 = scmp.ne.s32.totalorder %s213, %s215
    %p219 = scmp.eq.s32.totalorder %s32, 0
    %p220 = por %p218, %p219
    %p221 = scmp.ne.s32.totalorder %s213, %s215
    %p222 = scmp.eq.s32.totalorder %s37, 1
    %p223 = por %p221, %p222
    %p224 = scmp.ne.s32.totalorder %s215, %s216
    %p225 = scmp.eq.s32.totalorder %s37, 0
    %p226 = por %p224, %p225
    %p227 = scmp.ne.s32.totalorder %s215, %s216
    %p228 = scmp.eq.s32.totalorder %s38, 1
    %p229 = por %p227, %p228
    %p231 = scmp.ne.s32.totalorder %s216, %s230
    %p232 = scmp.eq.s32.totalorder %s38, 0
    %p233 = por %p231, %p232
    %s235 = sadd.s32 %s234, 1
    %p238 = scmp.eq.s32.totalorder %s32, 1
    %p239 = scmp.ne.s32.totalorder %s234, %s236
    %p240 = scmp.eq.s32.totalorder %s32, 0
    %p241 = por %p239, %p240
    %p242 = scmp.ne.s32.totalorder %s234, %s236
    %p243 = scmp.eq.s32.totalorder %s37, 1
    %p244 = por %p242, %p243
    %p245 = scmp.ne.s32.totalorder %s236, %s237
    %p246 = scmp.eq.s32.totalorder %s37, 0
    %p247 = por %p245, %p246
    %p248 = scmp.ne.s32.totalorder %s236, %s237
    %p249 = scmp.eq.s32.totalorder %s38, 1
    %p250 = por %p248, %p249
    %p252 = scmp.ne.s32.totalorder %s237, %s251
    %p253 = scmp.eq.s32.totalorder %s38, 0
    %p254 = por %p252, %p253
    %s256 = sadd.s32 %s255, 1
    %p259 = scmp.eq.s32.totalorder %s32, 1
    %p260 = scmp.ne.s32.totalorder %s255, %s257
    %p261 = scmp.eq.s32.totalorder %s32, 0
    %p262 = por %p260, %p261
    %p263 = scmp.ne.s32.totalorder %s255, %s257
    %p264 = scmp.eq.s32.totalorder %s37, 1
    %p265 = por %p263, %p264
    %p266 = scmp.ne.s32.totalorder %s257, %s258
    %p267 = scmp.eq.s32.totalorder %s37, 0
    %p268 = por %p266, %p267
    %p269 = scmp.ne.s32.totalorder %s257, %s258
    %p270 = scmp.eq.s32.totalorder %s38, 1
    %p271 = por %p269, %p270
    %p273 = scmp.ne.s32.totalorder %s258, %s272
    %p274 = scmp.eq.s32.totalorder %s38, 0
    %p275 = por %p273, %p274
    %s277 = sadd.s32 %s276, 1
    %p280 = scmp.eq.s32.totalorder %s32, 1
    %p281 = scmp.ne.s32.totalorder %s276, %s278
    %p282 = scmp.eq.s32.totalorder %s32, 0
    %p283 = por %p281, %p282
    %p284 = scmp.ne.s32.totalorder %s276, %s278
    %p285 = scmp.eq.s32.totalorder %s37, 1
    %p286 = por %p284, %p285
    %p287 = scmp.ne.s32.totalorder %s278, %s279
    %p288 = scmp.eq.s32.totalorder %s37, 0
    %p289 = por %p287, %p288
    %p290 = scmp.ne.s32.totalorder %s278, %s279
    %p291 = scmp.eq.s32.totalorder %s38, 1
    %p292 = por %p290, %p291
    %p294 = scmp.ne.s32.totalorder %s279, %s293
    %p295 = scmp.eq.s32.totalorder %s38, 0
    %p296 = por %p294, %p295
    %s298 = sadd.s32 %s297, 1
    %p301 = scmp.eq.s32.totalorder %s32, 1
    %p302 = scmp.ne.s32.totalorder %s297, %s299
    %p303 = scmp.eq.s32.totalorder %s32, 0
    %p304 = por %p302, %p303
    %p305 = scmp.ne.s32.totalorder %s297, %s299
    %p306 = scmp.eq.s32.totalorder %s37, 1
    %p307 = por %p305, %p306
    %p308 = scmp.ne.s32.totalorder %s299, %s300
    %p309 = scmp.eq.s32.totalorder %s37, 0
    %p310 = por %p308, %p309
    %p311 = scmp.ne.s32.totalorder %s299, %s300
    %p312 = scmp.eq.s32.totalorder %s38, 1
    %p313 = por %p311, %p312
    %p315 = scmp.ne.s32.totalorder %s300, %s314
    %p316 = scmp.eq.s32.totalorder %s38, 0
    %p317 = por %p315, %p316
    %s319 = sadd.s32 %s318, 1
    %p322 = scmp.eq.s32.totalorder %s32, 1
    %p323 = scmp.ne.s32.totalorder %s318, %s320
    %p324 = scmp.eq.s32.totalorder %s32, 0
    %p325 = por %p323, %p324
    %p326 = scmp.ne.s32.totalorder %s318, %s320
    %p327 = scmp.eq.s32.totalorder %s37, 1
    %p328 = por %p326, %p327
    %p329 = scmp.ne.s32.totalorder %s320, %s321
    %p330 = scmp.eq.s32.totalorder %s37, 0
    %p331 = por %p329, %p330
    %p332 = scmp.ne.s32.totalorder %s320, %s321
    %p333 = scmp.eq.s32.totalorder %s38, 1
    %p334 = por %p332, %p333
    %p336 = scmp.ne.s32.totalorder %s321, %s335
    %p337 = scmp.eq.s32.totalorder %s38, 0
    %p338 = por %p336, %p337
    %s340 = sadd.s32 %s339, 1
    %p343 = scmp.eq.s32.totalorder %s32, 1
    %p344 = scmp.ne.s32.totalorder %s339, %s341
    %p345 = scmp.eq.s32.totalorder %s32, 0
    %p346 = por %p344, %p345
    %p347 = scmp.ne.s32.totalorder %s339, %s341
    %p348 = scmp.eq.s32.totalorder %s37, 1
    %p349 = por %p347, %p348
    %p350 = scmp.ne.s32.totalorder %s341, %s342
    %p351 = scmp.eq.s32.totalorder %s37, 0
    %p352 = por %p350, %p351
    %p353 = scmp.ne.s32.totalorder %s341, %s342
    %p354 = scmp.eq.s32.totalorder %s38, 1
    %p355 = por %p353, %p354
    %p357 = scmp.ne.s32.totalorder %s342, %s356
    %p358 = scmp.eq.s32.totalorder %s38, 0
    %p359 = por %p357, %p358
    %s361 = sadd.s32 %s360, 1
    %p364 = scmp.eq.s32.totalorder %s32, 1
    %p365 = scmp.ne.s32.totalorder %s360, %s362
    %p366 = scmp.eq.s32.totalorder %s32, 0
    %p367 = por %p365, %p366
    %p368 = scmp.ne.s32.totalorder %s360, %s362
    %p369 = scmp.eq.s32.totalorder %s37, 1
    %p370 = por %p368, %p369
    %p371 = scmp.ne.s32.totalorder %s362, %s363
    %p372 = scmp.eq.s32.totalorder %s37, 0
    %p373 = por %p371, %p372
    %p374 = scmp.ne.s32.totalorder %s362, %s363
    %p375 = scmp.eq.s32.totalorder %s38, 1
    %p376 = por %p374, %p375
    %p378 = scmp.ne.s32.totalorder %s363, %s377
    %p379 = scmp.eq.s32.totalorder %s38, 0
    %p380 = por %p378, %p379
    %s381 = ssub.s32 %s32, %s39
    %p382 = scmp.eq.s32.totalorder %s381, 0
    %s384 = sadd.s32 %s383, 1
    %s385 = scalar_select %p382, %s383, %s384
    %p388 = pneg %p382
    %p389 = scmp.eq.s32.totalorder %s32, 1
    %p390 = por %p388, %p389
    %p391 = scmp.ne.s32.totalorder %s383, %s386
    %p392 = scmp.eq.s32.totalorder %s32, 0
    %p393 = por %p391, %p392
    %p394 = scmp.ne.s32.totalorder %s383, %s386
    %p395 = scmp.eq.s32.totalorder %s37, 1
    %p396 = por %p394, %p395
    %p397 = scmp.ne.s32.totalorder %s386, %s387
    %p398 = scmp.eq.s32.totalorder %s37, 0
    %p399 = por %p397, %p398
    %p400 = scmp.ne.s32.totalorder %s386, %s387
    %p401 = scmp.eq.s32.totalorder %s38, 1
    %p402 = por %p400, %p401
    %p404 = scmp.ne.s32.totalorder %s387, %s403
    %p405 = scmp.eq.s32.totalorder %s38, 0
    %p406 = por %p404, %p405
    %p407 = scmp.le.s32.totalorder 1, %s32
    %p408 = scmp.lt.s32.totalorder %s32, 3
    %p409 = pnand %p407, %p408
    %p410 = pneg %p409
    // Predicated region
    $region9: #{tpu_custom_call.1} parent=5 // pred_check
      _
    $region10: #{tpu_custom_call.1} parent=5 // pred_check_branch
      %412 = sbr.rel (%p409) target = $region12
    $region11: #{tpu_custom_call.1} parent=5 // pred_region
      %s413 = ssub.s32 %s32, 1
      // Predicated region
      $region13: #{tpu_custom_call.1} parent=11 // pred_check
        %p414 = pneg %p53
      $region14: #{tpu_custom_call.1} parent=11 // pred_check_branch
        %416 = sbr.rel (%p414) target = $region16
      $region15: #{tpu_custom_call.1} parent=11 // pred_region
        _
      $region16: #{tpu_custom_call.1} parent=11 // pred_fallthru
        _
      // Predicated region
      $region17: #{tpu_custom_call.1} parent=11 // pred_check
        %p417 = pneg %p100
      $region18: #{tpu_custom_call.1} parent=11 // pred_check_branch
        %419 = sbr.rel (%p417) target = $region20
      $region19: #{tpu_custom_call.1} parent=11 // pred_region
        _
      $region20: #{tpu_custom_call.1} parent=11 // pred_fallthru
        _
      // Predicated region
      $region21: #{tpu_custom_call.1} parent=11 // pred_check
        %p420 = pneg %p121
      $region22: #{tpu_custom_call.1} parent=11 // pred_check_branch
        %422 = sbr.rel (%p420) target = $region24
      $region23: #{tpu_custom_call.1} parent=11 // pred_region
        _
      $region24: #{tpu_custom_call.1} parent=11 // pred_fallthru
        _
      // Predicated region
      $region25: #{tpu_custom_call.1} parent=11 // pred_check
        %p423 = pneg %p142
      $region26: #{tpu_custom_call.1} parent=11 // pred_check_branch
        %425 = sbr.rel (%p423) target = $region28
      $region27: #{tpu_custom_call.1} parent=11 // pred_region
        _
      $region28: #{tpu_custom_call.1} parent=11 // pred_fallthru
        _
      // Predicated region
      $region29: #{tpu_custom_call.1} parent=11 // pred_check
        %p426 = pneg %p163
      $region30: #{tpu_custom_call.1} parent=11 // pred_check_branch
        %428 = sbr.rel (%p426) target = $region32
      $region31: #{tpu_custom_call.1} parent=11 // pred_region
        _
      $region32: #{tpu_custom_call.1} parent=11 // pred_fallthru
        _
      // Predicated region
      $region33: #{tpu_custom_call.1} parent=11 // pred_check
        %p429 = pneg %p184
      $region34: #{tpu_custom_call.1} parent=11 // pred_check_branch
        %431 = sbr.rel (%p429) target = $region36
      $region35: #{tpu_custom_call.1} parent=11 // pred_region
        _
      $region36: #{tpu_custom_call.1} parent=11 // pred_fallthru
        _
      // Predicated region
      $region37: #{tpu_custom_call.1} parent=11 // pred_check
        %p432 = pneg %p205
      $region38: #{tpu_custom_call.1} parent=11 // pred_check_branch
        %434 = sbr.rel (%p432) target = $region40
      $region39: #{tpu_custom_call.1} parent=11 // pred_region
        _
      $region40: #{tpu_custom_call.1} parent=11 // pred_fallthru
        _
      // Predicated region
      $region41: #{tpu_custom_call.1} parent=11 // pred_check
        %p435 = pneg %p226
      $region42: #{tpu_custom_call.1} parent=11 // pred_check_branch
        %437 = sbr.rel (%p435) target = $region44
      $region43: #{tpu_custom_call.1} parent=11 // pred_region
        _
      $region44: #{tpu_custom_call.1} parent=11 // pred_fallthru
        _
      // Predicated region
      $region45: #{tpu_custom_call.1} parent=11 // pred_check
        %p438 = pneg %p247
      $region46: #{tpu_custom_call.1} parent=11 // pred_check_branch
        %440 = sbr.rel (%p438) target = $region48
      $region47: #{tpu_custom_call.1} parent=11 // pred_region
        _
      $region48: #{tpu_custom_call.1} parent=11 // pred_fallthru
        _
      // Predicated region
      $region49: #{tpu_custom_call.1} parent=11 // pred_check
        %p441 = pneg %p268
      $region50: #{tpu_custom_call.1} parent=11 // pred_check_branch
        %443 = sbr.rel (%p441) target = $region52
      $region51: #{tpu_custom_call.1} parent=11 // pred_region
        _
      $region52: #{tpu_custom_call.1} parent=11 // pred_fallthru
        _
      // Predicated region
      $region53: #{tpu_custom_call.1} parent=11 // pred_check
        %p444 = pneg %p289
      $region54: #{tpu_custom_call.1} parent=11 // pred_check_branch
        %446 = sbr.rel (%p444) target = $region56
      $region55: #{tpu_custom_call.1} parent=11 // pred_region
        _
      $region56: #{tpu_custom_call.1} parent=11 // pred_fallthru
        _
      // Predicated region
      $region57: #{tpu_custom_call.1} parent=11 // pred_check
        %p447 = pneg %p310
      $region58: #{tpu_custom_call.1} parent=11 // pred_check_branch
        %449 = sbr.rel (%p447) target = $region60
      $region59: #{tpu_custom_call.1} parent=11 // pred_region
        _
      $region60: #{tpu_custom_call.1} parent=11 // pred_fallthru
        _
      // Predicated region
      $region61: #{tpu_custom_call.1} parent=11 // pred_check
        %p450 = pneg %p331
      $region62: #{tpu_custom_call.1} parent=11 // pred_check_branch
        %452 = sbr.rel (%p450) target = $region64
      $region63: #{tpu_custom_call.1} parent=11 // pred_region
        _
      $region64: #{tpu_custom_call.1} parent=11 // pred_fallthru
        _
      // Predicated region
      $region65: #{tpu_custom_call.1} parent=11 // pred_check
        %p453 = pneg %p352
      $region66: #{tpu_custom_call.1} parent=11 // pred_check_branch
        %455 = sbr.rel (%p453) target = $region68
      $region67: #{tpu_custom_call.1} parent=11 // pred_region
        _
      $region68: #{tpu_custom_call.1} parent=11 // pred_fallthru
        _
      // Predicated region
      $region69: #{tpu_custom_call.1} parent=11 // pred_check
        %p456 = pneg %p373
      $region70: #{tpu_custom_call.1} parent=11 // pred_check_branch
        %458 = sbr.rel (%p456) target = $region72
      $region71: #{tpu_custom_call.1} parent=11 // pred_region
        _
      $region72: #{tpu_custom_call.1} parent=11 // pred_fallthru
        _
    $region12: #{tpu_custom_call.1} parent=5 // pred_fallthru
      _
    %p459 = scmp.lt.s32.totalorder %s32, 2
    // Predicated region
    $region73: #{tpu_custom_call.1} parent=5 // pred_check
      %p460 = pneg %p459
    $region74: #{tpu_custom_call.1} parent=5 // pred_check_branch
      %462 = sbr.rel (%p460) target = $region76
    $region75: #{tpu_custom_call.1} parent=5 // pred_region
      // Predicated region
      $region77: #{tpu_custom_call.1} parent=75 // pred_check
        %p463 = pneg %p73
      $region78: #{tpu_custom_call.1} parent=75 // pred_check_branch
        %465 = sbr.rel (%p463) target = $region80
      $region79: #{tpu_custom_call.1} parent=75 // pred_region
        %p466 = scmp.lt.s32.totalorder %s32, 1
        %s467 = scalar_select %p466, %s32, 1
        %s468 = scalar_lea.vmem %s3, %s467
      $region80: #{tpu_custom_call.1} parent=75 // pred_fallthru
        _
    $region76: #{tpu_custom_call.1} parent=5 // pred_fallthru
      _
    %p469 = scmp.le.s32.totalorder 1, %s32
    %p470 = scmp.lt.s32.totalorder %s32, 3
    %p471 = pnand %p469, %p470
    %p472 = pneg %p471
    // Predicated region
    $region81: #{tpu_custom_call.1} parent=5 // pred_check
      _
    $region82: #{tpu_custom_call.1} parent=5 // pred_check_branch
      %474 = sbr.rel (%p471) target = $region84
    $region83: #{tpu_custom_call.1} parent=5 // pred_region
      %s475 = ssub.s32 %s32, 1
      %p476 = pneg %p53
      %p477 = pneg %p50
      %p478 = scmp.lt.s32.totalorder %s37, 1
      %s479 = scalar_select %p478, %s37, 1
      %s480 = scalar_lea.vmem %s3, %s479
      %p481 = pneg %p79
      %p482 = pneg %p76
      %p483 = pneg %p100
      %p484 = pneg %p97
      %p485 = pneg %p121
      %p486 = pneg %p118
      %p487 = pneg %p142
      %p488 = pneg %p139
      %p489 = pneg %p163
      %p490 = pneg %p160
      %p491 = pneg %p184
      %p492 = pneg %p181
      %p493 = pneg %p205
      %p494 = pneg %p202
      %p495 = pneg %p226
      %p496 = pneg %p223
      %p497 = pneg %p247
      %p498 = pneg %p244
      %p499 = pneg %p268
      %p500 = pneg %p265
      %p501 = pneg %p289
      %p502 = pneg %p286
      %p503 = pneg %p310
      %p504 = pneg %p307
      %p505 = pneg %p331
      %p506 = pneg %p328
      %p507 = pneg %p352
      %p508 = pneg %p349
      %p509 = pneg %p373
      %p510 = pneg %p370
      %p511 = pneg %p399
      %p512 = pneg %p396
      %p513 = scmp.lt.s32.totalorder %s37, 1
      %s514 = scalar_select %p513, %s37, 1
      %s515 = scalar_lea.vmem %s18, %s514
      %p516 = scmp.lt.s32.totalorder %s37, 1
      %s517 = scalar_select %p516, %s37, 1
      %s518 = scalar_lea.vmem %s3, %s517
      %p519 = scmp.lt.s32.totalorder %s37, 1
      %s520 = scalar_select %p519, %s37, 1
      %s521 = scalar_lea.vmem %s18, %s520
      %s523 = smul.u32 %s37, 128
      %s524 = sld [smem:[#allocation5 + %s523]]
      %s525 = scalar_lea.vmem %s1, %s524
      %p527 = scmp.lt.u32.totalorder 1, 8
      %p528 = pneg %p527
      // Predicated region
      $region85: #{tpu_custom_call.1} parent=83 // pred_check
        _
      $region86: #{tpu_custom_call.1} parent=83 // pred_check_branch
        %530 = sbr.rel (%p527) target = $region88
      $region87: #{tpu_custom_call.1} parent=83 // pred_region
        %s545 = sand.u32 1, 7
        %p546 = scmp.eq.s32.totalorder %s545, 0
        %p547 = pneg %p546
        // Predicated region
        $region100: #{tpu_custom_call.1} parent=87 // pred_check
          _
        $region101: #{tpu_custom_call.1} parent=87 // pred_check_branch
          %549 = sbr.rel (%p546) target = $region103
        $region102: #{tpu_custom_call.1} parent=87 // pred_region
          %s550 = sand.u32 1, 7
          %s551 = ssub.s32 1, %s550
          %s552 = scalar_lea.vmem %s525, %s551
          %s553 = ssub.s32 1, %s550
          %s554 = scalar_lea.vmem [#allocation2], %s553
          %s555 = sshllo.u32 0, %s550
          loop: start=0, step=1, limit=1
          $region104: #{tpu_custom_call.1} parent=102 // loop_pre_header
            _
          $region105: #{tpu_custom_call.1} parent=102 // loop_header
            %s557 = sphi 0, %s561
            %p558 = scmp.ge.s32.totalorder %s557, 1
            %s562 = sphi %s552, %s552
            %s563 = sphi %s554, %s554
          $region106: #{tpu_custom_call.1} parent=102 // loop_header_branch
            %560 = sbr.rel (%p558) target = $region110
          $region107: #{tpu_custom_call.1} parent=102 // loop_body
            %v564 = vld [vmem:[%s562] sm:%s555]
            %565 = vst [vmem:[%s563] sm:%s555] %v564
          $region108: #{tpu_custom_call.1} parent=102 // loop_footer
            %s561 = sadd.s32 1, %s557
          $region109: #{tpu_custom_call.1} parent=102 // loop_footer_branch
            %556 = sbr.rel target = $region105
          $region110: #{tpu_custom_call.1} parent=102 // loop_exit
            _
        $region103: #{tpu_custom_call.1} parent=87 // pred_fallthru
          _
      $region88: #{tpu_custom_call.1} parent=83 // pred_fallthru
        _
      // Predicated region
      $region89: #{tpu_custom_call.1} parent=83 // pred_check
        %p531 = pneg %p527
      $region90: #{tpu_custom_call.1} parent=83 // pred_check_branch
        %533 = sbr.rel (%p531) target = $region92
      $region91: #{tpu_custom_call.1} parent=83 // pred_region
        %s534 = sshllo.u32 0, 1
        loop: start=0, step=1, limit=1
        $region93: #{tpu_custom_call.1} parent=91 // loop_pre_header
          _
        $region94: #{tpu_custom_call.1} parent=91 // loop_header
          %s536 = sphi 0, %s540
          %p537 = scmp.ge.s32.totalorder %s536, 1
          %s541 = sphi %s525, %s525
          %s542 = sphi [#allocation2], [#allocation2]
        $region95: #{tpu_custom_call.1} parent=91 // loop_header_branch
          %539 = sbr.rel (%p537) target = $region99
        $region96: #{tpu_custom_call.1} parent=91 // loop_body
          %v543 = vld [vmem:[%s541] sm:%s534]
          %544 = vst [vmem:[%s542] sm:%s534] %v543
        $region97: #{tpu_custom_call.1} parent=91 // loop_footer
          %s540 = sadd.s32 1, %s536
        $region98: #{tpu_custom_call.1} parent=91 // loop_footer_branch
          %535 = sbr.rel target = $region94
        $region99: #{tpu_custom_call.1} parent=91 // loop_exit
          _
      $region92: #{tpu_custom_call.1} parent=83 // pred_fallthru
        _
      // Predicated region
      $region111: #{tpu_custom_call.1} parent=83 // pred_check
        _
      $region112: #{tpu_custom_call.1} parent=83 // pred_check_branch
        %568 = sbr.rel (0) target = $region114
      $region113: #{tpu_custom_call.1} parent=83 // pred_region
        %569 = vsyncadd [#allocation3], 16
      $region114: #{tpu_custom_call.1} parent=83 // pred_fallthru
        _
      %s570 = sadd.s32 %s523, 1
      %s571 = sld [smem:[#allocation5 + %s570]]
      %s572 = scalar_lea.vmem %s1, %s571
      %s573 = scalar_lea.vmem [#allocation2], 1
      %s574 = scalar_lea.sflag [#allocation3], 1
      %p576 = scmp.lt.u32.totalorder 1, 8
      %p577 = pneg %p576
      // Predicated region
      $region115: #{tpu_custom_call.1} parent=83 // pred_check
        _
      $region116: #{tpu_custom_call.1} parent=83 // pred_check_branch
        %579 = sbr.rel (%p576) target = $region118
      $region117: #{tpu_custom_call.1} parent=83 // pred_region
        %s594 = sand.u32 1, 7
        %p595 = scmp.eq.s32.totalorder %s594, 0
        %p596 = pneg %p595
        // Predicated region
        $region130: #{tpu_custom_call.1} parent=117 // pred_check
          _
        $region131: #{tpu_custom_call.1} parent=117 // pred_check_branch
          %598 = sbr.rel (%p595) target = $region133
        $region132: #{tpu_custom_call.1} parent=117 // pred_region
          %s599 = sand.u32 1, 7
          %s600 = ssub.s32 1, %s599
          %s601 = scalar_lea.vmem %s572, %s600
          %s602 = ssub.s32 1, %s599
          %s603 = scalar_lea.vmem %s573, %s602 [#allocation2]
          %s604 = sshllo.u32 0, %s599
          loop: start=0, step=1, limit=1
          $region134: #{tpu_custom_call.1} parent=132 // loop_pre_header
            _
          $region135: #{tpu_custom_call.1} parent=132 // loop_header
            %s606 = sphi 0, %s610
            %p607 = scmp.ge.s32.totalorder %s606, 1
            %s611 = sphi %s601, %s601
            %s612 = sphi %s603, %s603
          $region136: #{tpu_custom_call.1} parent=132 // loop_header_branch
            %609 = sbr.rel (%p607) target = $region140
          $region137: #{tpu_custom_call.1} parent=132 // loop_body
            %v613 = vld [vmem:[%s611] sm:%s604]
            %614 = vst [vmem:[%s612] sm:%s604] %v613
          $region138: #{tpu_custom_call.1} parent=132 // loop_footer
            %s610 = sadd.s32 1, %s606
          $region139: #{tpu_custom_call.1} parent=132 // loop_footer_branch
            %605 = sbr.rel target = $region135
          $region140: #{tpu_custom_call.1} parent=132 // loop_exit
            _
        $region133: #{tpu_custom_call.1} parent=117 // pred_fallthru
          _
      $region118: #{tpu_custom_call.1} parent=83 // pred_fallthru
        _
      // Predicated region
      $region119: #{tpu_custom_call.1} parent=83 // pred_check
        %p580 = pneg %p576
      $region120: #{tpu_custom_call.1} parent=83 // pred_check_branch
        %582 = sbr.rel (%p580) target = $region122
      $region121: #{tpu_custom_call.1} parent=83 // pred_region
        %s583 = sshllo.u32 0, 1
        loop: start=0, step=1, limit=1
        $region123: #{tpu_custom_call.1} parent=121 // loop_pre_header
          _
        $region124: #{tpu_custom_call.1} parent=121 // loop_header
          %s585 = sphi 0, %s589
          %p586 = scmp.ge.s32.totalorder %s585, 1
          %s590 = sphi %s572, %s572
          %s591 = sphi %s573, %s573
        $region125: #{tpu_custom_call.1} parent=121 // loop_header_branch
          %588 = sbr.rel (%p586) target = $region129
        $region126: #{tpu_custom_call.1} parent=121 // loop_body
          %v592 = vld [vmem:[%s590] sm:%s583]
          %593 = vst [vmem:[%s591] sm:%s583] %v592
        $region127: #{tpu_custom_call.1} parent=121 // loop_footer
          %s589 = sadd.s32 1, %s585
        $region128: #{tpu_custom_call.1} parent=121 // loop_footer_branch
          %584 = sbr.rel target = $region124
        $region129: #{tpu_custom_call.1} parent=121 // loop_exit
          _
      $region122: #{tpu_custom_call.1} parent=83 // pred_fallthru
        _
      // Predicated region
      $region141: #{tpu_custom_call.1} parent=83 // pred_check
        _
      $region142: #{tpu_custom_call.1} parent=83 // pred_check_branch
        %617 = sbr.rel (0) target = $region144
      $region143: #{tpu_custom_call.1} parent=83 // pred_region
        %618 = vsyncadd %s574, 16
      $region144: #{tpu_custom_call.1} parent=83 // pred_fallthru
        _
      %s619 = sadd.s32 %s523, 2
      %s620 = sld [smem:[#allocation5 + %s619]]
      %s621 = scalar_lea.vmem %s1, %s620
      %s622 = scalar_lea.vmem [#allocation2], 2
      %s623 = scalar_lea.sflag [#allocation3], 2
      %p625 = scmp.lt.u32.totalorder 1, 8
      %p626 = pneg %p625
      // Predicated region
      $region145: #{tpu_custom_call.1} parent=83 // pred_check
        _
      $region146: #{tpu_custom_call.1} parent=83 // pred_check_branch
        %628 = sbr.rel (%p625) target = $region148
      $region147: #{tpu_custom_call.1} parent=83 // pred_region
        %s643 = sand.u32 1, 7
        %p644 = scmp.eq.s32.totalorder %s643, 0
        %p645 = pneg %p644
        // Predicated region
        $region160: #{tpu_custom_call.1} parent=147 // pred_check
          _
        $region161: #{tpu_custom_call.1} parent=147 // pred_check_branch
          %647 = sbr.rel (%p644) target = $region163
        $region162: #{tpu_custom_call.1} parent=147 // pred_region
          %s648 = sand.u32 1, 7
          %s649 = ssub.s32 1, %s648
          %s650 = scalar_lea.vmem %s621, %s649
          %s651 = ssub.s32 1, %s648
          %s652 = scalar_lea.vmem %s622, %s651 [#allocation2]
          %s653 = sshllo.u32 0, %s648
          loop: start=0, step=1, limit=1
          $region164: #{tpu_custom_call.1} parent=162 // loop_pre_header
            _
          $region165: #{tpu_custom_call.1} parent=162 // loop_header
            %s655 = sphi 0, %s659
            %p656 = scmp.ge.s32.totalorder %s655, 1
            %s660 = sphi %s650, %s650
            %s661 = sphi %s652, %s652
          $region166: #{tpu_custom_call.1} parent=162 // loop_header_branch
            %658 = sbr.rel (%p656) target = $region170
          $region167: #{tpu_custom_call.1} parent=162 // loop_body
            %v662 = vld [vmem:[%s660] sm:%s653]
            %663 = vst [vmem:[%s661] sm:%s653] %v662
          $region168: #{tpu_custom_call.1} parent=162 // loop_footer
            %s659 = sadd.s32 1, %s655
          $region169: #{tpu_custom_call.1} parent=162 // loop_footer_branch
            %654 = sbr.rel target = $region165
          $region170: #{tpu_custom_call.1} parent=162 // loop_exit
            _
        $region163: #{tpu_custom_call.1} parent=147 // pred_fallthru
          _
      $region148: #{tpu_custom_call.1} parent=83 // pred_fallthru
        _
      // Predicated region
      $region149: #{tpu_custom_call.1} parent=83 // pred_check
        %p629 = pneg %p625
      $region150: #{tpu_custom_call.1} parent=83 // pred_check_branch
        %631 = sbr.rel (%p629) target = $region152
      $region151: #{tpu_custom_call.1} parent=83 // pred_region
        %s632 = sshllo.u32 0, 1
        loop: start=0, step=1, limit=1
        $region153: #{tpu_custom_call.1} parent=151 // loop_pre_header
          _
        $region154: #{tpu_custom_call.1} parent=151 // loop_header
          %s634 = sphi 0, %s638
          %p635 = scmp.ge.s32.totalorder %s634, 1
          %s639 = sphi %s621, %s621
          %s640 = sphi %s622, %s622
        $region155: #{tpu_custom_call.1} parent=151 // loop_header_branch
          %637 = sbr.rel (%p635) target = $region159
        $region156: #{tpu_custom_call.1} parent=151 // loop_body
          %v641 = vld [vmem:[%s639] sm:%s632]
          %642 = vst [vmem:[%s640] sm:%s632] %v641
        $region157: #{tpu_custom_call.1} parent=151 // loop_footer
          %s638 = sadd.s32 1, %s634
        $region158: #{tpu_custom_call.1} parent=151 // loop_footer_branch
          %633 = sbr.rel target = $region154
        $region159: #{tpu_custom_call.1} parent=151 // loop_exit
          _
      $region152: #{tpu_custom_call.1} parent=83 // pred_fallthru
        _
      // Predicated region
      $region171: #{tpu_custom_call.1} parent=83 // pred_check
        _
      $region172: #{tpu_custom_call.1} parent=83 // pred_check_branch
        %666 = sbr.rel (0) target = $region174
      $region173: #{tpu_custom_call.1} parent=83 // pred_region
        %667 = vsyncadd %s623, 16
      $region174: #{tpu_custom_call.1} parent=83 // pred_fallthru
        _
      %s668 = sadd.s32 %s523, 3
      %s669 = sld [smem:[#allocation5 + %s668]]
      %s670 = scalar_lea.vmem %s1, %s669
      %s671 = scalar_lea.vmem [#allocation2], 3
      %s672 = scalar_lea.sflag [#allocation3], 3
      %p674 = scmp.lt.u32.totalorder 1, 8
      %p675 = pneg %p674
      // Predicated region
      $region175: #{tpu_custom_call.1} parent=83 // pred_check
        _
      $region176: #{tpu_custom_call.1} parent=83 // pred_check_branch
        %677 = sbr.rel (%p674) target = $region178
      $region177: #{tpu_custom_call.1} parent=83 // pred_region
        %s692 = sand.u32 1, 7
        %p693 = scmp.eq.s32.totalorder %s692, 0
        %p694 = pneg %p693
        // Predicated region
        $region190: #{tpu_custom_call.1} parent=177 // pred_check
          _
        $region191: #{tpu_custom_call.1} parent=177 // pred_check_branch
          %696 = sbr.rel (%p693) target = $region193
        $region192: #{tpu_custom_call.1} parent=177 // pred_region
          %s697 = sand.u32 1, 7
          %s698 = ssub.s32 1, %s697
          %s699 = scalar_lea.vmem %s670, %s698
          %s700 = ssub.s32 1, %s697
          %s701 = scalar_lea.vmem %s671, %s700 [#allocation2]
          %s702 = sshllo.u32 0, %s697
          loop: start=0, step=1, limit=1
          $region194: #{tpu_custom_call.1} parent=192 // loop_pre_header
            _
          $region195: #{tpu_custom_call.1} parent=192 // loop_header
            %s704 = sphi 0, %s708
            %p705 = scmp.ge.s32.totalorder %s704, 1
            %s709 = sphi %s699, %s699
            %s710 = sphi %s701, %s701
          $region196: #{tpu_custom_call.1} parent=192 // loop_header_branch
            %707 = sbr.rel (%p705) target = $region200
          $region197: #{tpu_custom_call.1} parent=192 // loop_body
            %v711 = vld [vmem:[%s709] sm:%s702]
            %712 = vst [vmem:[%s710] sm:%s702] %v711
          $region198: #{tpu_custom_call.1} parent=192 // loop_footer
            %s708 = sadd.s32 1, %s704
          $region199: #{tpu_custom_call.1} parent=192 // loop_footer_branch
            %703 = sbr.rel target = $region195
          $region200: #{tpu_custom_call.1} parent=192 // loop_exit
            _
        $region193: #{tpu_custom_call.1} parent=177 // pred_fallthru
          _
      $region178: #{tpu_custom_call.1} parent=83 // pred_fallthru
        _
      // Predicated region
      $region179: #{tpu_custom_call.1} parent=83 // pred_check
        %p678 = pneg %p674
      $region180: #{tpu_custom_call.1} parent=83 // pred_check_branch
        %680 = sbr.rel (%p678) target = $region182
      $region181: #{tpu_custom_call.1} parent=83 // pred_region
        %s681 = sshllo.u32 0, 1
        loop: start=0, step=1, limit=1
        $region183: #{tpu_custom_call.1} parent=181 // loop_pre_header
          _
        $region184: #{tpu_custom_call.1} parent=181 // loop_header
          %s683 = sphi 0, %s687
          %p684 = scmp.ge.s32.totalorder %s683, 1
          %s688 = sphi %s670, %s670
          %s689 = sphi %s671, %s671
        $region185: #{tpu_custom_call.1} parent=181 // loop_header_branch
          %686 = sbr.rel (%p684) target = $region189
        $region186: #{tpu_custom_call.1} parent=181 // loop_body
          %v690 = vld [vmem:[%s688] sm:%s681]
          %691 = vst [vmem:[%s689] sm:%s681] %v690
        $region187: #{tpu_custom_call.1} parent=181 // loop_footer
          %s687 = sadd.s32 1, %s683
        $region188: #{tpu_custom_call.1} parent=181 // loop_footer_branch
          %682 = sbr.rel target = $region184
        $region189: #{tpu_custom_call.1} parent=181 // loop_exit
          _
      $region182: #{tpu_custom_call.1} parent=83 // pred_fallthru
        _
      // Predicated region
      $region201: #{tpu_custom_call.1} parent=83 // pred_check
        _
      $region202: #{tpu_custom_call.1} parent=83 // pred_check_branch
        %715 = sbr.rel (0) target = $region204
      $region203: #{tpu_custom_call.1} parent=83 // pred_region
        %716 = vsyncadd %s672, 16
      $region204: #{tpu_custom_call.1} parent=83 // pred_fallthru
        _
      %s717 = sadd.s32 %s523, 4
      %s718 = sld [smem:[#allocation5 + %s717]]
      %s719 = scalar_lea.vmem %s1, %s718
      %s720 = scalar_lea.vmem [#allocation2], 4
      %s721 = scalar_lea.sflag [#allocation3], 4
      %p723 = scmp.lt.u32.totalorder 1, 8
      %p724 = pneg %p723
      // Predicated region
      $region205: #{tpu_custom_call.1} parent=83 // pred_check
        _
      $region206: #{tpu_custom_call.1} parent=83 // pred_check_branch
        %726 = sbr.rel (%p723) target = $region208
      $region207: #{tpu_custom_call.1} parent=83 // pred_region
        %s741 = sand.u32 1, 7
        %p742 = scmp.eq.s32.totalorder %s741, 0
        %p743 = pneg %p742
        // Predicated region
        $region220: #{tpu_custom_call.1} parent=207 // pred_check
          _
        $region221: #{tpu_custom_call.1} parent=207 // pred_check_branch
          %745 = sbr.rel (%p742) target = $region223
        $region222: #{tpu_custom_call.1} parent=207 // pred_region
          %s746 = sand.u32 1, 7
          %s747 = ssub.s32 1, %s746
          %s748 = scalar_lea.vmem %s719, %s747
          %s749 = ssub.s32 1, %s746
          %s750 = scalar_lea.vmem %s720, %s749 [#allocation2]
          %s751 = sshllo.u32 0, %s746
          loop: start=0, step=1, limit=1
          $region224: #{tpu_custom_call.1} parent=222 // loop_pre_header
            _
          $region225: #{tpu_custom_call.1} parent=222 // loop_header
            %s753 = sphi 0, %s757
            %p754 = scmp.ge.s32.totalorder %s753, 1
            %s758 = sphi %s748, %s748
            %s759 = sphi %s750, %s750
          $region226: #{tpu_custom_call.1} parent=222 // loop_header_branch
            %756 = sbr.rel (%p754) target = $region230
          $region227: #{tpu_custom_call.1} parent=222 // loop_body
            %v760 = vld [vmem:[%s758] sm:%s751]
            %761 = vst [vmem:[%s759] sm:%s751] %v760
          $region228: #{tpu_custom_call.1} parent=222 // loop_footer
            %s757 = sadd.s32 1, %s753
          $region229: #{tpu_custom_call.1} parent=222 // loop_footer_branch
            %752 = sbr.rel target = $region225
          $region230: #{tpu_custom_call.1} parent=222 // loop_exit
            _
        $region223: #{tpu_custom_call.1} parent=207 // pred_fallthru
          _
      $region208: #{tpu_custom_call.1} parent=83 // pred_fallthru
        _
      // Predicated region
      $region209: #{tpu_custom_call.1} parent=83 // pred_check
        %p727 = pneg %p723
      $region210: #{tpu_custom_call.1} parent=83 // pred_check_branch
        %729 = sbr.rel (%p727) target = $region212
      $region211: #{tpu_custom_call.1} parent=83 // pred_region
        %s730 = sshllo.u32 0, 1
        loop: start=0, step=1, limit=1
        $region213: #{tpu_custom_call.1} parent=211 // loop_pre_header
          _
        $region214: #{tpu_custom_call.1} parent=211 // loop_header
          %s732 = sphi 0, %s736
          %p733 = scmp.ge.s32.totalorder %s732, 1
          %s737 = sphi %s719, %s719
          %s738 = sphi %s720, %s720
        $region215: #{tpu_custom_call.1} parent=211 // loop_header_branch
          %735 = sbr.rel (%p733) target = $region219
        $region216: #{tpu_custom_call.1} parent=211 // loop_body
          %v739 = vld [vmem:[%s737] sm:%s730]
          %740 = vst [vmem:[%s738] sm:%s730] %v739
        $region217: #{tpu_custom_call.1} parent=211 // loop_footer
          %s736 = sadd.s32 1, %s732
        $region218: #{tpu_custom_call.1} parent=211 // loop_footer_branch
          %731 = sbr.rel target = $region214
        $region219: #{tpu_custom_call.1} parent=211 // loop_exit
          _
      $region212: #{tpu_custom_call.1} parent=83 // pred_fallthru
        _
      // Predicated region
      $region231: #{tpu_custom_call.1} parent=83 // pred_check
        _
      $region232: #{tpu_custom_call.1} parent=83 // pred_check_branch
        %764 = sbr.rel (0) target = $region234
      $region233: #{tpu_custom_call.1} parent=83 // pred_region
        %765 = vsyncadd %s721, 16
      $region234: #{tpu_custom_call.1} parent=83 // pred_fallthru
        _
      %s766 = sadd.s32 %s523, 5
      %s767 = sld [smem:[#allocation5 + %s766]]
      %s768 = scalar_lea.vmem %s1, %s767
      %s769 = scalar_lea.vmem [#allocation2], 5
      %s770 = scalar_lea.sflag [#allocation3], 5
      %p772 = scmp.lt.u32.totalorder 1, 8
      %p773 = pneg %p772
      // Predicated region
      $region235: #{tpu_custom_call.1} parent=83 // pred_check
        _
      $region236: #{tpu_custom_call.1} parent=83 // pred_check_branch
        %775 = sbr.rel (%p772) target = $region238
      $region237: #{tpu_custom_call.1} parent=83 // pred_region
        %s790 = sand.u32 1, 7
        %p791 = scmp.eq.s32.totalorder %s790, 0
        %p792 = pneg %p791
        // Predicated region
        $region250: #{tpu_custom_call.1} parent=237 // pred_check
          _
        $region251: #{tpu_custom_call.1} parent=237 // pred_check_branch
          %794 = sbr.rel (%p791) target = $region253
        $region252: #{tpu_custom_call.1} parent=237 // pred_region
          %s795 = sand.u32 1, 7
          %s796 = ssub.s32 1, %s795
          %s797 = scalar_lea.vmem %s768, %s796
          %s798 = ssub.s32 1, %s795
          %s799 = scalar_lea.vmem %s769, %s798 [#allocation2]
          %s800 = sshllo.u32 0, %s795
          loop: start=0, step=1, limit=1
          $region254: #{tpu_custom_call.1} parent=252 // loop_pre_header
            _
          $region255: #{tpu_custom_call.1} parent=252 // loop_header
            %s802 = sphi 0, %s806
            %p803 = scmp.ge.s32.totalorder %s802, 1
            %s807 = sphi %s797, %s797
            %s808 = sphi %s799, %s799
          $region256: #{tpu_custom_call.1} parent=252 // loop_header_branch
            %805 = sbr.rel (%p803) target = $region260
          $region257: #{tpu_custom_call.1} parent=252 // loop_body
            %v809 = vld [vmem:[%s807] sm:%s800]
            %810 = vst [vmem:[%s808] sm:%s800] %v809
          $region258: #{tpu_custom_call.1} parent=252 // loop_footer
            %s806 = sadd.s32 1, %s802
          $region259: #{tpu_custom_call.1} parent=252 // loop_footer_branch
            %801 = sbr.rel target = $region255
          $region260: #{tpu_custom_call.1} parent=252 // loop_exit
            _
        $region253: #{tpu_custom_call.1} parent=237 // pred_fallthru
          _
      $region238: #{tpu_custom_call.1} parent=83 // pred_fallthru
        _
      // Predicated region
      $region239: #{tpu_custom_call.1} parent=83 // pred_check
        %p776 = pneg %p772
      $region240: #{tpu_custom_call.1} parent=83 // pred_check_branch
        %778 = sbr.rel (%p776) target = $region242
      $region241: #{tpu_custom_call.1} parent=83 // pred_region
        %s779 = sshllo.u32 0, 1
        loop: start=0, step=1, limit=1
        $region243: #{tpu_custom_call.1} parent=241 // loop_pre_header
          _
        $region244: #{tpu_custom_call.1} parent=241 // loop_header
          %s781 = sphi 0, %s785
          %p782 = scmp.ge.s32.totalorder %s781, 1
          %s786 = sphi %s768, %s768
          %s787 = sphi %s769, %s769
        $region245: #{tpu_custom_call.1} parent=241 // loop_header_branch
          %784 = sbr.rel (%p782) target = $region249
        $region246: #{tpu_custom_call.1} parent=241 // loop_body
          %v788 = vld [vmem:[%s786] sm:%s779]
          %789 = vst [vmem:[%s787] sm:%s779] %v788
        $region247: #{tpu_custom_call.1} parent=241 // loop_footer
          %s785 = sadd.s32 1, %s781
        $region248: #{tpu_custom_call.1} parent=241 // loop_footer_branch
          %780 = sbr.rel target = $region244
        $region249: #{tpu_custom_call.1} parent=241 // loop_exit
          _
      $region242: #{tpu_custom_call.1} parent=83 // pred_fallthru
        _
      // Predicated region
      $region261: #{tpu_custom_call.1} parent=83 // pred_check
        _
      $region262: #{tpu_custom_call.1} parent=83 // pred_check_branch
        %813 = sbr.rel (0) target = $region264
      $region263: #{tpu_custom_call.1} parent=83 // pred_region
        %814 = vsyncadd %s770, 16
      $region264: #{tpu_custom_call.1} parent=83 // pred_fallthru
        _
      %s815 = sadd.s32 %s523, 6
      %s816 = sld [smem:[#allocation5 + %s815]]
      %s817 = scalar_lea.vmem %s1, %s816
      %s818 = scalar_lea.vmem [#allocation2], 6
      %s819 = scalar_lea.sflag [#allocation3], 6
      %p821 = scmp.lt.u32.totalorder 1, 8
      %p822 = pneg %p821
      // Predicated region
      $region265: #{tpu_custom_call.1} parent=83 // pred_check
        _
      $region266: #{tpu_custom_call.1} parent=83 // pred_check_branch
        %824 = sbr.rel (%p821) target = $region268
      $region267: #{tpu_custom_call.1} parent=83 // pred_region
        %s839 = sand.u32 1, 7
        %p840 = scmp.eq.s32.totalorder %s839, 0
        %p841 = pneg %p840
        // Predicated region
        $region280: #{tpu_custom_call.1} parent=267 // pred_check
          _
        $region281: #{tpu_custom_call.1} parent=267 // pred_check_branch
          %843 = sbr.rel (%p840) target = $region283
        $region282: #{tpu_custom_call.1} parent=267 // pred_region
          %s844 = sand.u32 1, 7
          %s845 = ssub.s32 1, %s844
          %s846 = scalar_lea.vmem %s817, %s845
          %s847 = ssub.s32 1, %s844
          %s848 = scalar_lea.vmem %s818, %s847 [#allocation2]
          %s849 = sshllo.u32 0, %s844
          loop: start=0, step=1, limit=1
          $region284: #{tpu_custom_call.1} parent=282 // loop_pre_header
            _
          $region285: #{tpu_custom_call.1} parent=282 // loop_header
            %s851 = sphi 0, %s855
            %p852 = scmp.ge.s32.totalorder %s851, 1
            %s856 = sphi %s846, %s846
            %s857 = sphi %s848, %s848
          $region286: #{tpu_custom_call.1} parent=282 // loop_header_branch
            %854 = sbr.rel (%p852) target = $region290
          $region287: #{tpu_custom_call.1} parent=282 // loop_body
            %v858 = vld [vmem:[%s856] sm:%s849]
            %859 = vst [vmem:[%s857] sm:%s849] %v858
          $region288: #{tpu_custom_call.1} parent=282 // loop_footer
            %s855 = sadd.s32 1, %s851
          $region289: #{tpu_custom_call.1} parent=282 // loop_footer_branch
            %850 = sbr.rel target = $region285
          $region290: #{tpu_custom_call.1} parent=282 // loop_exit
            _
        $region283: #{tpu_custom_call.1} parent=267 // pred_fallthru
          _
      $region268: #{tpu_custom_call.1} parent=83 // pred_fallthru
        _
      // Predicated region
      $region269: #{tpu_custom_call.1} parent=83 // pred_check
        %p825 = pneg %p821
      $region270: #{tpu_custom_call.1} parent=83 // pred_check_branch
        %827 = sbr.rel (%p825) target = $region272
      $region271: #{tpu_custom_call.1} parent=83 // pred_region
        %s828 = sshllo.u32 0, 1
        loop: start=0, step=1, limit=1
        $region273: #{tpu_custom_call.1} parent=271 // loop_pre_header
          _
        $region274: #{tpu_custom_call.1} parent=271 // loop_header
          %s830 = sphi 0, %s834
          %p831 = scmp.ge.s32.totalorder %s830, 1
          %s835 = sphi %s817, %s817
          %s836 = sphi %s818, %s818
        $region275: #{tpu_custom_call.1} parent=271 // loop_header_branch
          %833 = sbr.rel (%p831) target = $region279
        $region276: #{tpu_custom_call.1} parent=271 // loop_body
          %v837 = vld [vmem:[%s835] sm:%s828]
          %838 = vst [vmem:[%s836] sm:%s828] %v837
        $region277: #{tpu_custom_call.1} parent=271 // loop_footer
          %s834 = sadd.s32 1, %s830
        $region278: #{tpu_custom_call.1} parent=271 // loop_footer_branch
          %829 = sbr.rel target = $region274
        $region279: #{tpu_custom_call.1} parent=271 // loop_exit
          _
      $region272: #{tpu_custom_call.1} parent=83 // pred_fallthru
        _
      // Predicated region
      $region291: #{tpu_custom_call.1} parent=83 // pred_check
        _
      $region292: #{tpu_custom_call.1} parent=83 // pred_check_branch
        %862 = sbr.rel (0) target = $region294
      $region293: #{tpu_custom_call.1} parent=83 // pred_region
        %863 = vsyncadd %s819, 16
      $region294: #{tpu_custom_call.1} parent=83 // pred_fallthru
        _
      %s864 = sadd.s32 %s523, 7
      %s865 = sld [smem:[#allocation5 + %s864]]
      %s866 = scalar_lea.vmem %s1, %s865
      %s867 = scalar_lea.vmem [#allocation2], 7
      %s868 = scalar_lea.sflag [#allocation3], 7
      %p870 = scmp.lt.u32.totalorder 1, 8
      %p871 = pneg %p870
      // Predicated region
      $region295: #{tpu_custom_call.1} parent=83 // pred_check
        _
      $region296: #{tpu_custom_call.1} parent=83 // pred_check_branch
        %873 = sbr.rel (%p870) target = $region298
      $region297: #{tpu_custom_call.1} parent=83 // pred_region
        %s888 = sand.u32 1, 7
        %p889 = scmp.eq.s32.totalorder %s888, 0
        %p890 = pneg %p889
        // Predicated region
        $region310: #{tpu_custom_call.1} parent=297 // pred_check
          _
        $region311: #{tpu_custom_call.1} parent=297 // pred_check_branch
          %892 = sbr.rel (%p889) target = $region313
        $region312: #{tpu_custom_call.1} parent=297 // pred_region
          %s893 = sand.u32 1, 7
          %s894 = ssub.s32 1, %s893
          %s895 = scalar_lea.vmem %s866, %s894
          %s896 = ssub.s32 1, %s893
          %s897 = scalar_lea.vmem %s867, %s896 [#allocation2]
          %s898 = sshllo.u32 0, %s893
          loop: start=0, step=1, limit=1
          $region314: #{tpu_custom_call.1} parent=312 // loop_pre_header
            _
          $region315: #{tpu_custom_call.1} parent=312 // loop_header
            %s900 = sphi 0, %s904
            %p901 = scmp.ge.s32.totalorder %s900, 1
            %s905 = sphi %s895, %s895
            %s906 = sphi %s897, %s897
          $region316: #{tpu_custom_call.1} parent=312 // loop_header_branch
            %903 = sbr.rel (%p901) target = $region320
          $region317: #{tpu_custom_call.1} parent=312 // loop_body
            %v907 = vld [vmem:[%s905] sm:%s898]
            %908 = vst [vmem:[%s906] sm:%s898] %v907
          $region318: #{tpu_custom_call.1} parent=312 // loop_footer
            %s904 = sadd.s32 1, %s900
          $region319: #{tpu_custom_call.1} parent=312 // loop_footer_branch
            %899 = sbr.rel target = $region315
          $region320: #{tpu_custom_call.1} parent=312 // loop_exit
            _
        $region313: #{tpu_custom_call.1} parent=297 // pred_fallthru
          _
      $region298: #{tpu_custom_call.1} parent=83 // pred_fallthru
        _
      // Predicated region
      $region299: #{tpu_custom_call.1} parent=83 // pred_check
        %p874 = pneg %p870
      $region300: #{tpu_custom_call.1} parent=83 // pred_check_branch
        %876 = sbr.rel (%p874) target = $region302
      $region301: #{tpu_custom_call.1} parent=83 // pred_region
        %s877 = sshllo.u32 0, 1
        loop: start=0, step=1, limit=1
        $region303: #{tpu_custom_call.1} parent=301 // loop_pre_header
          _
        $region304: #{tpu_custom_call.1} parent=301 // loop_header
          %s879 = sphi 0, %s883
          %p880 = scmp.ge.s32.totalorder %s879, 1
          %s884 = sphi %s866, %s866
          %s885 = sphi %s867, %s867
        $region305: #{tpu_custom_call.1} parent=301 // loop_header_branch
          %882 = sbr.rel (%p880) target = $region309
        $region306: #{tpu_custom_call.1} parent=301 // loop_body
          %v886 = vld [vmem:[%s884] sm:%s877]
          %887 = vst [vmem:[%s885] sm:%s877] %v886
        $region307: #{tpu_custom_call.1} parent=301 // loop_footer
          %s883 = sadd.s32 1, %s879
        $region308: #{tpu_custom_call.1} parent=301 // loop_footer_branch
          %878 = sbr.rel target = $region304
        $region309: #{tpu_custom_call.1} parent=301 // loop_exit
          _
      $region302: #{tpu_custom_call.1} parent=83 // pred_fallthru
        _
      // Predicated region
      $region321: #{tpu_custom_call.1} parent=83 // pred_check
        _
      $region322: #{tpu_custom_call.1} parent=83 // pred_check_branch
        %911 = sbr.rel (0) target = $region324
      $region323: #{tpu_custom_call.1} parent=83 // pred_region
        %912 = vsyncadd %s868, 16
      $region324: #{tpu_custom_call.1} parent=83 // pred_fallthru
        _
      %914 = dma.done [#allocation3], 16
      %916 = dma.done %s574, 16
      %918 = dma.done %s623, 16
      %920 = dma.done %s672, 16
      %922 = dma.done %s721, 16
      %924 = dma.done %s770, 16
      %926 = dma.done %s819, 16
      %928 = dma.done %s868, 16
      %v929 = vld [vmem:[#allocation2] sm:$0xff]
      %v930 = vld [vmem:[%s2] sm:$0xff]
      %v931 = vadd.f32 %v929, %v930
      %v932 = vpack.c.bf16 %v931, %v931
      %v933 = vld [vmem:[%s4] sm:$0xf]
      %v934 = vld [vmem:[%s4 + $0x4] sm:$0xf]
      %v935 = vld [vmem:[%s4 + $0x8] sm:$0xf]
      %v936 = vld [vmem:[%s4 + $0xc] sm:$0xf]
      %v937 = vld [vmem:[%s5] sm:$0x1]
      %v939 = vlaneseq
      %v940 = vshrl.u32 %v939, 7
      %v941 = vsub.s32 0, %v940
      %v942 = vrot.slane %v937, %v941
      %v948 = vunpack.c.l.b16 %v933
      %v949 = vunpack.c.l.b16 %v934
      %v950 = vunpack.c.l.b16 %v935
      %v951 = vunpack.c.l.b16 %v936
      %v952 = vpack.c.b16 %v949, %v948
      %v953 = vpack.c.b16 %v951, %v950
      %vm956 = vcmask 261120
      %v958 = vsel %vm956, %v932, 0
      %960 = vmatprep.subr.bf16.mxu0 0
      %961 = vmatpush1.bf16.msra.mxu0 %v952
      %962 = vmatprep.subr.bf16.mxu0 0
      %963 = vmatpush1.bf16.msra.mxu0 %v953
      %964 = vmatprep.subr.bf16.mxu0 0
      %965 = vmatpush1.bf16.msra.mxu0 0
      %966 = vmatprep.subr.bf16.mxu0 0
      %967 = vmatpush1.bf16.msra.mxu0 0
      %968 = vmatprep.subr.bf16.mxu0 0
      %969 = vmatpush1.bf16.msra.mxu0 0
      %970 = vmatprep.subr.bf16.mxu0 0
      %971 = vmatpush1.bf16.msra.mxu0 0
      %972 = vmatprep.subr.bf16.mxu0 0
      %973 = vmatpush1.bf16.msra.mxu0 0
      %974 = vmatprep.subr.bf16.mxu0 0
      %975 = vmatpush1.bf16.msra.mxu0 0
      %976 = vmatprep.subr.bf16.mxu0 0
      %977 = vmatpush1.bf16.msra.mxu0 0
      %978 = vmatprep.subr.bf16.mxu0 0
      %979 = vmatpush1.bf16.msra.mxu0 0
      %980 = vmatprep.subr.bf16.mxu0 0
      %981 = vmatpush1.bf16.msra.mxu0 0
      %982 = vmatprep.subr.bf16.mxu0 0
      %983 = vmatpush1.bf16.msra.mxu0 0
      %984 = vmatprep.subr.bf16.mxu0 0
      %985 = vmatpush1.bf16.msra.mxu0 0
      %986 = vmatprep.subr.bf16.mxu0 0
      %987 = vmatpush1.bf16.msra.mxu0 0
      %988 = vmatprep.subr.bf16.mxu0 0
      %989 = vmatpush1.bf16.msra.mxu0 0
      %990 = vmatprep.subr.bf16.mxu0 0
      %991 = vmatpush1.bf16.msra.mxu0 0
      %992 = vmatprep.mubr.bf16.mxu0 0
      %993 = vmatmul.mubr.bf16.gmra.mrb[0].mxu0 %v958
      %v994 = vpop.f32.mrb[0].mxu0
      %v995 = vadd.f32 %v942, %v994
      %v996 = vpop.f32.mrb[0].mxu0
      %v997 = vpop.f32.mrb[0].mxu0
      %v998 = vpop.f32.mrb[0].mxu0
      %999 = vdwg.mxu0
      %1001 = vrot.lane.b32.xlu0 %v995, 120
      %v1002 = vpop.permute.xlu0 %1001
      %1004 = vrot.lane.b32.xlu0 %v995, 112
      %v1005 = vpop.permute.xlu0 %1004
      %1007 = vrot.lane.b32.xlu0 %v995, 104
      %v1008 = vpop.permute.xlu0 %1007
      %v1010 = vcombine.low %v995, %v1005
      %v1011 = vcombine.high %v995, %v1005
      %v1013 = vunpack.c.l.s4 1983009808
      %v1014 = vunpack.c.0.s8 %v1013
      %v1015 = vlaneseq
      %v1016 = vshrl.u32 %v1015, 7
      %v1017 = vsub.s32 %v1014, %v1016
      %v1018 = vrot.slane %v1010, %v1017
      %v1020 = vunpack.c.l.s4 1983009808
      %v1021 = vunpack.c.0.s8 %v1020
      %v1022 = vlaneseq
      %v1023 = vshrl.u32 %v1022, 7
      %v1024 = vsub.s32 %v1021, %v1023
      %v1025 = vrot.slane %v1011, %v1024
      %v1026 = vcombine.low %v1002, %v1008
      %v1027 = vcombine.high %v1002, %v1008
      %v1029 = vunpack.c.l.s4 1983009808
      %v1030 = vunpack.c.0.s8 %v1029
      %v1031 = vlaneseq
      %v1032 = vshrl.u32 %v1031, 7
      %v1033 = vsub.s32 %v1030, %v1032
      %v1034 = vrot.slane %v1026, %v1033
      %v1036 = vunpack.c.l.s4 1983009808
      %v1037 = vunpack.c.0.s8 %v1036
      %v1038 = vlaneseq
      %v1039 = vshrl.u32 %v1038, 7
      %v1040 = vsub.s32 %v1037, %v1039
      %v1041 = vrot.slane %v1027, %v1040
      %v1042 = vcombine.low %v1018, %v1034
      %v1043 = vcombine.high %v1018, %v1034
      %v1045 = vunpack.c.l.s4 1934713408
      %v1046 = vunpack.c.0.s8 %v1045
      %v1047 = vlaneseq
      %v1048 = vshrl.u32 %v1047, 7
      %v1049 = vsub.s32 %v1046, %v1048
      %v1050 = vrot.slane %v1042, %v1049
      %v1052 = vunpack.c.l.s4 1934713408
      %v1053 = vunpack.c.0.s8 %v1052
      %v1054 = vlaneseq
      %v1055 = vshrl.u32 %v1054, 7
      %v1056 = vsub.s32 %v1053, %v1055
      %v1057 = vrot.slane %v1043, %v1056
      %v1058 = vcombine.low %v1025, %v1041
      %v1059 = vcombine.high %v1025, %v1041
      %v1061 = vunpack.c.l.s4 1934713408
      %v1062 = vunpack.c.0.s8 %v1061
      %v1063 = vlaneseq
      %v1064 = vshrl.u32 %v1063, 7
      %v1065 = vsub.s32 %v1062, %v1064
      %v1066 = vrot.slane %v1058, %v1065
      %v1068 = vunpack.c.l.s4 1934713408
      %v1069 = vunpack.c.0.s8 %v1068
      %v1070 = vlaneseq
      %v1071 = vshrl.u32 %v1070, 7
      %v1072 = vsub.s32 %v1069, %v1071
      %v1073 = vrot.slane %v1059, %v1072
      %v1074 = vcombine.high %v1050, 0.0
      %v1075 = vcombine.high %v1057, 0.0
      %v1076 = vcombine.high %v1066, 0.0
      %v1077 = vcombine.high %v1073, 0.0
      %1078 = vrot.lane.b32.xlu0 %v995, 96
      %v1079 = vpop.permute.xlu0 %1078
      %1080 = vrot.lane.b32.xlu0 %v1002, 96
      %v1081 = vpop.permute.xlu0 %1080
      %1082 = vrot.lane.b32.xlu0 %v1005, 96
      %v1083 = vpop.permute.xlu0 %1082
      %1084 = vrot.lane.b32.xlu0 %v1008, 96
      %v1085 = vpop.permute.xlu0 %1084
      %v1090 = vcombine.low %v1079, %v1083
      %v1091 = vcombine.high %v1079, %v1083
      %v1093 = vunpack.c.l.s4 1983009808
      %v1094 = vunpack.c.0.s8 %v1093
      %v1095 = vlaneseq
      %v1096 = vshrl.u32 %v1095, 7
      %v1097 = vsub.s32 %v1094, %v1096
      %v1098 = vrot.slane %v1090, %v1097
      %v1100 = vunpack.c.l.s4 1983009808
      %v1101 = vunpack.c.0.s8 %v1100
      %v1102 = vlaneseq
      %v1103 = vshrl.u32 %v1102, 7
      %v1104 = vsub.s32 %v1101, %v1103
      %v1105 = vrot.slane %v1091, %v1104
      %v1106 = vcombine.low %v1081, %v1085
      %v1107 = vcombine.high %v1081, %v1085
      %v1109 = vunpack.c.l.s4 1983009808
      %v1110 = vunpack.c.0.s8 %v1109
      %v1111 = vlaneseq
      %v1112 = vshrl.u32 %v1111, 7
      %v1113 = vsub.s32 %v1110, %v1112
      %v1114 = vrot.slane %v1106, %v1113
      %v1116 = vunpack.c.l.s4 1983009808
      %v1117 = vunpack.c.0.s8 %v1116
      %v1118 = vlaneseq
      %v1119 = vshrl.u32 %v1118, 7
      %v1120 = vsub.s32 %v1117, %v1119
      %v1121 = vrot.slane %v1107, %v1120
      %v1122 = vcombine.low %v1098, %v1114
      %v1123 = vcombine.high %v1098, %v1114
      %v1125 = vunpack.c.l.s4 1934713408
      %v1126 = vunpack.c.0.s8 %v1125
      %v1127 = vlaneseq
      %v1128 = vshrl.u32 %v1127, 7
      %v1129 = vsub.s32 %v1126, %v1128
      %v1130 = vrot.slane %v1122, %v1129
      %v1132 = vunpack.c.l.s4 1934713408
      %v1133 = vunpack.c.0.s8 %v1132
      %v1134 = vlaneseq
      %v1135 = vshrl.u32 %v1134, 7
      %v1136 = vsub.s32 %v1133, %v1135
      %v1137 = vrot.slane %v1123, %v1136
      %v1138 = vcombine.low %v1105, %v1121
      %v1139 = vcombine.high %v1105, %v1121
      %v1141 = vunpack.c.l.s4 1934713408
      %v1142 = vunpack.c.0.s8 %v1141
      %v1143 = vlaneseq
      %v1144 = vshrl.u32 %v1143, 7
      %v1145 = vsub.s32 %v1142, %v1144
      %v1146 = vrot.slane %v1138, %v1145
      %v1148 = vunpack.c.l.s4 1934713408
      %v1149 = vunpack.c.0.s8 %v1148
      %v1150 = vlaneseq
      %v1151 = vshrl.u32 %v1150, 7
      %v1152 = vsub.s32 %v1149, %v1151
      %v1153 = vrot.slane %v1139, %v1152
      %v1154 = vcombine.high %v1130, 0.0
      %v1155 = vcombine.high %v1137, 0.0
      %v1156 = vcombine.high %v1146, 0.0
      %v1157 = vcombine.high %v1153, 0.0
      %1158 = vrot.lane.b32.xlu0 %v995, 64
      %v1159 = vpop.permute.xlu0 %1158
      %1160 = vrot.lane.b32.xlu0 %v1002, 64
      %v1161 = vpop.permute.xlu0 %1160
      %1162 = vrot.lane.b32.xlu0 %v1005, 64
      %v1163 = vpop.permute.xlu0 %1162
      %1164 = vrot.lane.b32.xlu0 %v1008, 64
      %v1165 = vpop.permute.xlu0 %1164
      %v1170 = vcombine.low %v1159, %v1163
      %v1171 = vcombine.high %v1159, %v1163
      %v1173 = vunpack.c.l.s4 1983009808
      %v1174 = vunpack.c.0.s8 %v1173
      %v1175 = vlaneseq
      %v1176 = vshrl.u32 %v1175, 7
      %v1177 = vsub.s32 %v1174, %v1176
      %v1178 = vrot.slane %v1170, %v1177
      %v1180 = vunpack.c.l.s4 1983009808
      %v1181 = vunpack.c.0.s8 %v1180
      %v1182 = vlaneseq
      %v1183 = vshrl.u32 %v1182, 7
      %v1184 = vsub.s32 %v1181, %v1183
      %v1185 = vrot.slane %v1171, %v1184
      %v1186 = vcombine.low %v1161, %v1165
      %v1187 = vcombine.high %v1161, %v1165
      %v1189 = vunpack.c.l.s4 1983009808
      %v1190 = vunpack.c.0.s8 %v1189
      %v1191 = vlaneseq
      %v1192 = vshrl.u32 %v1191, 7
      %v1193 = vsub.s32 %v1190, %v1192
      %v1194 = vrot.slane %v1186, %v1193
      %v1196 = vunpack.c.l.s4 1983009808
      %v1197 = vunpack.c.0.s8 %v1196
      %v1198 = vlaneseq
      %v1199 = vshrl.u32 %v1198, 7
      %v1200 = vsub.s32 %v1197, %v1199
      %v1201 = vrot.slane %v1187, %v1200
      %v1202 = vcombine.low %v1178, %v1194
      %v1203 = vcombine.high %v1178, %v1194
      %v1205 = vunpack.c.l.s4 1934713408
      %v1206 = vunpack.c.0.s8 %v1205
      %v1207 = vlaneseq
      %v1208 = vshrl.u32 %v1207, 7
      %v1209 = vsub.s32 %v1206, %v1208
      %v1210 = vrot.slane %v1202, %v1209
      %v1212 = vunpack.c.l.s4 1934713408
      %v1213 = vunpack.c.0.s8 %v1212
      %v1214 = vlaneseq
      %v1215 = vshrl.u32 %v1214, 7
      %v1216 = vsub.s32 %v1213, %v1215
      %v1217 = vrot.slane %v1203, %v1216
      %v1218 = vcombine.low %v1185, %v1201
      %v1219 = vcombine.high %v1185, %v1201
      %v1221 = vunpack.c.l.s4 1934713408
      %v1222 = vunpack.c.0.s8 %v1221
      %v1223 = vlaneseq
      %v1224 = vshrl.u32 %v1223, 7
      %v1225 = vsub.s32 %v1222, %v1224
      %v1226 = vrot.slane %v1218, %v1225
      %v1228 = vunpack.c.l.s4 1934713408
      %v1229 = vunpack.c.0.s8 %v1228
      %v1230 = vlaneseq
      %v1231 = vshrl.u32 %v1230, 7
      %v1232 = vsub.s32 %v1229, %v1231
      %v1233 = vrot.slane %v1219, %v1232
      %v1234 = vcombine.high %v1210, 0.0
      %v1235 = vcombine.high %v1217, 0.0
      %v1236 = vcombine.high %v1226, 0.0
      %v1237 = vcombine.high %v1233, 0.0
      %v1238 = vpack.c.bf16 %v1050, %v1050
      %v1239 = vpack.c.bf16 %v1074, %v1074
      %v1240 = vpack.c.bf16 %v1057, %v1057
      %v1241 = vpack.c.bf16 %v1075, %v1075
      %v1242 = vpack.c.bf16 %v1066, %v1066
      %v1243 = vpack.c.bf16 %v1076, %v1076
      %v1244 = vpack.c.bf16 %v1073, %v1073
      %v1245 = vpack.c.bf16 %v1077, %v1077
      %v1246 = vpack.c.bf16 %v1130, %v1130
      %v1247 = vpack.c.bf16 %v1154, %v1154
      %v1248 = vpack.c.bf16 %v1137, %v1137
      %v1249 = vpack.c.bf16 %v1155, %v1155
      %v1250 = vpack.c.bf16 %v1146, %v1146
      %v1251 = vpack.c.bf16 %v1156, %v1156
      %v1252 = vpack.c.bf16 %v1153, %v1153
      %v1253 = vpack.c.bf16 %v1157, %v1157
      %v1254 = vcombine.low %v1238, %v1242
      %v1256 = vunpack.c.l.s4 1983009808
      %v1257 = vunpack.c.0.s8 %v1256
      %v1258 = vlaneseq
      %v1259 = vshrl.u32 %v1258, 7
      %v1260 = vsub.s32 %v1257, %v1259
      %v1261 = vrot.slane %v1254, %v1260
      %v1262 = vcombine.low %v1240, %v1244
      %v1264 = vunpack.c.l.s4 1983009808
      %v1265 = vunpack.c.0.s8 %v1264
      %v1266 = vlaneseq
      %v1267 = vshrl.u32 %v1266, 7
      %v1268 = vsub.s32 %v1265, %v1267
      %v1269 = vrot.slane %v1262, %v1268
      %v1270 = vcombine.low %v1261, %v1269
      %v1272 = vunpack.c.l.s4 1934713408
      %v1273 = vunpack.c.0.s8 %v1272
      %v1274 = vlaneseq
      %v1275 = vshrl.u32 %v1274, 7
      %v1276 = vsub.s32 %v1273, %v1275
      %v1277 = vrot.slane %v1270, %v1276
      %v1278 = vcombine.high %v1277, 0
      %v1279 = vcombine.low %v1239, %v1243
      %v1281 = vunpack.c.l.s4 1983009808
      %v1282 = vunpack.c.0.s8 %v1281
      %v1283 = vlaneseq
      %v1284 = vshrl.u32 %v1283, 7
      %v1285 = vsub.s32 %v1282, %v1284
      %v1286 = vrot.slane %v1279, %v1285
      %v1287 = vcombine.low %v1241, %v1245
      %v1289 = vunpack.c.l.s4 1983009808
      %v1290 = vunpack.c.0.s8 %v1289
      %v1291 = vlaneseq
      %v1292 = vshrl.u32 %v1291, 7
      %v1293 = vsub.s32 %v1290, %v1292
      %v1294 = vrot.slane %v1287, %v1293
      %v1295 = vcombine.low %v1286, %v1294
      %v1297 = vunpack.c.l.s4 1934713408
      %v1298 = vunpack.c.0.s8 %v1297
      %v1299 = vlaneseq
      %v1300 = vshrl.u32 %v1299, 7
      %v1301 = vsub.s32 %v1298, %v1300
      %v1302 = vrot.slane %v1295, %v1301
      %v1303 = vcombine.high %v1302, 0
      %v1306 = vpack.i.b16 %v1302, %v1277
      %v1307 = vshrl.u32 %v1277, 16
      %v1308 = vshrl.u32 %v1302, 16
      %v1309 = vpack.i.b16 %v1308, %v1307
      %v1312 = vpack.i.b16 %v1303, %v1278
      %v1313 = vshrl.u32 %v1278, 16
      %v1314 = vshrl.u32 %v1303, 16
      %v1315 = vpack.i.b16 %v1314, %v1313
      %1316 = vxpose.xlu0.c.b16.start [1/8] %v1246, 128
      %1317 = vxpose.xlu0.c.b16.cont [2/8] 0, 128
      %1318 = vxpose.xlu0.c.b16.cont [3/8] 0, 128
      %1319 = vxpose.xlu0.c.b16.cont [4/8] 0, 128
      %1320 = vxpose.xlu0.c.b16.cont [5/8] 0, 128
      %1321 = vxpose.xlu0.c.b16.cont [6/8] 0, 128
      %1322 = vxpose.xlu0.c.b16.cont [7/8] 0, 128
      %1323 = vxpose.xlu0.c.b16.end [8/8] 0, 128
      %v1324 = vpop.trf.xlu0
      %v1325 = vpop.trf.xlu0
      %v1326 = vpop.trf.xlu0
      %v1327 = vpop.trf.xlu0
      %v1328 = vpop.trf.xlu0
      %v1329 = vpop.trf.xlu0
      %v1330 = vpop.trf.xlu0
      %v1331 = vpop.trf.xlu0
      %1332 = vxpose.xlu0.c.b16.start [1/8] %v1247, 128
      %1333 = vxpose.xlu0.c.b16.cont [2/8] 0, 128
      %1334 = vxpose.xlu0.c.b16.cont [3/8] 0, 128
      %1335 = vxpose.xlu0.c.b16.cont [4/8] 0, 128
      %1336 = vxpose.xlu0.c.b16.cont [5/8] 0, 128
      %1337 = vxpose.xlu0.c.b16.cont [6/8] 0, 128
      %1338 = vxpose.xlu0.c.b16.cont [7/8] 0, 128
      %1339 = vxpose.xlu0.c.b16.end [8/8] 0, 128
      %v1340 = vpop.trf.xlu0
      %v1341 = vpop.trf.xlu0
      %v1342 = vpop.trf.xlu0
      %v1343 = vpop.trf.xlu0
      %v1344 = vpop.trf.xlu0
      %v1345 = vpop.trf.xlu0
      %v1346 = vpop.trf.xlu0
      %v1347 = vpop.trf.xlu0
      %1348 = vxpose.xlu0.c.b16.start [1/8] %v1248, 128
      %1349 = vxpose.xlu0.c.b16.cont [2/8] 0, 128
      %1350 = vxpose.xlu0.c.b16.cont [3/8] 0, 128
      %1351 = vxpose.xlu0.c.b16.cont [4/8] 0, 128
      %1352 = vxpose.xlu0.c.b16.cont [5/8] 0, 128
      %1353 = vxpose.xlu0.c.b16.cont [6/8] 0, 128
      %1354 = vxpose.xlu0.c.b16.cont [7/8] 0, 128
      %1355 = vxpose.xlu0.c.b16.end [8/8] 0, 128
      %v1356 = vpop.trf.xlu0
      %v1357 = vpop.trf.xlu0
      %v1358 = vpop.trf.xlu0
      %v1359 = vpop.trf.xlu0
      %v1360 = vpop.trf.xlu0
      %v1361 = vpop.trf.xlu0
      %v1362 = vpop.trf.xlu0
      %v1363 = vpop.trf.xlu0
      %1364 = vxpose.xlu0.c.b16.start [1/8] %v1249, 128
      %1365 = vxpose.xlu0.c.b16.cont [2/8] 0, 128
      %1366 = vxpose.xlu0.c.b16.cont [3/8] 0, 128
      %1367 = vxpose.xlu0.c.b16.cont [4/8] 0, 128
      %1368 = vxpose.xlu0.c.b16.cont [5/8] 0, 128
      %1369 = vxpose.xlu0.c.b16.cont [6/8] 0, 128
      %1370 = vxpose.xlu0.c.b16.cont [7/8] 0, 128
      %1371 = vxpose.xlu0.c.b16.end [8/8] 0, 128
      %v1372 = vpop.trf.xlu0
      %v1373 = vpop.trf.xlu0
      %v1374 = vpop.trf.xlu0
      %v1375 = vpop.trf.xlu0
      %v1376 = vpop.trf.xlu0
      %v1377 = vpop.trf.xlu0
      %v1378 = vpop.trf.xlu0
      %v1379 = vpop.trf.xlu0
      %1380 = vxpose.xlu0.c.b16.start [1/8] %v1250, 128
      %1381 = vxpose.xlu0.c.b16.cont [2/8] 0, 128
      %1382 = vxpose.xlu0.c.b16.cont [3/8] 0, 128
      %1383 = vxpose.xlu0.c.b16.cont [4/8] 0, 128
      %1384 = vxpose.xlu0.c.b16.cont [5/8] 0, 128
      %1385 = vxpose.xlu0.c.b16.cont [6/8] 0, 128
      %1386 = vxpose.xlu0.c.b16.cont [7/8] 0, 128
      %1387 = vxpose.xlu0.c.b16.end [8/8] 0, 128
      %v1388 = vpop.trf.xlu0
      %v1389 = vpop.trf.xlu0
      %v1390 = vpop.trf.xlu0
      %v1391 = vpop.trf.xlu0
      %v1392 = vpop.trf.xlu0
      %v1393 = vpop.trf.xlu0
      %v1394 = vpop.trf.xlu0
      %v1395 = vpop.trf.xlu0
      %1396 = vxpose.xlu0.c.b16.start [1/8] %v1251, 128
      %1397 = vxpose.xlu0.c.b16.cont [2/8] 0, 128
      %1398 = vxpose.xlu0.c.b16.cont [3/8] 0, 128
      %1399 = vxpose.xlu0.c.b16.cont [4/8] 0, 128
      %1400 = vxpose.xlu0.c.b16.cont [5/8] 0, 128
      %1401 = vxpose.xlu0.c.b16.cont [6/8] 0, 128
      %1402 = vxpose.xlu0.c.b16.cont [7/8] 0, 128
      %1403 = vxpose.xlu0.c.b16.end [8/8] 0, 128
      %v1404 = vpop.trf.xlu0
      %v1405 = vpop.trf.xlu0
      %v1406 = vpop.trf.xlu0
      %v1407 = vpop.trf.xlu0
      %v1408 = vpop.trf.xlu0
      %v1409 = vpop.trf.xlu0
      %v1410 = vpop.trf.xlu0
      %v1411 = vpop.trf.xlu0
      %1412 = vxpose.xlu0.c.b16.start [1/8] %v1252, 128
      %1413 = vxpose.xlu0.c.b16.cont [2/8] 0, 128
      %1414 = vxpose.xlu0.c.b16.cont [3/8] 0, 128
      %1415 = vxpose.xlu0.c.b16.cont [4/8] 0, 128
      %1416 = vxpose.xlu0.c.b16.cont [5/8] 0, 128
      %1417 = vxpose.xlu0.c.b16.cont [6/8] 0, 128
      %1418 = vxpose.xlu0.c.b16.cont [7/8] 0, 128
      %1419 = vxpose.xlu0.c.b16.end [8/8] 0, 128
      %v1420 = vpop.trf.xlu0
      %v1421 = vpop.trf.xlu0
      %v1422 = vpop.trf.xlu0
      %v1423 = vpop.trf.xlu0
      %v1424 = vpop.trf.xlu0
      %v1425 = vpop.trf.xlu0
      %v1426 = vpop.trf.xlu0
      %v1427 = vpop.trf.xlu0
      %1428 = vxpose.xlu0.c.b16.start [1/8] %v1253, 128
      %1429 = vxpose.xlu0.c.b16.cont [2/8] 0, 128
      %1430 = vxpose.xlu0.c.b16.cont [3/8] 0, 128
      %1431 = vxpose.xlu0.c.b16.cont [4/8] 0, 128
      %1432 = vxpose.xlu0.c.b16.cont [5/8] 0, 128
      %1433 = vxpose.xlu0.c.b16.cont [6/8] 0, 128
      %1434 = vxpose.xlu0.c.b16.cont [7/8] 0, 128
      %1435 = vxpose.xlu0.c.b16.end [8/8] 0, 128
      %v1436 = vpop.trf.xlu0
      %v1437 = vpop.trf.xlu0
      %v1438 = vpop.trf.xlu0
      %v1439 = vpop.trf.xlu0
      %v1440 = vpop.trf.xlu0
      %v1441 = vpop.trf.xlu0
      %v1442 = vpop.trf.xlu0
      %v1443 = vpop.trf.xlu0
      %v1444 = vcombine.low %v1324, %v1388
      %v1446 = vunpack.c.l.s4 1983009808
      %v1447 = vunpack.c.0.s8 %v1446
      %v1448 = vlaneseq
      %v1449 = vshrl.u32 %v1448, 7
      %v1450 = vsub.s32 %v1447, %v1449
      %v1451 = vrot.slane %v1444, %v1450
      %v1452 = vcombine.low %v1356, %v1420
      %v1454 = vunpack.c.l.s4 1983009808
      %v1455 = vunpack.c.0.s8 %v1454
      %v1456 = vlaneseq
      %v1457 = vshrl.u32 %v1456, 7
      %v1458 = vsub.s32 %v1455, %v1457
      %v1459 = vrot.slane %v1452, %v1458
      %v1460 = vcombine.low %v1451, %v1459
      %v1461 = vcombine.high %v1451, %v1459
      %v1463 = vunpack.c.l.s4 1934713408
      %v1464 = vunpack.c.0.s8 %v1463
      %v1465 = vlaneseq
      %v1466 = vshrl.u32 %v1465, 7
      %v1467 = vsub.s32 %v1464, %v1466
      %v1468 = vrot.slane %v1460, %v1467
      %v1470 = vunpack.c.l.s4 1934713408
      %v1471 = vunpack.c.0.s8 %v1470
      %v1472 = vlaneseq
      %v1473 = vshrl.u32 %v1472, 7
      %v1474 = vsub.s32 %v1471, %v1473
      %v1475 = vrot.slane %v1461, %v1474
      %v1476 = vcombine.high %v1468, 0
      %v1477 = vcombine.high %v1475, 0
      %v1478 = vcombine.low %v1340, %v1404
      %v1480 = vunpack.c.l.s4 1983009808
      %v1481 = vunpack.c.0.s8 %v1480
      %v1482 = vlaneseq
      %v1483 = vshrl.u32 %v1482, 7
      %v1484 = vsub.s32 %v1481, %v1483
      %v1485 = vrot.slane %v1478, %v1484
      %v1486 = vcombine.low %v1372, %v1436
      %v1488 = vunpack.c.l.s4 1983009808
      %v1489 = vunpack.c.0.s8 %v1488
      %v1490 = vlaneseq
      %v1491 = vshrl.u32 %v1490, 7
      %v1492 = vsub.s32 %v1489, %v1491
      %v1493 = vrot.slane %v1486, %v1492
      %v1494 = vcombine.low %v1485, %v1493
      %v1495 = vcombine.high %v1485, %v1493
      %v1497 = vunpack.c.l.s4 1934713408
      %v1498 = vunpack.c.0.s8 %v1497
      %v1499 = vlaneseq
      %v1500 = vshrl.u32 %v1499, 7
      %v1501 = vsub.s32 %v1498, %v1500
      %v1502 = vrot.slane %v1494, %v1501
      %v1504 = vunpack.c.l.s4 1934713408
      %v1505 = vunpack.c.0.s8 %v1504
      %v1506 = vlaneseq
      %v1507 = vshrl.u32 %v1506, 7
      %v1508 = vsub.s32 %v1505, %v1507
      %v1509 = vrot.slane %v1495, %v1508
      %v1510 = vcombine.high %v1502, 0
      %v1511 = vcombine.high %v1509, 0
      %v1514 = vpack.i.b16 %v1502, %v1468
      %v1516 = vshrl.u32 %v1468, 16
      %v1517 = vshrl.u32 %v1502, 16
      %v1518 = vpack.i.b16 %v1517, %v1516
      %v1522 = vpack.i.b16 %v1510, %v1476
      %v1524 = vshrl.u32 %v1476, 16
      %v1525 = vshrl.u32 %v1510, 16
      %v1526 = vpack.i.b16 %v1525, %v1524
      %v1530 = vpack.i.b16 %v1509, %v1475
      %v1532 = vshrl.u32 %v1475, 16
      %v1533 = vshrl.u32 %v1509, 16
      %v1534 = vpack.i.b16 %v1533, %v1532
      %v1538 = vpack.i.b16 %v1511, %v1477
      %v1540 = vshrl.u32 %v1477, 16
      %v1541 = vshrl.u32 %v1511, 16
      %v1542 = vpack.i.b16 %v1541, %v1540
      %1544 = vxpose.xlu0.c.b16.start [1/8] %v1514, 128
      %1545 = vxpose.xlu0.c.b16.cont [2/8] 0, 128
      %1546 = vxpose.xlu0.c.b16.cont [3/8] 0, 128
      %1547 = vxpose.xlu0.c.b16.cont [4/8] 0, 128
      %1548 = vxpose.xlu0.c.b16.cont [5/8] 0, 128
      %1549 = vxpose.xlu0.c.b16.cont [6/8] 0, 128
      %1550 = vxpose.xlu0.c.b16.cont [7/8] 0, 128
      %1551 = vxpose.xlu0.c.b16.end [8/8] 0, 128
      %v1552 = vpop.trf.xlu0
      %v1553 = vpop.trf.xlu0
      %v1554 = vpop.trf.xlu0
      %v1555 = vpop.trf.xlu0
      %v1556 = vpop.trf.xlu0
      %v1557 = vpop.trf.xlu0
      %v1558 = vpop.trf.xlu0
      %v1559 = vpop.trf.xlu0
      %1560 = vxpose.xlu0.c.b16.start [1/8] %v1518, 128
      %1561 = vxpose.xlu0.c.b16.cont [2/8] 0, 128
      %1562 = vxpose.xlu0.c.b16.cont [3/8] 0, 128
      %1563 = vxpose.xlu0.c.b16.cont [4/8] 0, 128
      %1564 = vxpose.xlu0.c.b16.cont [5/8] 0, 128
      %1565 = vxpose.xlu0.c.b16.cont [6/8] 0, 128
      %1566 = vxpose.xlu0.c.b16.cont [7/8] 0, 128
      %1567 = vxpose.xlu0.c.b16.end [8/8] 0, 128
      %v1568 = vpop.trf.xlu0
      %v1569 = vpop.trf.xlu0
      %v1570 = vpop.trf.xlu0
      %v1571 = vpop.trf.xlu0
      %v1572 = vpop.trf.xlu0
      %v1573 = vpop.trf.xlu0
      %v1574 = vpop.trf.xlu0
      %v1575 = vpop.trf.xlu0
      %1576 = vxpose.xlu0.c.b16.start [1/8] %v1522, 128
      %1577 = vxpose.xlu0.c.b16.cont [2/8] 0, 128
      %1578 = vxpose.xlu0.c.b16.cont [3/8] 0, 128
      %1579 = vxpose.xlu0.c.b16.cont [4/8] 0, 128
      %1580 = vxpose.xlu0.c.b16.cont [5/8] 0, 128
      %1581 = vxpose.xlu0.c.b16.cont [6/8] 0, 128
      %1582 = vxpose.xlu0.c.b16.cont [7/8] 0, 128
      %1583 = vxpose.xlu0.c.b16.end [8/8] 0, 128
      %v1584 = vpop.trf.xlu0
      %v1585 = vpop.trf.xlu0
      %v1586 = vpop.trf.xlu0
      %v1587 = vpop.trf.xlu0
      %v1588 = vpop.trf.xlu0
      %v1589 = vpop.trf.xlu0
      %v1590 = vpop.trf.xlu0
      %v1591 = vpop.trf.xlu0
      %1592 = vxpose.xlu0.c.b16.start [1/8] %v1526, 128
      %1593 = vxpose.xlu0.c.b16.cont [2/8] 0, 128
      %1594 = vxpose.xlu0.c.b16.cont [3/8] 0, 128
      %1595 = vxpose.xlu0.c.b16.cont [4/8] 0, 128
      %1596 = vxpose.xlu0.c.b16.cont [5/8] 0, 128
      %1597 = vxpose.xlu0.c.b16.cont [6/8] 0, 128
      %1598 = vxpose.xlu0.c.b16.cont [7/8] 0, 128
      %1599 = vxpose.xlu0.c.b16.end [8/8] 0, 128
      %v1600 = vpop.trf.xlu0
      %v1601 = vpop.trf.xlu0
      %v1602 = vpop.trf.xlu0
      %v1603 = vpop.trf.xlu0
      %v1604 = vpop.trf.xlu0
      %v1605 = vpop.trf.xlu0
      %v1606 = vpop.trf.xlu0
      %v1607 = vpop.trf.xlu0
      %1608 = vxpose.xlu0.c.b16.start [1/8] %v1530, 128
      %1609 = vxpose.xlu0.c.b16.cont [2/8] 0, 128
      %1610 = vxpose.xlu0.c.b16.cont [3/8] 0, 128
      %1611 = vxpose.xlu0.c.b16.cont [4/8] 0, 128
      %1612 = vxpose.xlu0.c.b16.cont [5/8] 0, 128
      %1613 = vxpose.xlu0.c.b16.cont [6/8] 0, 128
      %1614 = vxpose.xlu0.c.b16.cont [7/8] 0, 128
      %1615 = vxpose.xlu0.c.b16.end [8/8] 0, 128
      %v1616 = vpop.trf.xlu0
      %v1617 = vpop.trf.xlu0
      %v1618 = vpop.trf.xlu0
      %v1619 = vpop.trf.xlu0
      %v1620 = vpop.trf.xlu0
      %v1621 = vpop.trf.xlu0
      %v1622 = vpop.trf.xlu0
      %v1623 = vpop.trf.xlu0
      %1624 = vxpose.xlu0.c.b16.start [1/8] %v1534, 128
      %1625 = vxpose.xlu0.c.b16.cont [2/8] 0, 128
      %1626 = vxpose.xlu0.c.b16.cont [3/8] 0, 128
      %1627 = vxpose.xlu0.c.b16.cont [4/8] 0, 128
      %1628 = vxpose.xlu0.c.b16.cont [5/8] 0, 128
      %1629 = vxpose.xlu0.c.b16.cont [6/8] 0, 128
      %1630 = vxpose.xlu0.c.b16.cont [7/8] 0, 128
      %1631 = vxpose.xlu0.c.b16.end [8/8] 0, 128
      %v1632 = vpop.trf.xlu0
      %v1633 = vpop.trf.xlu0
      %v1634 = vpop.trf.xlu0
      %v1635 = vpop.trf.xlu0
      %v1636 = vpop.trf.xlu0
      %v1637 = vpop.trf.xlu0
      %v1638 = vpop.trf.xlu0
      %v1639 = vpop.trf.xlu0
      %1640 = vxpose.xlu0.c.b16.start [1/8] %v1538, 128
      %1641 = vxpose.xlu0.c.b16.cont [2/8] 0, 128
      %1642 = vxpose.xlu0.c.b16.cont [3/8] 0, 128
      %1643 = vxpose.xlu0.c.b16.cont [4/8] 0, 128
      %1644 = vxpose.xlu0.c.b16.cont [5/8] 0, 128
      %1645 = vxpose.xlu0.c.b16.cont [6/8] 0, 128
      %1646 = vxpose.xlu0.c.b16.cont [7/8] 0, 128
      %1647 = vxpose.xlu0.c.b16.end [8/8] 0, 128
      %v1648 = vpop.trf.xlu0
      %v1649 = vpop.trf.xlu0
      %v1650 = vpop.trf.xlu0
      %v1651 = vpop.trf.xlu0
      %v1652 = vpop.trf.xlu0
      %v1653 = vpop.trf.xlu0
      %v1654 = vpop.trf.xlu0
      %v1655 = vpop.trf.xlu0
      %1656 = vxpose.xlu0.c.b16.start [1/8] %v1542, 128
      %1657 = vxpose.xlu0.c.b16.cont [2/8] 0, 128
      %1658 = vxpose.xlu0.c.b16.cont [3/8] 0, 128
      %1659 = vxpose.xlu0.c.b16.cont [4/8] 0, 128
      %1660 = vxpose.xlu0.c.b16.cont [5/8] 0, 128
      %1661 = vxpose.xlu0.c.b16.cont [6/8] 0, 128
      %1662 = vxpose.xlu0.c.b16.cont [7/8] 0, 128
      %1663 = vxpose.xlu0.c.b16.end [8/8] 0, 128
      %v1664 = vpop.trf.xlu0
      %v1665 = vpop.trf.xlu0
      %v1666 = vpop.trf.xlu0
      %v1667 = vpop.trf.xlu0
      %v1668 = vpop.trf.xlu0
      %v1669 = vpop.trf.xlu0
      %v1670 = vpop.trf.xlu0
      %v1671 = vpop.trf.xlu0
      %v1672 = vcombine.low %v1552, %v1616
      %v1674 = vunpack.c.l.s4 1983009808
      %v1675 = vunpack.c.0.s8 %v1674
      %v1676 = vlaneseq
      %v1677 = vshrl.u32 %v1676, 7
      %v1678 = vsub.s32 %v1675, %v1677
      %v1679 = vrot.slane %v1672, %v1678
      %v1680 = vcombine.low %v1584, %v1648
      %v1682 = vunpack.c.l.s4 1983009808
      %v1683 = vunpack.c.0.s8 %v1682
      %v1684 = vlaneseq
      %v1685 = vshrl.u32 %v1684, 7
      %v1686 = vsub.s32 %v1683, %v1685
      %v1687 = vrot.slane %v1680, %v1686
      %v1688 = vcombine.low %v1679, %v1687
      %v1690 = vunpack.c.l.s4 1934713408
      %v1691 = vunpack.c.0.s8 %v1690
      %v1692 = vlaneseq
      %v1693 = vshrl.u32 %v1692, 7
      %v1694 = vsub.s32 %v1691, %v1693
      %v1695 = vrot.slane %v1688, %v1694
      %v1696 = vcombine.high %v1695, 0
      %v1697 = vcombine.low %v1568, %v1632
      %v1699 = vunpack.c.l.s4 1983009808
      %v1700 = vunpack.c.0.s8 %v1699
      %v1701 = vlaneseq
      %v1702 = vshrl.u32 %v1701, 7
      %v1703 = vsub.s32 %v1700, %v1702
      %v1704 = vrot.slane %v1697, %v1703
      %v1705 = vcombine.low %v1600, %v1664
      %v1707 = vunpack.c.l.s4 1983009808
      %v1708 = vunpack.c.0.s8 %v1707
      %v1709 = vlaneseq
      %v1710 = vshrl.u32 %v1709, 7
      %v1711 = vsub.s32 %v1708, %v1710
      %v1712 = vrot.slane %v1705, %v1711
      %v1713 = vcombine.low %v1704, %v1712
      %v1715 = vunpack.c.l.s4 1934713408
      %v1716 = vunpack.c.0.s8 %v1715
      %v1717 = vlaneseq
      %v1718 = vshrl.u32 %v1717, 7
      %v1719 = vsub.s32 %v1716, %v1718
      %v1720 = vrot.slane %v1713, %v1719
      %v1721 = vcombine.high %v1720, 0
      %v1724 = vpack.i.b16 %v1720, %v1695
      %v1725 = vshrl.u32 %v1695, 16
      %v1726 = vshrl.u32 %v1720, 16
      %v1727 = vpack.i.b16 %v1726, %v1725
      %v1730 = vpack.i.b16 %v1721, %v1696
      %v1731 = vshrl.u32 %v1696, 16
      %v1732 = vshrl.u32 %v1721, 16
      %v1733 = vpack.i.b16 %v1732, %v1731
      %vm1734 = vcmask 64512
      %v1736 = vsel %vm1734, %v1306, 0
      %vm1738 = vcmask 1043456
      %v1740 = vsel %vm1738, %v1724, 0
      %1742 = vmatprep.subr.bf16.mxu0 0
      %1743 = vmatpush1.bf16.msra.mxu0 %v1740
      %1744 = vmatprep.subr.bf16.mxu0 0
      %1745 = vmatpush1.bf16.msra.mxu0 0
      %1746 = vmatprep.subr.bf16.mxu0 0
      %1747 = vmatpush1.bf16.msra.mxu0 0
      %1748 = vmatprep.subr.bf16.mxu0 0
      %1749 = vmatpush1.bf16.msra.mxu0 0
      %1750 = vmatprep.subr.bf16.mxu0 0
      %1751 = vmatpush1.bf16.msra.mxu0 0
      %1752 = vmatprep.subr.bf16.mxu0 0
      %1753 = vmatpush1.bf16.msra.mxu0 0
      %1754 = vmatprep.subr.bf16.mxu0 0
      %1755 = vmatpush1.bf16.msra.mxu0 0
      %1756 = vmatprep.subr.bf16.mxu0 0
      %1757 = vmatpush1.bf16.msra.mxu0 0
      %1758 = vmatprep.subr.bf16.mxu0 0
      %1759 = vmatpush1.bf16.msra.mxu0 0
      %1760 = vmatprep.subr.bf16.mxu0 0
      %1761 = vmatpush1.bf16.msra.mxu0 0
      %1762 = vmatprep.subr.bf16.mxu0 0
      %1763 = vmatpush1.bf16.msra.mxu0 0
      %1764 = vmatprep.subr.bf16.mxu0 0
      %1765 = vmatpush1.bf16.msra.mxu0 0
      %1766 = vmatprep.subr.bf16.mxu0 0
      %1767 = vmatpush1.bf16.msra.mxu0 0
      %1768 = vmatprep.subr.bf16.mxu0 0
      %1769 = vmatpush1.bf16.msra.mxu0 0
      %1770 = vmatprep.subr.bf16.mxu0 0
      %1771 = vmatpush1.bf16.msra.mxu0 0
      %1772 = vmatprep.subr.bf16.mxu0 0
      %1773 = vmatpush1.bf16.msra.mxu0 0
      %1774 = vmatprep.mubr.bf16.mxu0 0
      %1775 = vmatmul.mubr.bf16.gmra.mrb[0].mxu0 %v1736
      %v1776 = vpop.f32.mrb[0].mxu0
      %v1777 = vadd.f32 0.0, %v1776
      %v1778 = vpop.f32.mrb[0].mxu0
      %v1779 = vpop.f32.mrb[0].mxu0
      %v1780 = vpop.f32.mrb[0].mxu0
      %1781 = vdwg.mxu0
      %v1783 = vsel %vm1734, %v1309, 0
      %v1786 = vsel %vm1738, %v1727, 0
      %1788 = vmatprep.subr.bf16.mxu0 0
      %1789 = vmatpush1.bf16.msra.mxu0 %v1786
      %1790 = vmatprep.subr.bf16.mxu0 0
      %1791 = vmatpush1.bf16.msra.mxu0 0
      %1792 = vmatprep.subr.bf16.mxu0 0
      %1793 = vmatpush1.bf16.msra.mxu0 0
      %1794 = vmatprep.subr.bf16.mxu0 0
      %1795 = vmatpush1.bf16.msra.mxu0 0
      %1796 = vmatprep.subr.bf16.mxu0 0
      %1797 = vmatpush1.bf16.msra.mxu0 0
      %1798 = vmatprep.subr.bf16.mxu0 0
      %1799 = vmatpush1.bf16.msra.mxu0 0
      %1800 = vmatprep.subr.bf16.mxu0 0
      %1801 = vmatpush1.bf16.msra.mxu0 0
      %1802 = vmatprep.subr.bf16.mxu0 0
      %1803 = vmatpush1.bf16.msra.mxu0 0
      %1804 = vmatprep.subr.bf16.mxu0 0
      %1805 = vmatpush1.bf16.msra.mxu0 0
      %1806 = vmatprep.subr.bf16.mxu0 0
      %1807 = vmatpush1.bf16.msra.mxu0 0
      %1808 = vmatprep.subr.bf16.mxu0 0
      %1809 = vmatpush1.bf16.msra.mxu0 0
      %1810 = vmatprep.subr.bf16.mxu0 0
      %1811 = vmatpush1.bf16.msra.mxu0 0
      %1812 = vmatprep.subr.bf16.mxu0 0
      %1813 = vmatpush1.bf16.msra.mxu0 0
      %1814 = vmatprep.subr.bf16.mxu0 0
      %1815 = vmatpush1.bf16.msra.mxu0 0
      %1816 = vmatprep.subr.bf16.mxu0 0
      %1817 = vmatpush1.bf16.msra.mxu0 0
      %1818 = vmatprep.subr.bf16.mxu0 0
      %1819 = vmatpush1.bf16.msra.mxu0 0
      %1820 = vmatprep.mubr.bf16.mxu0 0
      %1821 = vmatmul.mubr.bf16.gmra.mrb[0].mxu0 %v1783
      %v1822 = vpop.f32.mrb[0].mxu0
      %v1823 = vadd.f32 0.0, %v1822
      %v1824 = vpop.f32.mrb[0].mxu0
      %v1825 = vpop.f32.mrb[0].mxu0
      %v1826 = vpop.f32.mrb[0].mxu0
      %1827 = vdwg.mxu0
      %v1829 = vsel %vm1734, %v1312, 0
      %v1832 = vsel %vm1738, %v1730, 0
      %1834 = vmatprep.subr.bf16.mxu0 0
      %1835 = vmatpush1.bf16.msra.mxu0 %v1832
      %1836 = vmatprep.subr.bf16.mxu0 0
      %1837 = vmatpush1.bf16.msra.mxu0 0
      %1838 = vmatprep.subr.bf16.mxu0 0
      %1839 = vmatpush1.bf16.msra.mxu0 0
      %1840 = vmatprep.subr.bf16.mxu0 0
      %1841 = vmatpush1.bf16.msra.mxu0 0
      %1842 = vmatprep.subr.bf16.mxu0 0
      %1843 = vmatpush1.bf16.msra.mxu0 0
      %1844 = vmatprep.subr.bf16.mxu0 0
      %1845 = vmatpush1.bf16.msra.mxu0 0
      %1846 = vmatprep.subr.bf16.mxu0 0
      %1847 = vmatpush1.bf16.msra.mxu0 0
      %1848 = vmatprep.subr.bf16.mxu0 0
      %1849 = vmatpush1.bf16.msra.mxu0 0
      %1850 = vmatprep.subr.bf16.mxu0 0
      %1851 = vmatpush1.bf16.msra.mxu0 0
      %1852 = vmatprep.subr.bf16.mxu0 0
      %1853 = vmatpush1.bf16.msra.mxu0 0
      %1854 = vmatprep.subr.bf16.mxu0 0
      %1855 = vmatpush1.bf16.msra.mxu0 0
      %1856 = vmatprep.subr.bf16.mxu0 0
      %1857 = vmatpush1.bf16.msra.mxu0 0
      %1858 = vmatprep.subr.bf16.mxu0 0
      %1859 = vmatpush1.bf16.msra.mxu0 0
      %1860 = vmatprep.subr.bf16.mxu0 0
      %1861 = vmatpush1.bf16.msra.mxu0 0
      %1862 = vmatprep.subr.bf16.mxu0 0
      %1863 = vmatpush1.bf16.msra.mxu0 0
      %1864 = vmatprep.subr.bf16.mxu0 0
      %1865 = vmatpush1.bf16.msra.mxu0 0
      %1866 = vmatprep.mubr.bf16.mxu0 0
      %1867 = vmatmul.mubr.bf16.gmra.mrb[0].mxu0 %v1829
      %v1868 = vpop.f32.mrb[0].mxu0
      %v1869 = vadd.f32 0.0, %v1868
      %v1870 = vpop.f32.mrb[0].mxu0
      %v1871 = vpop.f32.mrb[0].mxu0
      %v1872 = vpop.f32.mrb[0].mxu0
      %1873 = vdwg.mxu0
      %v1875 = vsel %vm1734, %v1315, 0
      %v1878 = vsel %vm1738, %v1733, 0
      %1880 = vmatprep.subr.bf16.mxu0 0
      %1881 = vmatpush1.bf16.msra.mxu0 %v1878
      %1882 = vmatprep.subr.bf16.mxu0 0
      %1883 = vmatpush1.bf16.msra.mxu0 0
      %1884 = vmatprep.subr.bf16.mxu0 0
      %1885 = vmatpush1.bf16.msra.mxu0 0
      %1886 = vmatprep.subr.bf16.mxu0 0
      %1887 = vmatpush1.bf16.msra.mxu0 0
      %1888 = vmatprep.subr.bf16.mxu0 0
      %1889 = vmatpush1.bf16.msra.mxu0 0
      %1890 = vmatprep.subr.bf16.mxu0 0
      %1891 = vmatpush1.bf16.msra.mxu0 0
      %1892 = vmatprep.subr.bf16.mxu0 0
      %1893 = vmatpush1.bf16.msra.mxu0 0
      %1894 = vmatprep.subr.bf16.mxu0 0
      %1895 = vmatpush1.bf16.msra.mxu0 0
      %1896 = vmatprep.subr.bf16.mxu0 0
      %1897 = vmatpush1.bf16.msra.mxu0 0
      %1898 = vmatprep.subr.bf16.mxu0 0
      %1899 = vmatpush1.bf16.msra.mxu0 0
      %1900 = vmatprep.subr.bf16.mxu0 0
      %1901 = vmatpush1.bf16.msra.mxu0 0
      %1902 = vmatprep.subr.bf16.mxu0 0
      %1903 = vmatpush1.bf16.msra.mxu0 0
      %1904 = vmatprep.subr.bf16.mxu0 0
      %1905 = vmatpush1.bf16.msra.mxu0 0
      %1906 = vmatprep.subr.bf16.mxu0 0
      %1907 = vmatpush1.bf16.msra.mxu0 0
      %1908 = vmatprep.subr.bf16.mxu0 0
      %1909 = vmatpush1.bf16.msra.mxu0 0
      %1910 = vmatprep.subr.bf16.mxu0 0
      %1911 = vmatpush1.bf16.msra.mxu0 0
      %1912 = vmatprep.mubr.bf16.mxu0 0
      %1913 = vmatmul.mubr.bf16.gmra.mrb[0].mxu0 %v1875
      %v1914 = vpop.f32.mrb[0].mxu0
      %v1915 = vadd.f32 0.0, %v1914
      %v1916 = vpop.f32.mrb[0].mxu0
      %v1917 = vpop.f32.mrb[0].mxu0
      %v1918 = vpop.f32.mrb[0].mxu0
      %1919 = vdwg.mxu0
      %v1920 = vmul.f32 %v1777, 0.35355338
      %v1921 = vmul.f32 %v1823, 0.35355338
      %v1922 = vmul.f32 %v1869, 0.35355338
      %v1923 = vmul.f32 %v1915, 0.35355338
      %v1924 = vld [vmem:[%s518] sm:$0x1]
      %v1926 = vlaneseq
      %v1927 = vshrl.u32 %v1926, 7
      %v1928 = vsub.s32 0, %v1927
      %v1929 = vrot.slane %v1924, %v1928
      %v1931 = vadd.f32 %v1920, %v1929
      %v1932 = vadd.f32 %v1921, %v1929
      %v1933 = vadd.f32 %v1922, %v1929
      %v1934 = vadd.f32 %v1923, %v1929
      %v1935 = vsel %vm1734, %v1931, -inf
      %1936 = vmax.xlane.f32.xlu0 %v1935
      %v1937 = vpop.xlane.xlu0 %1936
      %v1938 = vsel %vm1734, %v1932, -inf
      %1939 = vmax.xlane.f32.xlu0 %v1938
      %v1940 = vpop.xlane.xlu0 %1939
      %v1941 = vsel %vm1734, %v1933, -inf
      %1942 = vmax.xlane.f32.xlu0 %v1941
      %v1943 = vpop.xlane.xlu0 %1942
      %v1944 = vsel %vm1734, %v1934, -inf
      %1945 = vmax.xlane.f32.xlu0 %v1944
      %v1946 = vpop.xlane.xlu0 %1945
      %v1947 = vsub.f32 %v1931, %v1937
      %v1948 = vsub.f32 %v1932, %v1940
      %v1949 = vsub.f32 %v1933, %v1943
      %v1950 = vsub.f32 %v1934, %v1946
      %v1951 = vmul.f32 %v1947, 1.442695
      %v1952 = vpow.pop %v1951
      %v1953 = vmul.f32 %v1948, 1.442695
      %v1954 = vpow.pop %v1953
      %v1955 = vmul.f32 %v1949, 1.442695
      %v1956 = vpow.pop %v1955
      %v1957 = vmul.f32 %v1950, 1.442695
      %v1958 = vpow.pop %v1957
      %v1959 = vsel %vm1734, %v1952, 0.0
      %1960 = vadd.xlane.f32.xlu0 %v1959
      %v1961 = vpop.xlane.xlu0 %1960
      %v1962 = vsel %vm1734, %v1954, 0.0
      %1963 = vadd.xlane.f32.xlu0 %v1962
      %v1964 = vpop.xlane.xlu0 %1963
      %v1965 = vsel %vm1734, %v1956, 0.0
      %1966 = vadd.xlane.f32.xlu0 %v1965
      %v1967 = vpop.xlane.xlu0 %1966
      %v1968 = vsel %vm1734, %v1958, 0.0
      %1969 = vadd.xlane.f32.xlu0 %v1968
      %v1970 = vpop.xlane.xlu0 %1969
      %v1971 = vrcp.pop %v1961
      %v1972 = vrcp.pop %v1964
      %v1973 = vrcp.pop %v1967
      %v1974 = vrcp.pop %v1970
      %v1975 = vmul.f32 %v1952, %v1971
      %v1976 = vmul.f32 %v1954, %v1972
      %v1977 = vmul.f32 %v1956, %v1973
      %v1978 = vmul.f32 %v1958, %v1974
      %v1979 = vpack.c.bf16 %v1975, %v1975
      %v1980 = vpack.c.bf16 %v1976, %v1976
      %v1981 = vpack.c.bf16 %v1977, %v1977
      %v1982 = vpack.c.bf16 %v1978, %v1978
      %v1983 = vpack.c.bf16 %v1210, %v1210
      %v1984 = vpack.c.bf16 %v1234, %v1234
      %v1985 = vpack.c.bf16 %v1217, %v1217
      %v1986 = vpack.c.bf16 %v1235, %v1235
      %v1987 = vpack.c.bf16 %v1226, %v1226
      %v1988 = vpack.c.bf16 %v1236, %v1236
      %v1989 = vpack.c.bf16 %v1233, %v1233
      %v1990 = vpack.c.bf16 %v1237, %v1237
      %1991 = vxpose.xlu0.c.b16.start [1/8] %v1983, 128
      %1992 = vxpose.xlu0.c.b16.cont [2/8] 0, 128
      %1993 = vxpose.xlu0.c.b16.cont [3/8] 0, 128
      %1994 = vxpose.xlu0.c.b16.cont [4/8] 0, 128
      %1995 = vxpose.xlu0.c.b16.cont [5/8] 0, 128
      %1996 = vxpose.xlu0.c.b16.cont [6/8] 0, 128
      %1997 = vxpose.xlu0.c.b16.cont [7/8] 0, 128
      %1998 = vxpose.xlu0.c.b16.end [8/8] 0, 128
      %v1999 = vpop.trf.xlu0
      %v2000 = vpop.trf.xlu0
      %v2001 = vpop.trf.xlu0
      %v2002 = vpop.trf.xlu0
      %v2003 = vpop.trf.xlu0
      %v2004 = vpop.trf.xlu0
      %v2005 = vpop.trf.xlu0
      %v2006 = vpop.trf.xlu0
      %2007 = vxpose.xlu0.c.b16.start [1/8] %v1984, 128
      %2008 = vxpose.xlu0.c.b16.cont [2/8] 0, 128
      %2009 = vxpose.xlu0.c.b16.cont [3/8] 0, 128
      %2010 = vxpose.xlu0.c.b16.cont [4/8] 0, 128
      %2011 = vxpose.xlu0.c.b16.cont [5/8] 0, 128
      %2012 = vxpose.xlu0.c.b16.cont [6/8] 0, 128
      %2013 = vxpose.xlu0.c.b16.cont [7/8] 0, 128
      %2014 = vxpose.xlu0.c.b16.end [8/8] 0, 128
      %v2015 = vpop.trf.xlu0
      %v2016 = vpop.trf.xlu0
      %v2017 = vpop.trf.xlu0
      %v2018 = vpop.trf.xlu0
      %v2019 = vpop.trf.xlu0
      %v2020 = vpop.trf.xlu0
      %v2021 = vpop.trf.xlu0
      %v2022 = vpop.trf.xlu0
      %2023 = vxpose.xlu0.c.b16.start [1/8] %v1985, 128
      %2024 = vxpose.xlu0.c.b16.cont [2/8] 0, 128
      %2025 = vxpose.xlu0.c.b16.cont [3/8] 0, 128
      %2026 = vxpose.xlu0.c.b16.cont [4/8] 0, 128
      %2027 = vxpose.xlu0.c.b16.cont [5/8] 0, 128
      %2028 = vxpose.xlu0.c.b16.cont [6/8] 0, 128
      %2029 = vxpose.xlu0.c.b16.cont [7/8] 0, 128
      %2030 = vxpose.xlu0.c.b16.end [8/8] 0, 128
      %v2031 = vpop.trf.xlu0
      %v2032 = vpop.trf.xlu0
      %v2033 = vpop.trf.xlu0
      %v2034 = vpop.trf.xlu0
      %v2035 = vpop.trf.xlu0
      %v2036 = vpop.trf.xlu0
      %v2037 = vpop.trf.xlu0
      %v2038 = vpop.trf.xlu0
      %2039 = vxpose.xlu0.c.b16.start [1/8] %v1986, 128
      %2040 = vxpose.xlu0.c.b16.cont [2/8] 0, 128
      %2041 = vxpose.xlu0.c.b16.cont [3/8] 0, 128
      %2042 = vxpose.xlu0.c.b16.cont [4/8] 0, 128
      %2043 = vxpose.xlu0.c.b16.cont [5/8] 0, 128
      %2044 = vxpose.xlu0.c.b16.cont [6/8] 0, 128
      %2045 = vxpose.xlu0.c.b16.cont [7/8] 0, 128
      %2046 = vxpose.xlu0.c.b16.end [8/8] 0, 128
      %v2047 = vpop.trf.xlu0
      %v2048 = vpop.trf.xlu0
      %v2049 = vpop.trf.xlu0
      %v2050 = vpop.trf.xlu0
      %v2051 = vpop.trf.xlu0
      %v2052 = vpop.trf.xlu0
      %v2053 = vpop.trf.xlu0
      %v2054 = vpop.trf.xlu0
      %2055 = vxpose.xlu0.c.b16.start [1/8] %v1987, 128
      %2056 = vxpose.xlu0.c.b16.cont [2/8] 0, 128
      %2057 = vxpose.xlu0.c.b16.cont [3/8] 0, 128
      %2058 = vxpose.xlu0.c.b16.cont [4/8] 0, 128
      %2059 = vxpose.xlu0.c.b16.cont [5/8] 0, 128
      %2060 = vxpose.xlu0.c.b16.cont [6/8] 0, 128
      %2061 = vxpose.xlu0.c.b16.cont [7/8] 0, 128
      %2062 = vxpose.xlu0.c.b16.end [8/8] 0, 128
      %v2063 = vpop.trf.xlu0
      %v2064 = vpop.trf.xlu0
      %v2065 = vpop.trf.xlu0
      %v2066 = vpop.trf.xlu0
      %v2067 = vpop.trf.xlu0
      %v2068 = vpop.trf.xlu0
      %v2069 = vpop.trf.xlu0
      %v2070 = vpop.trf.xlu0
      %2071 = vxpose.xlu0.c.b16.start [1/8] %v1988, 128
      %2072 = vxpose.xlu0.c.b16.cont [2/8] 0, 128
      %2073 = vxpose.xlu0.c.b16.cont [3/8] 0, 128
      %2074 = vxpose.xlu0.c.b16.cont [4/8] 0, 128
      %2075 = vxpose.xlu0.c.b16.cont [5/8] 0, 128
      %2076 = vxpose.xlu0.c.b16.cont [6/8] 0, 128
      %2077 = vxpose.xlu0.c.b16.cont [7/8] 0, 128
      %2078 = vxpose.xlu0.c.b16.end [8/8] 0, 128
      %v2079 = vpop.trf.xlu0
      %v2080 = vpop.trf.xlu0
      %v2081 = vpop.trf.xlu0
      %v2082 = vpop.trf.xlu0
      %v2083 = vpop.trf.xlu0
      %v2084 = vpop.trf.xlu0
      %v2085 = vpop.trf.xlu0
      %v2086 = vpop.trf.xlu0
      %2087 = vxpose.xlu0.c.b16.start [1/8] %v1989, 128
      %2088 = vxpose.xlu0.c.b16.cont [2/8] 0, 128
      %2089 = vxpose.xlu0.c.b16.cont [3/8] 0, 128
      %2090 = vxpose.xlu0.c.b16.cont [4/8] 0, 128
      %2091 = vxpose.xlu0.c.b16.cont [5/8] 0, 128
      %2092 = vxpose.xlu0.c.b16.cont [6/8] 0, 128
      %2093 = vxpose.xlu0.c.b16.cont [7/8] 0, 128
      %2094 = vxpose.xlu0.c.b16.end [8/8] 0, 128
      %v2095 = vpop.trf.xlu0
      %v2096 = vpop.trf.xlu0
      %v2097 = vpop.trf.xlu0
      %v2098 = vpop.trf.xlu0
      %v2099 = vpop.trf.xlu0
      %v2100 = vpop.trf.xlu0
      %v2101 = vpop.trf.xlu0
      %v2102 = vpop.trf.xlu0
      %2103 = vxpose.xlu0.c.b16.start [1/8] %v1990, 128
      %2104 = vxpose.xlu0.c.b16.cont [2/8] 0, 128
      %2105 = vxpose.xlu0.c.b16.cont [3/8] 0, 128
      %2106 = vxpose.xlu0.c.b16.cont [4/8] 0, 128
      %2107 = vxpose.xlu0.c.b16.cont [5/8] 0, 128
      %2108 = vxpose.xlu0.c.b16.cont [6/8] 0, 128
      %2109 = vxpose.xlu0.c.b16.cont [7/8] 0, 128
      %2110 = vxpose.xlu0.c.b16.end [8/8] 0, 128
      %v2111 = vpop.trf.xlu0
      %v2112 = vpop.trf.xlu0
      %v2113 = vpop.trf.xlu0
      %v2114 = vpop.trf.xlu0
      %v2115 = vpop.trf.xlu0
      %v2116 = vpop.trf.xlu0
      %v2117 = vpop.trf.xlu0
      %v2118 = vpop.trf.xlu0
      %v2119 = vcombine.low %v1999, %v2063
      %v2121 = vunpack.c.l.s4 1983009808
      %v2122 = vunpack.c.0.s8 %v2121
      %v2123 = vlaneseq
      %v2124 = vshrl.u32 %v2123, 7
      %v2125 = vsub.s32 %v2122, %v2124
      %v2126 = vrot.slane %v2119, %v2125
      %v2127 = vcombine.low %v2031, %v2095
      %v2129 = vunpack.c.l.s4 1983009808
      %v2130 = vunpack.c.0.s8 %v2129
      %v2131 = vlaneseq
      %v2132 = vshrl.u32 %v2131, 7
      %v2133 = vsub.s32 %v2130, %v2132
      %v2134 = vrot.slane %v2127, %v2133
      %v2135 = vcombine.low %v2126, %v2134
      %v2136 = vcombine.high %v2126, %v2134
      %v2138 = vunpack.c.l.s4 1934713408
      %v2139 = vunpack.c.0.s8 %v2138
      %v2140 = vlaneseq
      %v2141 = vshrl.u32 %v2140, 7
      %v2142 = vsub.s32 %v2139, %v2141
      %v2143 = vrot.slane %v2135, %v2142
      %v2145 = vunpack.c.l.s4 1934713408
      %v2146 = vunpack.c.0.s8 %v2145
      %v2147 = vlaneseq
      %v2148 = vshrl.u32 %v2147, 7
      %v2149 = vsub.s32 %v2146, %v2148
      %v2150 = vrot.slane %v2136, %v2149
      %v2151 = vcombine.high %v2143, 0
      %v2152 = vcombine.high %v2150, 0
      %v2153 = vcombine.low %v2015, %v2079
      %v2155 = vunpack.c.l.s4 1983009808
      %v2156 = vunpack.c.0.s8 %v2155
      %v2157 = vlaneseq
      %v2158 = vshrl.u32 %v2157, 7
      %v2159 = vsub.s32 %v2156, %v2158
      %v2160 = vrot.slane %v2153, %v2159
      %v2161 = vcombine.low %v2047, %v2111
      %v2163 = vunpack.c.l.s4 1983009808
      %v2164 = vunpack.c.0.s8 %v2163
      %v2165 = vlaneseq
      %v2166 = vshrl.u32 %v2165, 7
      %v2167 = vsub.s32 %v2164, %v2166
      %v2168 = vrot.slane %v2161, %v2167
      %v2169 = vcombine.low %v2160, %v2168
      %v2170 = vcombine.high %v2160, %v2168
      %v2172 = vunpack.c.l.s4 1934713408
      %v2173 = vunpack.c.0.s8 %v2172
      %v2174 = vlaneseq
      %v2175 = vshrl.u32 %v2174, 7
      %v2176 = vsub.s32 %v2173, %v2175
      %v2177 = vrot.slane %v2169, %v2176
      %v2179 = vunpack.c.l.s4 1934713408
      %v2180 = vunpack.c.0.s8 %v2179
      %v2181 = vlaneseq
      %v2182 = vshrl.u32 %v2181, 7
      %v2183 = vsub.s32 %v2180, %v2182
      %v2184 = vrot.slane %v2170, %v2183
      %v2185 = vcombine.high %v2177, 0
      %v2186 = vcombine.high %v2184, 0
      %v2189 = vpack.i.b16 %v2177, %v2143
      %v2191 = vshrl.u32 %v2143, 16
      %v2192 = vshrl.u32 %v2177, 16
      %v2193 = vpack.i.b16 %v2192, %v2191
      %v2197 = vpack.i.b16 %v2185, %v2151
      %v2199 = vshrl.u32 %v2151, 16
      %v2200 = vshrl.u32 %v2185, 16
      %v2201 = vpack.i.b16 %v2200, %v2199
      %v2205 = vpack.i.b16 %v2184, %v2150
      %v2207 = vshrl.u32 %v2150, 16
      %v2208 = vshrl.u32 %v2184, 16
      %v2209 = vpack.i.b16 %v2208, %v2207
      %v2213 = vpack.i.b16 %v2186, %v2152
      %v2215 = vshrl.u32 %v2152, 16
      %v2216 = vshrl.u32 %v2186, 16
      %v2217 = vpack.i.b16 %v2216, %v2215
      %2219 = vxpose.xlu0.c.b16.start [1/8] %v2189, 128
      %2220 = vxpose.xlu0.c.b16.cont [2/8] 0, 128
      %2221 = vxpose.xlu0.c.b16.cont [3/8] 0, 128
      %2222 = vxpose.xlu0.c.b16.cont [4/8] 0, 128
      %2223 = vxpose.xlu0.c.b16.cont [5/8] 0, 128
      %2224 = vxpose.xlu0.c.b16.cont [6/8] 0, 128
      %2225 = vxpose.xlu0.c.b16.cont [7/8] 0, 128
      %2226 = vxpose.xlu0.c.b16.end [8/8] 0, 128
      %v2227 = vpop.trf.xlu0
      %v2228 = vpop.trf.xlu0
      %v2229 = vpop.trf.xlu0
      %v2230 = vpop.trf.xlu0
      %v2231 = vpop.trf.xlu0
      %v2232 = vpop.trf.xlu0
      %v2233 = vpop.trf.xlu0
      %v2234 = vpop.trf.xlu0
      %2235 = vxpose.xlu0.c.b16.start [1/8] %v2193, 128
      %2236 = vxpose.xlu0.c.b16.cont [2/8] 0, 128
      %2237 = vxpose.xlu0.c.b16.cont [3/8] 0, 128
      %2238 = vxpose.xlu0.c.b16.cont [4/8] 0, 128
      %2239 = vxpose.xlu0.c.b16.cont [5/8] 0, 128
      %2240 = vxpose.xlu0.c.b16.cont [6/8] 0, 128
      %2241 = vxpose.xlu0.c.b16.cont [7/8] 0, 128
      %2242 = vxpose.xlu0.c.b16.end [8/8] 0, 128
      %v2243 = vpop.trf.xlu0
      %v2244 = vpop.trf.xlu0
      %v2245 = vpop.trf.xlu0
      %v2246 = vpop.trf.xlu0
      %v2247 = vpop.trf.xlu0
      %v2248 = vpop.trf.xlu0
      %v2249 = vpop.trf.xlu0
      %v2250 = vpop.trf.xlu0
      %2251 = vxpose.xlu0.c.b16.start [1/8] %v2197, 128
      %2252 = vxpose.xlu0.c.b16.cont [2/8] 0, 128
      %2253 = vxpose.xlu0.c.b16.cont [3/8] 0, 128
      %2254 = vxpose.xlu0.c.b16.cont [4/8] 0, 128
      %2255 = vxpose.xlu0.c.b16.cont [5/8] 0, 128
      %2256 = vxpose.xlu0.c.b16.cont [6/8] 0, 128
      %2257 = vxpose.xlu0.c.b16.cont [7/8] 0, 128
      %2258 = vxpose.xlu0.c.b16.end [8/8] 0, 128
      %v2259 = vpop.trf.xlu0
      %v2260 = vpop.trf.xlu0
      %v2261 = vpop.trf.xlu0
      %v2262 = vpop.trf.xlu0
      %v2263 = vpop.trf.xlu0
      %v2264 = vpop.trf.xlu0
      %v2265 = vpop.trf.xlu0
      %v2266 = vpop.trf.xlu0
      %2267 = vxpose.xlu0.c.b16.start [1/8] %v2201, 128
      %2268 = vxpose.xlu0.c.b16.cont [2/8] 0, 128
      %2269 = vxpose.xlu0.c.b16.cont [3/8] 0, 128
      %2270 = vxpose.xlu0.c.b16.cont [4/8] 0, 128
      %2271 = vxpose.xlu0.c.b16.cont [5/8] 0, 128
      %2272 = vxpose.xlu0.c.b16.cont [6/8] 0, 128
      %2273 = vxpose.xlu0.c.b16.cont [7/8] 0, 128
      %2274 = vxpose.xlu0.c.b16.end [8/8] 0, 128
      %v2275 = vpop.trf.xlu0
      %v2276 = vpop.trf.xlu0
      %v2277 = vpop.trf.xlu0
      %v2278 = vpop.trf.xlu0
      %v2279 = vpop.trf.xlu0
      %v2280 = vpop.trf.xlu0
      %v2281 = vpop.trf.xlu0
      %v2282 = vpop.trf.xlu0
      %2283 = vxpose.xlu0.c.b16.start [1/8] %v2205, 128
      %2284 = vxpose.xlu0.c.b16.cont [2/8] 0, 128
      %2285 = vxpose.xlu0.c.b16.cont [3/8] 0, 128
      %2286 = vxpose.xlu0.c.b16.cont [4/8] 0, 128
      %2287 = vxpose.xlu0.c.b16.cont [5/8] 0, 128
      %2288 = vxpose.xlu0.c.b16.cont [6/8] 0, 128
      %2289 = vxpose.xlu0.c.b16.cont [7/8] 0, 128
      %2290 = vxpose.xlu0.c.b16.end [8/8] 0, 128
      %v2291 = vpop.trf.xlu0
      %v2292 = vpop.trf.xlu0
      %v2293 = vpop.trf.xlu0
      %v2294 = vpop.trf.xlu0
      %v2295 = vpop.trf.xlu0
      %v2296 = vpop.trf.xlu0
      %v2297 = vpop.trf.xlu0
      %v2298 = vpop.trf.xlu0
      %2299 = vxpose.xlu0.c.b16.start [1/8] %v2209, 128
      %2300 = vxpose.xlu0.c.b16.cont [2/8] 0, 128
      %2301 = vxpose.xlu0.c.b16.cont [3/8] 0, 128
      %2302 = vxpose.xlu0.c.b16.cont [4/8] 0, 128
      %2303 = vxpose.xlu0.c.b16.cont [5/8] 0, 128
      %2304 = vxpose.xlu0.c.b16.cont [6/8] 0, 128
      %2305 = vxpose.xlu0.c.b16.cont [7/8] 0, 128
      %2306 = vxpose.xlu0.c.b16.end [8/8] 0, 128
      %v2307 = vpop.trf.xlu0
      %v2308 = vpop.trf.xlu0
      %v2309 = vpop.trf.xlu0
      %v2310 = vpop.trf.xlu0
      %v2311 = vpop.trf.xlu0
      %v2312 = vpop.trf.xlu0
      %v2313 = vpop.trf.xlu0
      %v2314 = vpop.trf.xlu0
      %2315 = vxpose.xlu0.c.b16.start [1/8] %v2213, 128
      %2316 = vxpose.xlu0.c.b16.cont [2/8] 0, 128
      %2317 = vxpose.xlu0.c.b16.cont [3/8] 0, 128
      %2318 = vxpose.xlu0.c.b16.cont [4/8] 0, 128
      %2319 = vxpose.xlu0.c.b16.cont [5/8] 0, 128
      %2320 = vxpose.xlu0.c.b16.cont [6/8] 0, 128
      %2321 = vxpose.xlu0.c.b16.cont [7/8] 0, 128
      %2322 = vxpose.xlu0.c.b16.end [8/8] 0, 128
      %v2323 = vpop.trf.xlu0
      %v2324 = vpop.trf.xlu0
      %v2325 = vpop.trf.xlu0
      %v2326 = vpop.trf.xlu0
      %v2327 = vpop.trf.xlu0
      %v2328 = vpop.trf.xlu0
      %v2329 = vpop.trf.xlu0
      %v2330 = vpop.trf.xlu0
      %2331 = vxpose.xlu0.c.b16.start [1/8] %v2217, 128
      %2332 = vxpose.xlu0.c.b16.cont [2/8] 0, 128
      %2333 = vxpose.xlu0.c.b16.cont [3/8] 0, 128
      %2334 = vxpose.xlu0.c.b16.cont [4/8] 0, 128
      %2335 = vxpose.xlu0.c.b16.cont [5/8] 0, 128
      %2336 = vxpose.xlu0.c.b16.cont [6/8] 0, 128
      %2337 = vxpose.xlu0.c.b16.cont [7/8] 0, 128
      %2338 = vxpose.xlu0.c.b16.end [8/8] 0, 128
      %v2339 = vpop.trf.xlu0
      %v2340 = vpop.trf.xlu0
      %v2341 = vpop.trf.xlu0
      %v2342 = vpop.trf.xlu0
      %v2343 = vpop.trf.xlu0
      %v2344 = vpop.trf.xlu0
      %v2345 = vpop.trf.xlu0
      %v2346 = vpop.trf.xlu0
      %v2347 = vcombine.low %v2227, %v2291
      %v2349 = vunpack.c.l.s4 1983009808
      %v2350 = vunpack.c.0.s8 %v2349
      %v2351 = vlaneseq
      %v2352 = vshrl.u32 %v2351, 7
      %v2353 = vsub.s32 %v2350, %v2352
      %v2354 = vrot.slane %v2347, %v2353
      %v2355 = vcombine.low %v2259, %v2323
      %v2357 = vunpack.c.l.s4 1983009808
      %v2358 = vunpack.c.0.s8 %v2357
      %v2359 = vlaneseq
      %v2360 = vshrl.u32 %v2359, 7
      %v2361 = vsub.s32 %v2358, %v2360
      %v2362 = vrot.slane %v2355, %v2361
      %v2363 = vcombine.low %v2354, %v2362
      %v2365 = vunpack.c.l.s4 1934713408
      %v2366 = vunpack.c.0.s8 %v2365
      %v2367 = vlaneseq
      %v2368 = vshrl.u32 %v2367, 7
      %v2369 = vsub.s32 %v2366, %v2368
      %v2370 = vrot.slane %v2363, %v2369
      %v2371 = vcombine.high %v2370, 0
      %v2372 = vcombine.low %v2243, %v2307
      %v2374 = vunpack.c.l.s4 1983009808
      %v2375 = vunpack.c.0.s8 %v2374
      %v2376 = vlaneseq
      %v2377 = vshrl.u32 %v2376, 7
      %v2378 = vsub.s32 %v2375, %v2377
      %v2379 = vrot.slane %v2372, %v2378
      %v2380 = vcombine.low %v2275, %v2339
      %v2382 = vunpack.c.l.s4 1983009808
      %v2383 = vunpack.c.0.s8 %v2382
      %v2384 = vlaneseq
      %v2385 = vshrl.u32 %v2384, 7
      %v2386 = vsub.s32 %v2383, %v2385
      %v2387 = vrot.slane %v2380, %v2386
      %v2388 = vcombine.low %v2379, %v2387
      %v2390 = vunpack.c.l.s4 1934713408
      %v2391 = vunpack.c.0.s8 %v2390
      %v2392 = vlaneseq
      %v2393 = vshrl.u32 %v2392, 7
      %v2394 = vsub.s32 %v2391, %v2393
      %v2395 = vrot.slane %v2388, %v2394
      %v2396 = vcombine.high %v2395, 0
      %v2399 = vpack.i.b16 %v2395, %v2370
      %v2400 = vshrl.u32 %v2370, 16
      %v2401 = vshrl.u32 %v2395, 16
      %v2402 = vpack.i.b16 %v2401, %v2400
      %v2405 = vpack.i.b16 %v2396, %v2371
      %v2406 = vshrl.u32 %v2371, 16
      %v2407 = vshrl.u32 %v2396, 16
      %v2408 = vpack.i.b16 %v2407, %v2406
      %v2410 = vsel %vm1734, %v2399, 0
      %v2413 = vsel %vm1734, %v1979, 0
      %2415 = vmatprep.subr.bf16.mxu0 0
      %2416 = vmatpush1.bf16.xpose.msra.mxu0 %v2413
      %2417 = vmatprep.subr.bf16.mxu0 0
      %2418 = vmatpush1.bf16.xpose.msra.mxu0 0
      %2419 = vmatprep.subr.bf16.mxu0 0
      %2420 = vmatpush1.bf16.xpose.msra.mxu0 0
      %2421 = vmatprep.subr.bf16.mxu0 0
      %2422 = vmatpush1.bf16.xpose.msra.mxu0 0
      %2423 = vmatprep.subr.bf16.mxu0 0
      %2424 = vmatpush1.bf16.xpose.msra.mxu0 0
      %2425 = vmatprep.subr.bf16.mxu0 0
      %2426 = vmatpush1.bf16.xpose.msra.mxu0 0
      %2427 = vmatprep.subr.bf16.mxu0 0
      %2428 = vmatpush1.bf16.xpose.msra.mxu0 0
      %2429 = vmatprep.subr.bf16.mxu0 0
      %2430 = vmatpush1.bf16.xpose.msra.mxu0 0
      %2431 = vmatprep.subr.bf16.mxu0 0
      %2432 = vmatpush1.bf16.xpose.msra.mxu0 0
      %2433 = vmatprep.subr.bf16.mxu0 0
      %2434 = vmatpush1.bf16.xpose.msra.mxu0 0
      %2435 = vmatprep.subr.bf16.mxu0 0
      %2436 = vmatpush1.bf16.xpose.msra.mxu0 0
      %2437 = vmatprep.subr.bf16.mxu0 0
      %2438 = vmatpush1.bf16.xpose.msra.mxu0 0
      %2439 = vmatprep.subr.bf16.mxu0 0
      %2440 = vmatpush1.bf16.xpose.msra.mxu0 0
      %2441 = vmatprep.subr.bf16.mxu0 0
      %2442 = vmatpush1.bf16.xpose.msra.mxu0 0
      %2443 = vmatprep.subr.bf16.mxu0 0
      %2444 = vmatpush1.bf16.xpose.msra.mxu0 0
      %2445 = vmatprep.subr.bf16.mxu0 0
      %2446 = vmatpush1.bf16.xpose.msra.mxu0 0
      %2447 = vmatprep.mubr.bf16.mxu0 0
      %2448 = vmatmul.mubr.bf16.gmra.mrb[0].mxu0 %v2410
      %v2449 = vpop.f32.mrb[0].mxu0
      %v2450 = vadd.f32 0.0, %v2449
      %v2451 = vpop.f32.mrb[0].mxu0
      %v2452 = vpop.f32.mrb[0].mxu0
      %v2453 = vpop.f32.mrb[0].mxu0
      %2454 = vdwg.mxu0
      %v2456 = vsel %vm1734, %v2402, 0
      %v2459 = vsel %vm1734, %v1980, 0
      %2461 = vmatprep.subr.bf16.mxu0 0
      %2462 = vmatpush1.bf16.xpose.msra.mxu0 %v2459
      %2463 = vmatprep.subr.bf16.mxu0 0
      %2464 = vmatpush1.bf16.xpose.msra.mxu0 0
      %2465 = vmatprep.subr.bf16.mxu0 0
      %2466 = vmatpush1.bf16.xpose.msra.mxu0 0
      %2467 = vmatprep.subr.bf16.mxu0 0
      %2468 = vmatpush1.bf16.xpose.msra.mxu0 0
      %2469 = vmatprep.subr.bf16.mxu0 0
      %2470 = vmatpush1.bf16.xpose.msra.mxu0 0
      %2471 = vmatprep.subr.bf16.mxu0 0
      %2472 = vmatpush1.bf16.xpose.msra.mxu0 0
      %2473 = vmatprep.subr.bf16.mxu0 0
      %2474 = vmatpush1.bf16.xpose.msra.mxu0 0
      %2475 = vmatprep.subr.bf16.mxu0 0
      %2476 = vmatpush1.bf16.xpose.msra.mxu0 0
      %2477 = vmatprep.subr.bf16.mxu0 0
      %2478 = vmatpush1.bf16.xpose.msra.mxu0 0
      %2479 = vmatprep.subr.bf16.mxu0 0
      %2480 = vmatpush1.bf16.xpose.msra.mxu0 0
      %2481 = vmatprep.subr.bf16.mxu0 0
      %2482 = vmatpush1.bf16.xpose.msra.mxu0 0
      %2483 = vmatprep.subr.bf16.mxu0 0
      %2484 = vmatpush1.bf16.xpose.msra.mxu0 0
      %2485 = vmatprep.subr.bf16.mxu0 0
      %2486 = vmatpush1.bf16.xpose.msra.mxu0 0
      %2487 = vmatprep.subr.bf16.mxu0 0
      %2488 = vmatpush1.bf16.xpose.msra.mxu0 0
      %2489 = vmatprep.subr.bf16.mxu0 0
      %2490 = vmatpush1.bf16.xpose.msra.mxu0 0
      %2491 = vmatprep.subr.bf16.mxu0 0
      %2492 = vmatpush1.bf16.xpose.msra.mxu0 0
      %2493 = vmatprep.mubr.bf16.mxu0 0
      %2494 = vmatmul.mubr.bf16.gmra.mrb[0].mxu0 %v2456
      %v2495 = vpop.f32.mrb[0].mxu0
      %v2496 = vadd.f32 0.0, %v2495
      %v2497 = vpop.f32.mrb[0].mxu0
      %v2498 = vpop.f32.mrb[0].mxu0
      %v2499 = vpop.f32.mrb[0].mxu0
      %2500 = vdwg.mxu0
      %v2502 = vsel %vm1734, %v2405, 0
      %v2505 = vsel %vm1734, %v1981, 0
      %2507 = vmatprep.subr.bf16.mxu0 0
      %2508 = vmatpush1.bf16.xpose.msra.mxu0 %v2505
      %2509 = vmatprep.subr.bf16.mxu0 0
      %2510 = vmatpush1.bf16.xpose.msra.mxu0 0
      %2511 = vmatprep.subr.bf16.mxu0 0
      %2512 = vmatpush1.bf16.xpose.msra.mxu0 0
      %2513 = vmatprep.subr.bf16.mxu0 0
      %2514 = vmatpush1.bf16.xpose.msra.mxu0 0
      %2515 = vmatprep.subr.bf16.mxu0 0
      %2516 = vmatpush1.bf16.xpose.msra.mxu0 0
      %2517 = vmatprep.subr.bf16.mxu0 0
      %2518 = vmatpush1.bf16.xpose.msra.mxu0 0
      %2519 = vmatprep.subr.bf16.mxu0 0
      %2520 = vmatpush1.bf16.xpose.msra.mxu0 0
      %2521 = vmatprep.subr.bf16.mxu0 0
      %2522 = vmatpush1.bf16.xpose.msra.mxu0 0
      %2523 = vmatprep.subr.bf16.mxu0 0
      %2524 = vmatpush1.bf16.xpose.msra.mxu0 0
      %2525 = vmatprep.subr.bf16.mxu0 0
      %2526 = vmatpush1.bf16.xpose.msra.mxu0 0
      %2527 = vmatprep.subr.bf16.mxu0 0
      %2528 = vmatpush1.bf16.xpose.msra.mxu0 0
      %2529 = vmatprep.subr.bf16.mxu0 0
      %2530 = vmatpush1.bf16.xpose.msra.mxu0 0
      %2531 = vmatprep.subr.bf16.mxu0 0
      %2532 = vmatpush1.bf16.xpose.msra.mxu0 0
      %2533 = vmatprep.subr.bf16.mxu0 0
      %2534 = vmatpush1.bf16.xpose.msra.mxu0 0
      %2535 = vmatprep.subr.bf16.mxu0 0
      %2536 = vmatpush1.bf16.xpose.msra.mxu0 0
      %2537 = vmatprep.subr.bf16.mxu0 0
      %2538 = vmatpush1.bf16.xpose.msra.mxu0 0
      %2539 = vmatprep.mubr.bf16.mxu0 0
      %2540 = vmatmul.mubr.bf16.gmra.mrb[0].mxu0 %v2502
      %v2541 = vpop.f32.mrb[0].mxu0
      %v2542 = vadd.f32 0.0, %v2541
      %v2543 = vpop.f32.mrb[0].mxu0
      %v2544 = vpop.f32.mrb[0].mxu0
      %v2545 = vpop.f32.mrb[0].mxu0
      %2546 = vdwg.mxu0
      %v2548 = vsel %vm1734, %v2408, 0
      %v2551 = vsel %vm1734, %v1982, 0
      %2553 = vmatprep.subr.bf16.mxu0 0
      %2554 = vmatpush1.bf16.xpose.msra.mxu0 %v2551
      %2555 = vmatprep.subr.bf16.mxu0 0
      %2556 = vmatpush1.bf16.xpose.msra.mxu0 0
      %2557 = vmatprep.subr.bf16.mxu0 0
      %2558 = vmatpush1.bf16.xpose.msra.mxu0 0
      %2559 = vmatprep.subr.bf16.mxu0 0
      %2560 = vmatpush1.bf16.xpose.msra.mxu0 0
      %2561 = vmatprep.subr.bf16.mxu0 0
      %2562 = vmatpush1.bf16.xpose.msra.mxu0 0
      %2563 = vmatprep.subr.bf16.mxu0 0
      %2564 = vmatpush1.bf16.xpose.msra.mxu0 0
      %2565 = vmatprep.subr.bf16.mxu0 0
      %2566 = vmatpush1.bf16.xpose.msra.mxu0 0
      %2567 = vmatprep.subr.bf16.mxu0 0
      %2568 = vmatpush1.bf16.xpose.msra.mxu0 0
      %2569 = vmatprep.subr.bf16.mxu0 0
      %2570 = vmatpush1.bf16.xpose.msra.mxu0 0
      %2571 = vmatprep.subr.bf16.mxu0 0
      %2572 = vmatpush1.bf16.xpose.msra.mxu0 0
      %2573 = vmatprep.subr.bf16.mxu0 0
      %2574 = vmatpush1.bf16.xpose.msra.mxu0 0
      %2575 = vmatprep.subr.bf16.mxu0 0
      %2576 = vmatpush1.bf16.xpose.msra.mxu0 0
      %2577 = vmatprep.subr.bf16.mxu0 0
      %2578 = vmatpush1.bf16.xpose.msra.mxu0 0
      %2579 = vmatprep.subr.bf16.mxu0 0
      %2580 = vmatpush1.bf16.xpose.msra.mxu0 0
      %2581 = vmatprep.subr.bf16.mxu0 0
      %2582 = vmatpush1.bf16.xpose.msra.mxu0 0
      %2583 = vmatprep.subr.bf16.mxu0 0
      %2584 = vmatpush1.bf16.xpose.msra.mxu0 0
      %2585 = vmatprep.mubr.bf16.mxu0 0
      %2586 = vmatmul.mubr.bf16.gmra.mrb[0].mxu0 %v2548
      %v2587 = vpop.f32.mrb[0].mxu0
      %v2588 = vadd.f32 0.0, %v2587
      %v2589 = vpop.f32.mrb[0].mxu0
      %v2590 = vpop.f32.mrb[0].mxu0
      %v2591 = vpop.f32.mrb[0].mxu0
      %2592 = vdwg.mxu0
      %2593 = vxpose.xlu0.b32.start [1/16] %v2450, 128
      %2594 = vxpose.xlu0.b32.cont [2/16] 0.0, 128
      %2595 = vxpose.xlu0.b32.cont [3/16] 0.0, 128
      %2596 = vxpose.xlu0.b32.cont [4/16] 0.0, 128
      %2597 = vxpose.xlu0.b32.cont [5/16] 0.0, 128
      %2598 = vxpose.xlu0.b32.cont [6/16] 0.0, 128
      %2599 = vxpose.xlu0.b32.cont [7/16] 0.0, 128
      %2600 = vxpose.xlu0.b32.cont [8/16] 0.0, 128
      %2601 = vxpose.xlu0.b32.cont [9/16] 0.0, 128
      %2602 = vxpose.xlu0.b32.cont [10/16] 0.0, 128
      %2603 = vxpose.xlu0.b32.cont [11/16] 0.0, 128
      %2604 = vxpose.xlu0.b32.cont [12/16] 0.0, 128
      %2605 = vxpose.xlu0.b32.cont [13/16] 0.0, 128
      %2606 = vxpose.xlu0.b32.cont [14/16] 0.0, 128
      %2607 = vxpose.xlu0.b32.cont [15/16] 0.0, 128
      %2608 = vxpose.xlu0.b32.end [16/16] 0.0, 128
      %v2609 = vpop.trf.xlu0
      %v2610 = vpop.trf.xlu0
      %v2611 = vpop.trf.xlu0
      %v2612 = vpop.trf.xlu0
      %v2613 = vpop.trf.xlu0
      %v2614 = vpop.trf.xlu0
      %v2615 = vpop.trf.xlu0
      %v2616 = vpop.trf.xlu0
      %v2617 = vpop.trf.xlu0
      %v2618 = vpop.trf.xlu0
      %v2619 = vpop.trf.xlu0
      %v2620 = vpop.trf.xlu0
      %v2621 = vpop.trf.xlu0
      %v2622 = vpop.trf.xlu0
      %v2623 = vpop.trf.xlu0
      %v2624 = vpop.trf.xlu0
      %2625 = vxpose.xlu0.b32.start [1/16] %v2496, 128
      %2626 = vxpose.xlu0.b32.cont [2/16] 0.0, 128
      %2627 = vxpose.xlu0.b32.cont [3/16] 0.0, 128
      %2628 = vxpose.xlu0.b32.cont [4/16] 0.0, 128
      %2629 = vxpose.xlu0.b32.cont [5/16] 0.0, 128
      %2630 = vxpose.xlu0.b32.cont [6/16] 0.0, 128
      %2631 = vxpose.xlu0.b32.cont [7/16] 0.0, 128
      %2632 = vxpose.xlu0.b32.cont [8/16] 0.0, 128
      %2633 = vxpose.xlu0.b32.cont [9/16] 0.0, 128
      %2634 = vxpose.xlu0.b32.cont [10/16] 0.0, 128
      %2635 = vxpose.xlu0.b32.cont [11/16] 0.0, 128
      %2636 = vxpose.xlu0.b32.cont [12/16] 0.0, 128
      %2637 = vxpose.xlu0.b32.cont [13/16] 0.0, 128
      %2638 = vxpose.xlu0.b32.cont [14/16] 0.0, 128
      %2639 = vxpose.xlu0.b32.cont [15/16] 0.0, 128
      %2640 = vxpose.xlu0.b32.end [16/16] 0.0, 128
      %v2641 = vpop.trf.xlu0
      %v2642 = vpop.trf.xlu0
      %v2643 = vpop.trf.xlu0
      %v2644 = vpop.trf.xlu0
      %v2645 = vpop.trf.xlu0
      %v2646 = vpop.trf.xlu0
      %v2647 = vpop.trf.xlu0
      %v2648 = vpop.trf.xlu0
      %v2649 = vpop.trf.xlu0
      %v2650 = vpop.trf.xlu0
      %v2651 = vpop.trf.xlu0
      %v2652 = vpop.trf.xlu0
      %v2653 = vpop.trf.xlu0
      %v2654 = vpop.trf.xlu0
      %v2655 = vpop.trf.xlu0
      %v2656 = vpop.trf.xlu0
      %2657 = vxpose.xlu0.b32.start [1/16] %v2542, 128
      %2658 = vxpose.xlu0.b32.cont [2/16] 0.0, 128
      %2659 = vxpose.xlu0.b32.cont [3/16] 0.0, 128
      %2660 = vxpose.xlu0.b32.cont [4/16] 0.0, 128
      %2661 = vxpose.xlu0.b32.cont [5/16] 0.0, 128
      %2662 = vxpose.xlu0.b32.cont [6/16] 0.0, 128
      %2663 = vxpose.xlu0.b32.cont [7/16] 0.0, 128
      %2664 = vxpose.xlu0.b32.cont [8/16] 0.0, 128
      %2665 = vxpose.xlu0.b32.cont [9/16] 0.0, 128
      %2666 = vxpose.xlu0.b32.cont [10/16] 0.0, 128
      %2667 = vxpose.xlu0.b32.cont [11/16] 0.0, 128
      %2668 = vxpose.xlu0.b32.cont [12/16] 0.0, 128
      %2669 = vxpose.xlu0.b32.cont [13/16] 0.0, 128
      %2670 = vxpose.xlu0.b32.cont [14/16] 0.0, 128
      %2671 = vxpose.xlu0.b32.cont [15/16] 0.0, 128
      %2672 = vxpose.xlu0.b32.end [16/16] 0.0, 128
      %v2673 = vpop.trf.xlu0
      %v2674 = vpop.trf.xlu0
      %v2675 = vpop.trf.xlu0
      %v2676 = vpop.trf.xlu0
      %v2677 = vpop.trf.xlu0
      %v2678 = vpop.trf.xlu0
      %v2679 = vpop.trf.xlu0
      %v2680 = vpop.trf.xlu0
      %v2681 = vpop.trf.xlu0
      %v2682 = vpop.trf.xlu0
      %v2683 = vpop.trf.xlu0
      %v2684 = vpop.trf.xlu0
      %v2685 = vpop.trf.xlu0
      %v2686 = vpop.trf.xlu0
      %v2687 = vpop.trf.xlu0
      %v2688 = vpop.trf.xlu0
      %2689 = vxpose.xlu0.b32.start [1/16] %v2588, 128
      %2690 = vxpose.xlu0.b32.cont [2/16] 0.0, 128
      %2691 = vxpose.xlu0.b32.cont [3/16] 0.0, 128
      %2692 = vxpose.xlu0.b32.cont [4/16] 0.0, 128
      %2693 = vxpose.xlu0.b32.cont [5/16] 0.0, 128
      %2694 = vxpose.xlu0.b32.cont [6/16] 0.0, 128
      %2695 = vxpose.xlu0.b32.cont [7/16] 0.0, 128
      %2696 = vxpose.xlu0.b32.cont [8/16] 0.0, 128
      %2697 = vxpose.xlu0.b32.cont [9/16] 0.0, 128
      %2698 = vxpose.xlu0.b32.cont [10/16] 0.0, 128
      %2699 = vxpose.xlu0.b32.cont [11/16] 0.0, 128
      %2700 = vxpose.xlu0.b32.cont [12/16] 0.0, 128
      %2701 = vxpose.xlu0.b32.cont [13/16] 0.0, 128
      %2702 = vxpose.xlu0.b32.cont [14/16] 0.0, 128
      %2703 = vxpose.xlu0.b32.cont [15/16] 0.0, 128
      %2704 = vxpose.xlu0.b32.end [16/16] 0.0, 128
      %v2705 = vpop.trf.xlu0
      %v2706 = vpop.trf.xlu0
      %v2707 = vpop.trf.xlu0
      %v2708 = vpop.trf.xlu0
      %v2709 = vpop.trf.xlu0
      %v2710 = vpop.trf.xlu0
      %v2711 = vpop.trf.xlu0
      %v2712 = vpop.trf.xlu0
      %v2713 = vpop.trf.xlu0
      %v2714 = vpop.trf.xlu0
      %v2715 = vpop.trf.xlu0
      %v2716 = vpop.trf.xlu0
      %v2717 = vpop.trf.xlu0
      %v2718 = vpop.trf.xlu0
      %v2719 = vpop.trf.xlu0
      %v2720 = vpop.trf.xlu0
      %v2721 = vcombine.low %v2609, %v2673
      %v2722 = vcombine.high %v2609, %v2673
      %v2724 = vunpack.c.l.s4 1983009808
      %v2725 = vunpack.c.0.s8 %v2724
      %v2726 = vlaneseq
      %v2727 = vshrl.u32 %v2726, 7
      %v2728 = vsub.s32 %v2725, %v2727
      %v2729 = vrot.slane %v2721, %v2728
      %v2731 = vunpack.c.l.s4 1983009808
      %v2732 = vunpack.c.0.s8 %v2731
      %v2733 = vlaneseq
      %v2734 = vshrl.u32 %v2733, 7
      %v2735 = vsub.s32 %v2732, %v2734
      %v2736 = vrot.slane %v2722, %v2735
      %v2737 = vcombine.low %v2641, %v2705
      %v2738 = vcombine.high %v2641, %v2705
      %v2740 = vunpack.c.l.s4 1983009808
      %v2741 = vunpack.c.0.s8 %v2740
      %v2742 = vlaneseq
      %v2743 = vshrl.u32 %v2742, 7
      %v2744 = vsub.s32 %v2741, %v2743
      %v2745 = vrot.slane %v2737, %v2744
      %v2747 = vunpack.c.l.s4 1983009808
      %v2748 = vunpack.c.0.s8 %v2747
      %v2749 = vlaneseq
      %v2750 = vshrl.u32 %v2749, 7
      %v2751 = vsub.s32 %v2748, %v2750
      %v2752 = vrot.slane %v2738, %v2751
      %v2753 = vcombine.low %v2729, %v2745
      %v2754 = vcombine.high %v2729, %v2745
      %v2756 = vunpack.c.l.s4 1934713408
      %v2757 = vunpack.c.0.s8 %v2756
      %v2758 = vlaneseq
      %v2759 = vshrl.u32 %v2758, 7
      %v2760 = vsub.s32 %v2757, %v2759
      %v2761 = vrot.slane %v2753, %v2760
      %v2763 = vunpack.c.l.s4 1934713408
      %v2764 = vunpack.c.0.s8 %v2763
      %v2765 = vlaneseq
      %v2766 = vshrl.u32 %v2765, 7
      %v2767 = vsub.s32 %v2764, %v2766
      %v2768 = vrot.slane %v2754, %v2767
      %v2769 = vcombine.low %v2736, %v2752
      %v2770 = vcombine.high %v2736, %v2752
      %v2772 = vunpack.c.l.s4 1934713408
      %v2773 = vunpack.c.0.s8 %v2772
      %v2774 = vlaneseq
      %v2775 = vshrl.u32 %v2774, 7
      %v2776 = vsub.s32 %v2773, %v2775
      %v2777 = vrot.slane %v2769, %v2776
      %v2779 = vunpack.c.l.s4 1934713408
      %v2780 = vunpack.c.0.s8 %v2779
      %v2781 = vlaneseq
      %v2782 = vshrl.u32 %v2781, 7
      %v2783 = vsub.s32 %v2780, %v2782
      %v2784 = vrot.slane %v2770, %v2783
      %v2785 = vcombine.high %v2761, 0.0
      %v2786 = vcombine.high %v2768, 0.0
      %v2787 = vcombine.high %v2777, 0.0
      %v2788 = vcombine.high %v2784, 0.0
      %v2789 = vcombine.low %v2761, %v2768
      %v2791 = vunpack.c.l.s4 1983009808
      %v2792 = vunpack.c.0.s8 %v2791
      %v2793 = vlaneseq
      %v2794 = vshrl.u32 %v2793, 7
      %v2795 = vsub.s32 %v2792, %v2794
      %v2796 = vrot.slane %v2789, %v2795
      %v2797 = vcombine.low %v2785, %v2786
      %v2799 = vunpack.c.l.s4 1983009808
      %v2800 = vunpack.c.0.s8 %v2799
      %v2801 = vlaneseq
      %v2802 = vshrl.u32 %v2801, 7
      %v2803 = vsub.s32 %v2800, %v2802
      %v2804 = vrot.slane %v2797, %v2803
      %v2805 = vcombine.low %v2777, %v2784
      %v2807 = vunpack.c.l.s4 1983009808
      %v2808 = vunpack.c.0.s8 %v2807
      %v2809 = vlaneseq
      %v2810 = vshrl.u32 %v2809, 7
      %v2811 = vsub.s32 %v2808, %v2810
      %v2812 = vrot.slane %v2805, %v2811
      %v2813 = vcombine.low %v2787, %v2788
      %v2815 = vunpack.c.l.s4 1983009808
      %v2816 = vunpack.c.0.s8 %v2815
      %v2817 = vlaneseq
      %v2818 = vshrl.u32 %v2817, 7
      %v2819 = vsub.s32 %v2816, %v2818
      %v2820 = vrot.slane %v2813, %v2819
      %v2821 = vcombine.low %v2796, %v2804
      %v2822 = vcombine.high %v2796, %v2804
      %v2824 = vunpack.c.l.s4 1934713408
      %v2825 = vunpack.c.0.s8 %v2824
      %v2826 = vlaneseq
      %v2827 = vshrl.u32 %v2826, 7
      %v2828 = vsub.s32 %v2825, %v2827
      %v2829 = vrot.slane %v2821, %v2828
      %v2831 = vunpack.c.l.s4 1934713408
      %v2832 = vunpack.c.0.s8 %v2831
      %v2833 = vlaneseq
      %v2834 = vshrl.u32 %v2833, 7
      %v2835 = vsub.s32 %v2832, %v2834
      %v2836 = vrot.slane %v2822, %v2835
      %v2837 = vcombine.low %v2812, %v2820
      %v2838 = vcombine.high %v2812, %v2820
      %v2840 = vunpack.c.l.s4 1934713408
      %v2841 = vunpack.c.0.s8 %v2840
      %v2842 = vlaneseq
      %v2843 = vshrl.u32 %v2842, 7
      %v2844 = vsub.s32 %v2841, %v2843
      %v2845 = vrot.slane %v2837, %v2844
      %v2847 = vunpack.c.l.s4 1934713408
      %v2848 = vunpack.c.0.s8 %v2847
      %v2849 = vlaneseq
      %v2850 = vshrl.u32 %v2849, 7
      %v2851 = vsub.s32 %v2848, %v2850
      %v2852 = vrot.slane %v2838, %v2851
      %v2853 = vcombine.low %v2829, %v2845
      %v2854 = vcombine.high %v2829, %v2845
      %v2855 = vcombine.low %v2836, %v2852
      %v2856 = vcombine.high %v2836, %v2852
      %2858 = vrot.lane.b32.xlu0 %v2854, 8
      %v2859 = vpop.permute.xlu0 %2858
      %2862 = vrot.lane.b32.xlu0 %v2855, 16
      %v2863 = vpop.permute.xlu0 %2862
      %2866 = vrot.lane.b32.xlu0 %v2856, 24
      %v2867 = vpop.permute.xlu0 %2866
      %v2869 = vsel %vm1734, %v2853, %v2859
      %vm2870 = vcmask 130048
      %v2871 = vsel %vm2870, %v2869, %v2863
      %vm2872 = vcmask 195584
      %v2873 = vsel %vm2872, %v2871, %v2867
      %v2874 = vpack.c.bf16 %v2873, %v2873
      %v2875 = vld [vmem:[%s6] sm:$0xf]
      %v2876 = vld [vmem:[%s6 + $0x4] sm:$0xf]
      %v2877 = vld [vmem:[%s6 + $0x8] sm:$0xf]
      %v2878 = vld [vmem:[%s6 + $0xc] sm:$0xf]
      %v2879 = vld [vmem:[%s7] sm:$0x1]
      %v2881 = vlaneseq
      %v2882 = vshrl.u32 %v2881, 7
      %v2883 = vsub.s32 0, %v2882
      %v2884 = vrot.slane %v2879, %v2883
      %v2890 = vunpack.c.l.b16 %v2875
      %v2891 = vunpack.c.l.b16 %v2876
      %v2892 = vunpack.c.l.b16 %v2877
      %v2893 = vunpack.c.l.b16 %v2878
      %v2894 = vpack.c.b16 %v2891, %v2890
      %v2895 = vpack.c.b16 %v2893, %v2892
      %v2899 = vsel %vm956, %v2874, 0
      %2901 = vmatprep.subr.bf16.mxu0 0
      %2902 = vmatpush1.bf16.msra.mxu0 %v2894
      %2903 = vmatprep.subr.bf16.mxu0 0
      %2904 = vmatpush1.bf16.msra.mxu0 %v2895
      %2905 = vmatprep.subr.bf16.mxu0 0
      %2906 = vmatpush1.bf16.msra.mxu0 0
      %2907 = vmatprep.subr.bf16.mxu0 0
      %2908 = vmatpush1.bf16.msra.mxu0 0
      %2909 = vmatprep.subr.bf16.mxu0 0
      %2910 = vmatpush1.bf16.msra.mxu0 0
      %2911 = vmatprep.subr.bf16.mxu0 0
      %2912 = vmatpush1.bf16.msra.mxu0 0
      %2913 = vmatprep.subr.bf16.mxu0 0
      %2914 = vmatpush1.bf16.msra.mxu0 0
      %2915 = vmatprep.subr.bf16.mxu0 0
      %2916 = vmatpush1.bf16.msra.mxu0 0
      %2917 = vmatprep.subr.bf16.mxu0 0
      %2918 = vmatpush1.bf16.msra.mxu0 0
      %2919 = vmatprep.subr.bf16.mxu0 0
      %2920 = vmatpush1.bf16.msra.mxu0 0
      %2921 = vmatprep.subr.bf16.mxu0 0
      %2922 = vmatpush1.bf16.msra.mxu0 0
      %2923 = vmatprep.subr.bf16.mxu0 0
      %2924 = vmatpush1.bf16.msra.mxu0 0
      %2925 = vmatprep.subr.bf16.mxu0 0
      %2926 = vmatpush1.bf16.msra.mxu0 0
      %2927 = vmatprep.subr.bf16.mxu0 0
      %2928 = vmatpush1.bf16.msra.mxu0 0
      %2929 = vmatprep.subr.bf16.mxu0 0
      %2930 = vmatpush1.bf16.msra.mxu0 0
      %2931 = vmatprep.subr.bf16.mxu0 0
      %2932 = vmatpush1.bf16.msra.mxu0 0
      %2933 = vmatprep.mubr.bf16.mxu0 0
      %2934 = vmatmul.mubr.bf16.gmra.mrb[0].mxu0 %v2899
      %v2935 = vpop.f32.mrb[0].mxu0
      %v2936 = vadd.f32 %v2884, %v2935
      %v2937 = vpop.f32.mrb[0].mxu0
      %v2938 = vpop.f32.mrb[0].mxu0
      %v2939 = vpop.f32.mrb[0].mxu0
      %2940 = vdwg.mxu0
      %v2941 = vadd.f32 %v931, %v2936
      %v2942 = vld [vmem:[%s8] sm:$0x1]
      %v2943 = vld [vmem:[%s9] sm:$0x1]
      %v2944 = vsel %vm956, %v2941, 0.0
      %2945 = vadd.xlane.f32.xlu0 %v2944
      %v2946 = vpop.xlane.xlu0 %2945
      %v2947 = vrcp.pop 32.0
      %v2948 = vmul.f32 %v2946, %v2947
      %v2949 = vsub.f32 %v2941, %v2948
      %v2950 = vmul.f32 %v2949, %v2949
      %v2951 = vsel %vm956, %v2950, 0.0
      %2952 = vadd.xlane.f32.xlu0 %v2951
      %v2953 = vpop.xlane.xlu0 %2952
      %v2954 = vmul.f32 %v2953, %v2947
      %v2955 = vadd.f32 %v2954, 1e-05
      %v2956 = vrsqrt.pop %v2955
      %v2957 = vmul.f32 %v2949, %v2956
      %v2959 = vlaneseq
      %v2960 = vshrl.u32 %v2959, 7
      %v2961 = vsub.s32 0, %v2960
      %v2962 = vrot.slane %v2942, %v2961
      %v2964 = vmul.f32 %v2957, %v2962
      %v2966 = vlaneseq
      %v2967 = vshrl.u32 %v2966, 7
      %v2968 = vsub.s32 0, %v2967
      %v2969 = vrot.slane %v2943, %v2968
      %v2971 = vadd.f32 %v2964, %v2969
      %v2972 = vpack.c.bf16 %v2971, %v2971
      %v2973 = vld [vmem:[%s10] sm:$0xf]
      %v2974 = vld [vmem:[%s10 + $0x4] sm:$0xf]
      %v2975 = vld [vmem:[%s10 + $0x8] sm:$0xf]
      %v2976 = vld [vmem:[%s10 + $0xc] sm:$0xf]
      %v2977 = vld [vmem:[%s11] sm:$0x1]
      %v2979 = vlaneseq
      %v2980 = vshrl.u32 %v2979, 7
      %v2981 = vsub.s32 0, %v2980
      %v2982 = vrot.slane %v2977, %v2981
      %v2988 = vunpack.c.l.b16 %v2973
      %v2989 = vunpack.c.l.b16 %v2974
      %v2990 = vunpack.c.l.b16 %v2975
      %v2991 = vunpack.c.l.b16 %v2976
      %v2992 = vpack.c.b16 %v2989, %v2988
      %v2993 = vpack.c.b16 %v2991, %v2990
      %v2997 = vsel %vm956, %v2972, 0
      %2999 = vmatprep.subr.bf16.mxu0 0
      %3000 = vmatpush1.bf16.msra.mxu0 %v2992
      %3001 = vmatprep.subr.bf16.mxu0 0
      %3002 = vmatpush1.bf16.msra.mxu0 %v2993
      %3003 = vmatprep.subr.bf16.mxu0 0
      %3004 = vmatpush1.bf16.msra.mxu0 0
      %3005 = vmatprep.subr.bf16.mxu0 0
      %3006 = vmatpush1.bf16.msra.mxu0 0
      %3007 = vmatprep.subr.bf16.mxu0 0
      %3008 = vmatpush1.bf16.msra.mxu0 0
      %3009 = vmatprep.subr.bf16.mxu0 0
      %3010 = vmatpush1.bf16.msra.mxu0 0
      %3011 = vmatprep.subr.bf16.mxu0 0
      %3012 = vmatpush1.bf16.msra.mxu0 0
      %3013 = vmatprep.subr.bf16.mxu0 0
      %3014 = vmatpush1.bf16.msra.mxu0 0
      %3015 = vmatprep.subr.bf16.mxu0 0
      %3016 = vmatpush1.bf16.msra.mxu0 0
      %3017 = vmatprep.subr.bf16.mxu0 0
      %3018 = vmatpush1.bf16.msra.mxu0 0
      %3019 = vmatprep.subr.bf16.mxu0 0
      %3020 = vmatpush1.bf16.msra.mxu0 0
      %3021 = vmatprep.subr.bf16.mxu0 0
      %3022 = vmatpush1.bf16.msra.mxu0 0
      %3023 = vmatprep.subr.bf16.mxu0 0
      %3024 = vmatpush1.bf16.msra.mxu0 0
      %3025 = vmatprep.subr.bf16.mxu0 0
      %3026 = vmatpush1.bf16.msra.mxu0 0
      %3027 = vmatprep.subr.bf16.mxu0 0
      %3028 = vmatpush1.bf16.msra.mxu0 0
      %3029 = vmatprep.subr.bf16.mxu0 0
      %3030 = vmatpush1.bf16.msra.mxu0 0
      %3031 = vmatprep.mubr.bf16.mxu0 0
      %3032 = vmatmul.mubr.bf16.gmra.mrb[0].mxu0 %v2997
      %v3033 = vpop.f32.mrb[0].mxu0
      %v3034 = vadd.f32 %v2982, %v3033
      %v3035 = vpop.f32.mrb[0].mxu0
      %v3036 = vpop.f32.mrb[0].mxu0
      %v3037 = vpop.f32.mrb[0].mxu0
      %3038 = vdwg.mxu0
      %v3039 = vmax.f32 %v3034, 0.0
      %v3040 = vpack.c.bf16 %v3039, %v3039
      %v3041 = vld [vmem:[%s12] sm:$0xf]
      %v3042 = vld [vmem:[%s12 + $0x4] sm:$0xf]
      %v3043 = vld [vmem:[%s12 + $0x8] sm:$0xf]
      %v3044 = vld [vmem:[%s12 + $0xc] sm:$0xf]
      %v3045 = vld [vmem:[%s12 + $0x10] sm:$0xf]
      %v3046 = vld [vmem:[%s12 + $0x14] sm:$0xf]
      %v3047 = vld [vmem:[%s12 + $0x18] sm:$0xf]
      %v3048 = vld [vmem:[%s12 + $0x1c] sm:$0xf]
      %v3049 = vld [vmem:[%s13] sm:$0x1]
      %v3051 = vlaneseq
      %v3052 = vshrl.u32 %v3051, 7
      %v3053 = vsub.s32 0, %v3052
      %v3054 = vrot.slane %v3049, %v3053
      %v3064 = vunpack.c.l.b16 %v3041
      %v3065 = vunpack.c.l.b16 %v3042
      %v3066 = vunpack.c.l.b16 %v3043
      %v3067 = vunpack.c.l.b16 %v3044
      %v3068 = vunpack.c.l.b16 %v3045
      %v3069 = vunpack.c.l.b16 %v3046
      %v3070 = vunpack.c.l.b16 %v3047
      %v3071 = vunpack.c.l.b16 %v3048
      %v3072 = vpack.c.b16 %v3065, %v3064
      %v3073 = vpack.c.b16 %v3067, %v3066
      %v3074 = vpack.c.b16 %v3069, %v3068
      %v3075 = vpack.c.b16 %v3071, %v3070
      %vm3080 = vcmask 523264
      %v3082 = vsel %vm3080, %v3040, 0
      %3084 = vmatprep.subr.bf16.mxu0 0
      %3085 = vmatpush1.bf16.msra.mxu0 %v3072
      %3086 = vmatprep.subr.bf16.mxu0 0
      %3087 = vmatpush1.bf16.msra.mxu0 %v3073
      %3088 = vmatprep.subr.bf16.mxu0 0
      %3089 = vmatpush1.bf16.msra.mxu0 %v3074
      %3090 = vmatprep.subr.bf16.mxu0 0
      %3091 = vmatpush1.bf16.msra.mxu0 %v3075
      %3092 = vmatprep.subr.bf16.mxu0 0
      %3093 = vmatpush1.bf16.msra.mxu0 0
      %3094 = vmatprep.subr.bf16.mxu0 0
      %3095 = vmatpush1.bf16.msra.mxu0 0
      %3096 = vmatprep.subr.bf16.mxu0 0
      %3097 = vmatpush1.bf16.msra.mxu0 0
      %3098 = vmatprep.subr.bf16.mxu0 0
      %3099 = vmatpush1.bf16.msra.mxu0 0
      %3100 = vmatprep.subr.bf16.mxu0 0
      %3101 = vmatpush1.bf16.msra.mxu0 0
      %3102 = vmatprep.subr.bf16.mxu0 0
      %3103 = vmatpush1.bf16.msra.mxu0 0
      %3104 = vmatprep.subr.bf16.mxu0 0
      %3105 = vmatpush1.bf16.msra.mxu0 0
      %3106 = vmatprep.subr.bf16.mxu0 0
      %3107 = vmatpush1.bf16.msra.mxu0 0
      %3108 = vmatprep.subr.bf16.mxu0 0
      %3109 = vmatpush1.bf16.msra.mxu0 0
      %3110 = vmatprep.subr.bf16.mxu0 0
      %3111 = vmatpush1.bf16.msra.mxu0 0
      %3112 = vmatprep.subr.bf16.mxu0 0
      %3113 = vmatpush1.bf16.msra.mxu0 0
      %3114 = vmatprep.subr.bf16.mxu0 0
      %3115 = vmatpush1.bf16.msra.mxu0 0
      %3116 = vmatprep.mubr.bf16.mxu0 0
      %3117 = vmatmul.mubr.bf16.gmra.mrb[0].mxu0 %v3082
      %v3118 = vpop.f32.mrb[0].mxu0
      %v3119 = vadd.f32 %v3054, %v3118
      %v3120 = vpop.f32.mrb[0].mxu0
      %v3121 = vpop.f32.mrb[0].mxu0
      %v3122 = vpop.f32.mrb[0].mxu0
      %3123 = vdwg.mxu0
      %v3124 = vadd.f32 %v2971, %v3119
      %v3125 = vld [vmem:[%s14] sm:$0x1]
      %v3126 = vld [vmem:[%s15] sm:$0x1]
      %v3127 = vsel %vm956, %v3124, 0.0
      %3128 = vadd.xlane.f32.xlu0 %v3127
      %v3129 = vpop.xlane.xlu0 %3128
      %v3130 = vmul.f32 %v3129, %v2947
      %v3131 = vsub.f32 %v3124, %v3130
      %v3132 = vmul.f32 %v3131, %v3131
      %v3133 = vsel %vm956, %v3132, 0.0
      %3134 = vadd.xlane.f32.xlu0 %v3133
      %v3135 = vpop.xlane.xlu0 %3134
      %v3136 = vmul.f32 %v3135, %v2947
      %v3137 = vadd.f32 %v3136, 1e-05
      %v3138 = vrsqrt.pop %v3137
      %v3139 = vmul.f32 %v3131, %v3138
      %v3141 = vlaneseq
      %v3142 = vshrl.u32 %v3141, 7
      %v3143 = vsub.s32 0, %v3142
      %v3144 = vrot.slane %v3125, %v3143
      %v3146 = vmul.f32 %v3139, %v3144
      %v3148 = vlaneseq
      %v3149 = vshrl.u32 %v3148, 7
      %v3150 = vsub.s32 0, %v3149
      %v3151 = vrot.slane %v3126, %v3150
      %v3153 = vadd.f32 %v3146, %v3151
      %v3154 = vsel %vm956, %v3153, 0.0
      %v3155 = vrot.slane %v3154, 4
      %v3156 = vadd.f32 %v3154, %v3155
      %v3157 = vrot.slane %v3156, 2
      %v3158 = vadd.f32 %v3156, %v3157
      %v3159 = vrot.slane %v3158, 1
      %v3160 = vadd.f32 %v3158, %v3159
      %v3161 = vrcp.pop 8.0
      %v3162 = vmul.f32 %v3160, %v3161
      %v3163 = vld [vmem:[%s16] sm:$0x1]
      %v3164 = vmul.f32 %v3162, %v3163
      %vm3165 = vcmask 253952
      %v3166 = vsel %vm3165, %v3164, 0.0
      %3167 = vadd.xlane.f32.xlu0 %v3166
      %v3168 = vpop.xlane.xlu0 %3167
      %v3169 = vld [vmem:[#allocation6] sm:$0x1]
      %v3170 = vadd.f32 %v3168, %v3169
      %vm3171 = vcmask 0
      %3172 = vst.msk [vmem:[%s521] sm:$0x1] %vm3171, %v3170
      %p3173 = scmp.lt.s32.totalorder %s37, 1
      %s3174 = scalar_select %p3173, %s37, 1
      %s3175 = scalar_lea.vmem %s18, %s3174
      // Predicated region
      $region325: #{tpu_custom_call.1} parent=83 // pred_check
        %p3176 = pneg %p396
      $region326: #{tpu_custom_call.1} parent=83 // pred_check_branch
        %3178 = sbr.rel (%p3176) target = $region328
      $region327: #{tpu_custom_call.1} parent=83 // pred_region
        _
      $region328: #{tpu_custom_call.1} parent=83 // pred_fallthru
        _
    $region84: #{tpu_custom_call.1} parent=5 // pred_fallthru
      _
    %p3179 = scmp.le.s32.totalorder 2, %s32
    // Predicated region
    $region329: #{tpu_custom_call.1} parent=5 // pred_check
      %p3180 = pneg %p3179
    $region330: #{tpu_custom_call.1} parent=5 // pred_check_branch
      %3182 = sbr.rel (%p3180) target = $region332
    $region331: #{tpu_custom_call.1} parent=5 // pred_region
      %s3183 = ssub.s32 %s32, 2
      // Predicated region
      $region333: #{tpu_custom_call.1} parent=331 // pred_check
        %p3184 = pneg %p402
      $region334: #{tpu_custom_call.1} parent=331 // pred_check_branch
        %3186 = sbr.rel (%p3184) target = $region336
      $region335: #{tpu_custom_call.1} parent=331 // pred_region
        %p3187 = scmp.lt.s32.totalorder %s38, 1
        %s3188 = scalar_select %p3187, %s38, 1
        %s3189 = scalar_lea.vmem %s18, %s3188
      $region336: #{tpu_custom_call.1} parent=331 // pred_fallthru
        _
    $region332: #{tpu_custom_call.1} parent=5 // pred_fallthru
      _
  $region6: #{tpu_custom_call.1} parent=0 // loop_footer
    %s36 = sadd.s32 1, %s32
  $region7: #{tpu_custom_call.1} parent=0 // loop_footer_branch
    %31 = sbr.rel target = $region3
  $region8: #{tpu_custom_call.1} parent=0 // loop_exit
    _
  %3190 = vsyncmov [#allocation3]
  %s3191 = vpop.sfrf %3190
  %p3192 = scmp.eq.s32.totalorder %s3191, 0
  %p3193 = pneg %p3192
  %3195 = shalt.err (%p3193)
  %s3196 = scalar_lea.sflag [#allocation3], 1
  %3197 = vsyncmov %s3196
  %s3198 = vpop.sfrf %3197
  %p3199 = scmp.eq.s32.totalorder %s3198, 0
  %p3200 = pneg %p3199
  %3202 = shalt.err (%p3200)
  %s3203 = scalar_lea.sflag [#allocation3], 2
  %3204 = vsyncmov %s3203
  %s3205 = vpop.sfrf %3204
  %p3206 = scmp.eq.s32.totalorder %s3205, 0
  %p3207 = pneg %p3206
  %3209 = shalt.err (%p3207)
  %s3210 = scalar_lea.sflag [#allocation3], 3
  %3211 = vsyncmov %s3210
  %s3212 = vpop.sfrf %3211
  %p3213 = scmp.eq.s32.totalorder %s3212, 0
  %p3214 = pneg %p3213
  %3216 = shalt.err (%p3214)
  %s3217 = scalar_lea.sflag [#allocation3], 4
  %3218 = vsyncmov %s3217
  %s3219 = vpop.sfrf %3218
  %p3220 = scmp.eq.s32.totalorder %s3219, 0
  %p3221 = pneg %p3220
  %3223 = shalt.err (%p3221)
  %s3224 = scalar_lea.sflag [#allocation3], 5
  %3225 = vsyncmov %s3224
  %s3226 = vpop.sfrf %3225
  %p3227 = scmp.eq.s32.totalorder %s3226, 0
  %p3228 = pneg %p3227
  %3230 = shalt.err (%p3228)
  %s3231 = scalar_lea.sflag [#allocation3], 6
  %3232 = vsyncmov %s3231
  %s3233 = vpop.sfrf %3232
  %p3234 = scmp.eq.s32.totalorder %s3233, 0
  %p3235 = pneg %p3234
  %3237 = shalt.err (%p3235)
  %s3238 = scalar_lea.sflag [#allocation3], 7
  %3239 = vsyncmov %s3238
  %s3240 = vpop.sfrf %3239
  %p3241 = scmp.eq.s32.totalorder %s3240, 0
  %p3242 = pneg %p3241
  %3244 = shalt.err (%p3242)

</llo_original>
